<compile_context>
chip_gen: v7x
topology: tpu7x:2x2x1
jax: 0.10.0
libtpu: 0.0.40
codegen_flags: <defaults>
</compile_context>

<pallas_src>
import functools

import jax
import jax.numpy as jnp
from jax.experimental import pallas as pl
from jax.experimental.pallas import tpu as pltpu

_BN_EPS = 1e-3  # inception_v3 BasicConv2d BatchNorm eps


def _round_up(v, m):
    return (v + m - 1) // m * m


def _detect_vmem_limit():
    # Generation-aware, but hard-capped at 48 MiB: v7x has only 64 MiB of VMEM
    # per TensorCore and get_tpu_info may report per-chip capacity.
    cap = 64 * 1024 * 1024
    try:
        info = pltpu.get_tpu_info()
        cap = int(getattr(info, "vmem_capacity_bytes", cap))
    except Exception:
        pass
    return int(min(max(cap * 3 // 4, 32 * 1024 * 1024), 48 * 1024 * 1024))


_VMEM_LIMIT = _detect_vmem_limit()


# ----------------------------------------------------------------------------
# Pallas kernels
# ----------------------------------------------------------------------------
def _matmul_bias_kernel(a_ref, b_ref, s_ref, o_ref, *, relu):
    # bf16 x bf16 -> f32 on the MXU, f32 epilogue (+shift, optional ReLU),
    # cast to the output dtype (bf16 for intermediates, f32 for the heads).
    y = jnp.dot(a_ref[...], b_ref[...], preferred_element_type=jnp.float32)
    y = y + s_ref[...]
    if relu:
        y = jnp.maximum(y, 0.0)
    o_ref[...] = y.astype(o_ref.dtype)


def matmul_bias(a, b, shift, *, relu, out_dtype=jnp.bfloat16):
    """relu?(a @ b + shift).  a:(M,K)  b:(K,N)  shift:(N,) -> (M,N) out_dtype."""
    M, K = a.shape
    N = b.shape[1]
    a = a.astype(jnp.bfloat16)
    b = b.astype(jnp.bfloat16)
    shift2 = shift.astype(jnp.float32).reshape(1, N)

    # Lane-dense N tiles (full N when it already fits one tile).
    tn = N if N <= 512 else 512
    # M tile from a per-layer VMEM budget for the double-buffered bf16 A block.
    a_budget = max(4 * 1024 * 1024, _VMEM_LIMIT // 5)
    tm = a_budget // (2 * K * 2)
    tm = max(128, min(2048, tm // 128 * 128))
    tm = min(tm, _round_up(M, 8))
    gm, gn = pl.cdiv(M, tm), pl.cdiv(N, tn)

    out_isz = jnp.dtype(out_dtype).itemsize
    cost = pl.CostEstimate(
        flops=2 * M * N * K,
        transcendentals=0,
        bytes_accessed=int(M * K * 2 + K * N * 2 + M * N * out_isz + N * 4),
    )
    return pl.pallas_call(
        functools.partial(_matmul_bias_kernel, relu=relu),
        out_shape=jax.ShapeDtypeStruct((M, N), out_dtype),
        grid=(gm, gn),
        in_specs=[
            pl.BlockSpec((tm, K), lambda i, j: (i, 0)),
            pl.BlockSpec((K, tn), lambda i, j: (0, j)),
            pl.BlockSpec((1, tn), lambda i, j: (0, j)),
        ],
        out_specs=pl.BlockSpec((tm, tn), lambda i, j: (i, j)),
        compiler_params=pltpu.CompilerParams(
            dimension_semantics=("parallel", "parallel"),
            vmem_limit_bytes=_VMEM_LIMIT,
        ),
        cost_estimate=cost,
    )(a, b, shift2)


def _tap_conv_kernel(x_ref, w_ref, s_ref, o_ref, *, offsets, m_out, relu):
    # Stride-1 KxK conv as a sum of shifted 1x1 matmuls.  The per-image padded
    # input slab is resident in VMEM as a flattened (M_in, Cin) matrix; tap
    # (di, dj) is a row-offset slice of it (offset = di*Wp + dj).  Garbage
    # columns (w >= Wo) of the padded-width output are sliced away outside.
    acc = None
    for t, off in enumerate(offsets):
        a = x_ref[0, off:off + m_out, :]
        y = jnp.dot(a, w_ref[t], preferred_element_type=jnp.float32)
        acc = y if acc is None else acc + y
    acc = acc + s_ref[...]
    if relu:
        acc = jnp.maximum(acc, 0.0)
    o_ref[0] = acc.astype(o_ref.dtype)


def tap_conv(x, w, shift, padding, *, relu, out_dtype=jnp.bfloat16):
    """Stride-1 KxK conv without HBM im2col.  x:(N,H,W,Cin) bf16."""
    KH, KW, Cin, Cout = w.shape
    ph, pw = padding
    Nb, H, W, _ = x.shape
    Hp = H + 2 * ph
    Wp = W + 2 * pw
    Ho = Hp - KH + 1
    Wo = Wp - KW + 1
    # One extra bottom zero-row keeps the last tap's flattened slice in bounds
    # when KW > 1 (the horizontal shift wraps into the next row).
    extra = 1 if KW > 1 else 0
    if ph or pw or extra:
        x = jnp.pad(x, ((0, 0), (ph, ph + extra), (pw, pw), (0, 0)))
    m_in = (Hp + extra) * Wp
    m_out = Ho * Wp
    xf = x.reshape(Nb, m_in, Cin)
    w3 = w.reshape(KH * KW, Cin, Cout).astype(jnp.bfloat16)
    s2 = shift.astype(jnp.float32).reshape(1, Cout)
    offsets = [di * Wp + dj for di in range(KH) for dj in range(KW)]

    out_isz = jnp.dtype(out_dtype).itemsize
    cost = pl.CostEstimate(
        flops=2 * Nb * m_out * Cin * Cout * KH * KW,
        transcendentals=0,
        bytes_accessed=int(Nb * (m_in * Cin * 2 + m_out * Cout * out_isz)
                           + KH * KW * Cin * Cout * 2),
    )
    out = pl.pallas_call(
        functools.partial(_tap_conv_kernel, offsets=offsets, m_out=m_out, relu=relu),
        out_shape=jax.ShapeDtypeStruct((Nb, m_out, Cout), out_dtype),
        grid=(Nb,),
        in_specs=[
            pl.BlockSpec((1, m_in, Cin), lambda n: (n, 0, 0)),
            pl.BlockSpec((KH * KW, Cin, Cout), lambda n: (0, 0, 0)),
            pl.BlockSpec((1, Cout), lambda n: (0, 0)),
        ],
        out_specs=pl.BlockSpec((1, m_out, Cout), lambda n: (n, 0, 0)),
        compiler_params=pltpu.CompilerParams(
            dimension_semantics=("parallel",),
            vmem_limit_bytes=_VMEM_LIMIT,
        ),
        cost_estimate=cost,
    )(xf, w3, s2)
    out = out.reshape(Nb, Ho, Wp, Cout)
    if Wp != Wo:
        out = out[:, :, :Wo, :]
    return out


def _maxpool_v_kernel(x_ref, o_ref):
    # Vertical strided (stride 2) 3-tap max over the horizontally-maxed slab.
    # Leading-dim reshapes/slices only -> no lane/sublane relayout.
    ho = o_ref.shape[1]
    x = x_ref[0]                      # (H, Wo, C)
    wo, c = x.shape[1], x.shape[2]
    a = x[0:2 * ho].reshape(ho, 2, wo, c)       # rows 2i / 2i+1
    b = x[1:2 * ho + 1].reshape(ho, 2, wo, c)   # rows 2i+1 / 2i+2
    o_ref[0] = jnp.maximum(jnp.maximum(a[:, 0], a[:, 1]), b[:, 1])


def max_pool(x, k=3, stride=2):
    """F.max_pool2d(x, 3, stride=2) (padding=0), bf16 in / bf16 out."""
    assert k == 3 and stride == 2
    Nb, H, W, C = x.shape
    Ho = (H - k) // stride + 1
    Wo = (W - k) // stride + 1
    # Horizontal strided 3-tap max as fused XLA elementwise glue.
    stop = stride * (Wo - 1) + 1
    hm = x[:, :, 0:stop:stride, :]
    for j in range(1, k):
        hm = jnp.maximum(hm, x[:, :, j:j + stop:stride, :])
    # hm: (Nb, H, Wo, C); vertical strided max per image in Pallas.
    cost = pl.CostEstimate(
        flops=2 * Nb * Ho * Wo * C,
        transcendentals=0,
        bytes_accessed=int(Nb * (H * Wo + Ho * Wo) * C * 2),
    )
    return pl.pallas_call(
        _maxpool_v_kernel,
        out_shape=jax.ShapeDtypeStruct((Nb, Ho, Wo, C), x.dtype),
        grid=(Nb,),
        in_specs=[pl.BlockSpec((1, H, Wo, C), lambda n: (n, 0, 0, 0))],
        out_specs=pl.BlockSpec((1, Ho, Wo, C), lambda n: (n, 0, 0, 0)),
        compiler_params=pltpu.CompilerParams(
            dimension_semantics=("parallel",),
            vmem_limit_bytes=_VMEM_LIMIT,
        ),
        cost_estimate=cost,
    )(hm)


def _avgpool3x3_kernel(x_ref, o_ref):
    # Full 3x3 stride-1 average pool (count_include_pad) on the padded slab:
    # horizontal + vertical 3-tap sums both in-kernel, f32 accumulate.
    h, w = o_ref.shape[1], o_ref.shape[2]
    x = x_ref[0].astype(jnp.float32)                 # (H+2, W+2, C)
    xw = x[:, 0:w] + x[:, 1:w + 1] + x[:, 2:w + 2]   # (H+2, W, C)
    acc = xw[0:h] + xw[1:h + 1] + xw[2:h + 2]        # (H, W, C)
    o_ref[0] = (acc * (1.0 / 9.0)).astype(o_ref.dtype)


def avg_pool3x3_s1p1(x):
    """F.avg_pool2d(x, 3, stride=1, padding=1), count_include_pad=True."""
    Nb, H, W, C = x.shape
    xp = jnp.pad(x, ((0, 0), (1, 1), (1, 1), (0, 0)))
    cost = pl.CostEstimate(
        flops=6 * Nb * H * W * C,
        transcendentals=0,
        bytes_accessed=int(Nb * ((H + 2) * (W + 2) + H * W) * C * 2),
    )
    return pl.pallas_call(
        _avgpool3x3_kernel,
        out_shape=jax.ShapeDtypeStruct((Nb, H, W, C), x.dtype),
        grid=(Nb,),
        in_specs=[pl.BlockSpec((1, H + 2, W + 2, C), lambda n: (n, 0, 0, 0))],
        out_specs=pl.BlockSpec((1, H, W, C), lambda n: (n, 0, 0, 0)),
        compiler_params=pltpu.CompilerParams(
            dimension_semantics=("parallel",),
            vmem_limit_bytes=_VMEM_LIMIT,
        ),
        cost_estimate=cost,
    )(xp)


def _avgpool_linear_kernel(x_ref, w_ref, b_ref, o_ref):
    # Global 8x8 average pool fused with the emb_cnn_code Linear head.
    nb, s, _ = x_ref.shape
    rows = [jnp.sum(x_ref[n].astype(jnp.float32), axis=0, keepdims=True)
            for n in range(nb)]
    pooled = jnp.concatenate(rows, axis=0) * (1.0 / s)        # (nb, C) f32
    y = jnp.dot(pooled.astype(jnp.bfloat16), w_ref[...],
                preferred_element_type=jnp.float32)
    o_ref[...] = y + b_ref[...]


def avgpool_linear(x, w, b):
    """x:(N,S,C) bf16, w:(C,nef) bf16, b:(nef,) f32 -> (N,nef) f32."""
    Nb, S, C = x.shape
    nef = w.shape[1]
    cost = pl.CostEstimate(
        flops=2 * Nb * C * nef + Nb * S * C,
        transcendentals=0,
        bytes_accessed=int(Nb * S * C * 2 + C * nef * 2 + Nb * nef * 4),
    )
    return pl.pallas_call(
        _avgpool_linear_kernel,
        out_shape=jax.ShapeDtypeStruct((Nb, nef), jnp.float32),
        grid=(1,),
        in_specs=[
            pl.BlockSpec((Nb, S, C), lambda i: (0, 0, 0)),
            pl.BlockSpec((C, nef), lambda i: (0, 0)),
            pl.BlockSpec((1, nef), lambda i: (0, 0)),
        ],
        out_specs=pl.BlockSpec((Nb, nef), lambda i: (0, 0)),
        compiler_params=pltpu.CompilerParams(vmem_limit_bytes=_VMEM_LIMIT),
        cost_estimate=cost,
    )(x.astype(jnp.bfloat16), w.astype(jnp.bfloat16), b.astype(jnp.float32).reshape(1, nef))


# ----------------------------------------------------------------------------
# Conv / pool wrappers (thin XLA glue + Pallas hot path)
# ----------------------------------------------------------------------------
def conv2d(x, w, shift, stride, padding, *, relu, out_dtype=jnp.bfloat16):
    """x:(N,H,W,Cin) bf16  w:(KH,KW,Cin,Cout) -> (N,Ho,Wo,Cout) out_dtype."""
    KH, KW, Cin, Cout = w.shape
    sh, sw = stride
    ph, pw = padding
    Nb, H, W, _ = x.shape
    if x.dtype != jnp.bfloat16:
        x = x.astype(jnp.bfloat16)
    Ho = (H + 2 * ph - KH) // sh + 1
    Wo = (W + 2 * pw - KW) // sw + 1

    if KH == 1 and KW == 1 and sh == 1 and sw == 1 and ph == 0 and pw == 0:
        # 1x1 conv: plain matmul, no im2col.
        out = matmul_bias(x.reshape(Nb * H * W, Cin), w.reshape(Cin, Cout),
                          shift, relu=relu, out_dtype=out_dtype)
        return out.reshape(Nb, Ho, Wo, Cout)

    if sh == 1 and sw == 1:
        # Stride-1 KxK conv: in-VMEM tap accumulation, no HBM im2col.
        return tap_conv(x, w, shift, (ph, pw), relu=relu, out_dtype=out_dtype)

    # Strided conv (5 small layers): im2col is cheap at their output sizes.
    xb = x
    if ph or pw:
        xb = jnp.pad(xb, ((0, 0), (ph, ph), (pw, pw), (0, 0)))
    cols = [xb[:, i:i + sh * Ho:sh, j:j + sw * Wo:sw, :]
            for i in range(KH) for j in range(KW)]
    patches = jnp.concatenate(cols, axis=-1).reshape(Nb * Ho * Wo, KH * KW * Cin)
    out = matmul_bias(patches, w.reshape(KH * KW * Cin, Cout), shift,
                      relu=relu, out_dtype=out_dtype)
    return out.reshape(Nb, Ho, Wo, Cout)


def apply_basic_conv(x, p, relu=True):
    return conv2d(x, p["w"], p["shift"], p["stride"], p["padding"], relu=relu)


def fused_conv1x1(x, branch_params, relu=True):
    """Fuse several 1x1-conv branches reading the same input into one MXU
    matmul; split the output afterwards.
    # TODO(synk): optionally 128-lane-align branch offsets; skipped because the
    # extra HBM write bytes roughly cancel the saved relayout copies here."""
    ws, shifts, widths = [], [], []
    for p in branch_params:
        _, _, cin, cout = p["w"].shape
        ws.append(p["w"].reshape(cin, cout))
        shifts.append(p["shift"])
        widths.append(cout)
    w_cat = jnp.concatenate(ws, axis=1)
    s_cat = jnp.concatenate(shifts, axis=0)
    Nb, H, W, Cin = x.shape
    y = matmul_bias(x.reshape(Nb * H * W, Cin), w_cat, s_cat, relu=relu)
    y = y.reshape(Nb, H, W, sum(widths))
    outs, off = [], 0
    for cw in widths:
        outs.append(y[..., off:off + cw])
        off += cw
    return outs


# ----------------------------------------------------------------------------
# Parameter construction (deterministic synthetic init, BN folded into weights)
# ----------------------------------------------------------------------------
class ParamGen:
    def __init__(self, key):
        self.key = key

    def next(self):
        self.key, sub = jax.random.split(self.key)
        return sub


def _pair(v):
    return (v, v) if isinstance(v, int) else tuple(v)


def make_basic_conv(pg, cin, cout, k, stride=1, padding=0):
    """Conv(bias=False) + BatchNorm(eps=1e-3) + ReLU, BN folded into weights."""
    kh, kw = _pair(k)
    fan_in = kh * kw * cin
    w = jax.random.normal(pg.next(), (kh, kw, cin, cout), jnp.float32) * jnp.sqrt(2.0 / fan_in)
    # BN (gamma=1, beta=0, mean=0, var=1): scale = 1/sqrt(var+eps) folded in.
    w = w * (1.0 / jnp.sqrt(1.0 + _BN_EPS))
    return {"w": w.astype(jnp.bfloat16),
            "shift": jnp.zeros((cout,), jnp.float32),
            "stride": _pair(stride), "padding": _pair(padding)}


def make_inception_a(pg, cin, pool_features):
    return {
        "b1": make_basic_conv(pg, cin, 64, 1),
        "b5_1": make_basic_conv(pg, cin, 48, 1),
        "b5_2": make_basic_conv(pg, 48, 64, 5, padding=2),
        "b3d_1": make_basic_conv(pg, cin, 64, 1),
        "b3d_2": make_basic_conv(pg, 64, 96, 3, padding=1),
        "b3d_3": make_basic_conv(pg, 96, 96, 3, padding=1),
        "bp": make_basic_conv(pg, cin, pool_features, 1),
    }


def apply_inception_a(x, p):
    b1, b5, b3 = fused_conv1x1(x, [p["b1"], p["b5_1"], p["b3d_1"]])
    b5 = apply_basic_conv(b5, p["b5_2"])
    b3 = apply_basic_conv(apply_basic_conv(b3, p["b3d_2"]), p["b3d_3"])
    bp = apply_basic_conv(avg_pool3x3_s1p1(x), p["bp"])
    return jnp.concatenate([b1, b5, b3, bp], axis=-1)


def make_inception_b(pg, cin):
    return {
        "b3": make_basic_conv(pg, cin, 384, 3, stride=2),
        "b3d_1": make_basic_conv(pg, cin, 64, 1),
        "b3d_2": make_basic_conv(pg, 64, 96, 3, padding=1),
        "b3d_3": make_basic_conv(pg, 96, 96, 3, stride=2),
    }


def apply_inception_b(x, p):
    b3 = apply_basic_conv(x, p["b3"])
    b3d = apply_basic_conv(
        apply_basic_conv(apply_basic_conv(x, p["b3d_1"]), p["b3d_2"]), p["b3d_3"])
    bp = max_pool(x, 3, 2)
    return jnp.concatenate([b3, b3d, bp], axis=-1)


def make_inception_c(pg, cin, c7):
    return {
        "b1": make_basic_conv(pg, cin, 192, 1),
        "b7_1": make_basic_conv(pg, cin, c7, 1),
        "b7_2": make_basic_conv(pg, c7, c7, (1, 7), padding=(0, 3)),
        "b7_3": make_basic_conv(pg, c7, 192, (7, 1), padding=(3, 0)),
        "b7d_1": make_basic_conv(pg, cin, c7, 1),
        "b7d_2": make_basic_conv(pg, c7, c7, (7, 1), padding=(3, 0)),
        "b7d_3": make_basic_conv(pg, c7, c7, (1, 7), padding=(0, 3)),
        "b7d_4": make_basic_conv(pg, c7, c7, (7, 1), padding=(3, 0)),
        "b7d_5": make_basic_conv(pg, c7, 192, (1, 7), padding=(0, 3)),
        "bp": make_basic_conv(pg, cin, 192, 1),
    }


def apply_inception_c(x, p):
    b1, b7, b7d = fused_conv1x1(x, [p["b1"], p["b7_1"], p["b7d_1"]])
    b7 = apply_basic_conv(apply_basic_conv(b7, p["b7_2"]), p["b7_3"])
    for k in ("b7d_2", "b7d_3", "b7d_4", "b7d_5"):
        b7d = apply_basic_conv(b7d, p[k])
    bp = apply_basic_conv(avg_pool3x3_s1p1(x), p["bp"])
    return jnp.concatenate([b1, b7, b7d, bp], axis=-1)


def make_inception_d(pg, cin):
    return {
        "b3_1": make_basic_conv(pg, cin, 192, 1),
        "b3_2": make_basic_conv(pg, 192, 320, 3, stride=2),
        "b7_1": make_basic_conv(pg, cin, 192, 1),
        "b7_2": make_basic_conv(pg, 192, 192, (1, 7), padding=(0, 3)),
        "b7_3": make_basic_conv(pg, 192, 192, (7, 1), padding=(3, 0)),
        "b7_4": make_basic_conv(pg, 192, 192, 3, stride=2),
    }


def apply_inception_d(x, p):
    b3, b7 = fused_conv1x1(x, [p["b3_1"], p["b7_1"]])
    b3 = apply_basic_conv(b3, p["b3_2"])
    for k in ("b7_2", "b7_3", "b7_4"):
        b7 = apply_basic_conv(b7, p[k])
    bp = max_pool(x, 3, 2)
    return jnp.concatenate([b3, b7, bp], axis=-1)


def make_inception_e(pg, cin):
    return {
        "b1": make_basic_conv(pg, cin, 320, 1),
        "b3_1": make_basic_conv(pg, cin, 384, 1),
        "b3_2a": make_basic_conv(pg, 384, 384, (1, 3), padding=(0, 1)),
        "b3_2b": make_basic_conv(pg, 384, 384, (3, 1), padding=(1, 0)),
        "b3d_1": make_basic_conv(pg, cin, 448, 1),
        "b3d_2": make_basic_conv(pg, 448, 384, 3, padding=1),
        "b3d_3a": make_basic_conv(pg, 384, 384, (1, 3), padding=(0, 1)),
        "b3d_3b": make_basic_conv(pg, 384, 384, (3, 1), padding=(1, 0)),
        "bp": make_basic_conv(pg, cin, 192, 1),
    }


def apply_inception_e(x, p):
    b1, b3, b3d = fused_conv1x1(x, [p["b1"], p["b3_1"], p["b3d_1"]])
    b3 = jnp.concatenate([apply_basic_conv(b3, p["b3_2a"]),
                          apply_basic_conv(b3, p["b3_2b"])], axis=-1)
    b3d = apply_basic_conv(b3d, p["b3d_2"])
    b3d = jnp.concatenate([apply_basic_conv(b3d, p["b3d_3a"]),
                           apply_basic_conv(b3d, p["b3d_3b"])], axis=-1)
    bp = apply_basic_conv(avg_pool3x3_s1p1(x), p["bp"])
    return jnp.concatenate([b1, b3, b3d, bp], axis=-1)


def make_params(key, nef=256):
    pg = ParamGen(key)
    p = {"nef": nef}
    p["c1a"] = make_basic_conv(pg, 3, 32, 3, stride=2)
    p["c2a"] = make_basic_conv(pg, 32, 32, 3)
    p["c2b"] = make_basic_conv(pg, 32, 64, 3, padding=1)
    p["c3b"] = make_basic_conv(pg, 64, 80, 1)
    p["c4a"] = make_basic_conv(pg, 80, 192, 3)
    p["m5b"] = make_inception_a(pg, 192, 32)
    p["m5c"] = make_inception_a(pg, 256, 64)
    p["m5d"] = make_inception_a(pg, 288, 64)
    p["m6a"] = make_inception_b(pg, 288)
    p["m6b"] = make_inception_c(pg, 768, 128)
    p["m6c"] = make_inception_c(pg, 768, 160)
    p["m6d"] = make_inception_c(pg, 768, 160)
    p["m6e"] = make_inception_c(pg, 768, 192)
    p["m7a"] = make_inception_d(pg, 768)
    p["m7b"] = make_inception_e(pg, 1280)
    p["m7c"] = make_inception_e(pg, 2048)
    # trainable heads: uniform(-0.1, 0.1) as in init_trainable_weights()
    p["emb_feat_w"] = jax.random.uniform(
        pg.next(), (768, nef), jnp.float32, -0.1, 0.1).astype(jnp.bfloat16)
    p["emb_cnn_w"] = jax.random.uniform(
        pg.next(), (2048, nef), jnp.float32, -0.1, 0.1).astype(jnp.bfloat16)
    bound = 1.0 / jnp.sqrt(2048.0)
    p["emb_cnn_b"] = jax.random.uniform(pg.next(), (nef,), jnp.float32, -bound, bound)
    return p


# ----------------------------------------------------------------------------
# Forward pass (mirrors CNN_ENCODER.forward)
# ----------------------------------------------------------------------------
def cnn_encoder_forward(params, x_nchw):
    nef = params["nef"]
    N = x_nchw.shape[0]
    # nn.Upsample(size=(299,299), mode='bilinear'): half-pixel bilinear resize
    # (XLA glue, not Pallas).
    x = jax.image.resize(x_nchw, (N, x_nchw.shape[1], 299, 299), method="bilinear")
    x = jnp.transpose(x, (0, 2, 3, 1)).astype(jnp.bfloat16)   # NCHW -> NHWC bf16

    x = apply_basic_conv(x, params["c1a"])              # 149x149x32
    x = apply_basic_conv(x, params["c2a"])              # 147x147x32
    x = apply_basic_conv(x, params["c2b"])              # 147x147x64
    x = max_pool(x, 3, 2)                               # 73x73x64
    x = apply_basic_conv(x, params["c3b"])              # 73x73x80
    x = apply_basic_conv(x, params["c4a"])              # 71x71x192
    x = max_pool(x, 3, 2)                               # 35x35x192
    x = apply_inception_a(x, params["m5b"])             # 35x35x256
    x = apply_inception_a(x, params["m5c"])             # 35x35x288
    x = apply_inception_a(x, params["m5d"])             # 35x35x288
    x = apply_inception_b(x, params["m6a"])              # 17x17x768
    x = apply_inception_c(x, params["m6b"])
    x = apply_inception_c(x, params["m6c"])
    x = apply_inception_c(x, params["m6d"])
    x = apply_inception_c(x, params["m6e"])              # 17x17x768
    features = x
    x = apply_inception_d(x, params["m7a"])              # 8x8x1280
    x = apply_inception_e(x, params["m7b"])              # 8x8x2048
    x = apply_inception_e(x, params["m7c"])              # 8x8x2048

    # F.avg_pool2d(x, 8) + flatten + emb_cnn_code Linear, fused in one kernel.
    Nb, Hh, Ww, Cc = x.shape
    cnn_code = avgpool_linear(x.reshape(Nb, Hh * Ww, Cc),
                              params["emb_cnn_w"], params["emb_cnn_b"])

    # emb_features: conv1x1(768 -> nef, bias=False), f32 output.
    Fb, Fh, Fw, Fc = features.shape
    feat = matmul_bias(features.reshape(Fb * Fh * Fw, Fc), params["emb_feat_w"],
                       jnp.zeros((nef,), jnp.float32), relu=False,
                       out_dtype=jnp.float32)
    features_out = jnp.transpose(feat.reshape(Fb, Fh, Fw, nef), (0, 3, 1, 2))
    return features_out, cnn_code


if __name__ == "__main__":
    key = jax.random.PRNGKey(0)
    pkey, xkey = jax.random.split(key)
    params = make_params(pkey, nef=256)
    # Small NCHW image input (the module upsamples to 299x299 internally).
    x = jax.random.normal(xkey, (2, 3, 16, 16), jnp.float32)
    features, cnn_code = cnn_encoder_forward(params, x)
    jax.block_until_ready((features, cnn_code))
    assert features.shape == (2, 256, 17, 17), features.shape
    assert cnn_code.shape == (2, 256), cnn_code.shape
    assert features.dtype == jnp.float32 and cnn_code.dtype == jnp.float32
    assert bool(jnp.all(jnp.isfinite(features))) and bool(jnp.all(jnp.isfinite(cnn_code)))
    print("KERNEL_OK")
</pallas_src>

<mosaic_0001>
module attributes {stable_mosaic.version = 11 : i64} {
  func.func @_matmul_bias_kernel(%arg0: i32, %arg1: i32, %arg2: memref<2048x27xbf16, #tpu.memory_space<vmem>>, %arg3: memref<27x32xbf16, #tpu.memory_space<vmem>>, %arg4: memref<1x32xf32, #tpu.memory_space<vmem>>, %arg5: memref<2048x32xbf16, #tpu.memory_space<vmem>>) attributes {dimension_semantics = [#tpu.dimension_semantics<parallel>, #tpu.dimension_semantics<parallel>], iteration_bounds = array<i64: 22, 1>, scalar_prefetch = 0 : i64, scratch_operands = 0 : i64, tpu.core_type = #tpu.core_type<tc>, window_params = [{transform_indices = @transform_0, window_bounds = array<i64: 2048, 27>}, {transform_indices = @transform_1, window_bounds = array<i64: 27, 32>}, {transform_indices = @transform_2, window_bounds = array<i64: 1, 32>}, {transform_indices = @transform_3, window_bounds = array<i64: 2048, 32>}]} {
    %c0 = arith.constant 0 : index
    %c0_0 = arith.constant 0 : index
    %0 = vector.load %arg2[%c0, %c0_0] : memref<2048x27xbf16, #tpu.memory_space<vmem>>, vector<2048x27xbf16>
    %c0_1 = arith.constant 0 : index
    %c0_2 = arith.constant 0 : index
    %1 = vector.load %arg3[%c0_1, %c0_2] : memref<27x32xbf16, #tpu.memory_space<vmem>>, vector<27x32xbf16>
    %cst = arith.constant dense<0.000000e+00> : vector<2048x32xf32>
    %2 = tpu.matmul %0, %1, %cst {dimension_numbers = #tpu.dot_dimension_numbers<[1], [0], [0], [1], [0, 0, 1, 1], [], []>} : vector<2048x27xbf16>, vector<27x32xbf16>, vector<2048x32xf32> -> vector<2048x32xf32>
    %c0_3 = arith.constant 0 : index
    %c0_4 = arith.constant 0 : index
    %3 = vector.load %arg4[%c0_3, %c0_4] : memref<1x32xf32, #tpu.memory_space<vmem>>, vector<1x32xf32>
    %4 = vector.broadcast %3 : vector<1x32xf32> to vector<2048x32xf32>
    %5 = arith.addf %2, %4 : vector<2048x32xf32>
    %cst_5 = arith.constant 0.000000e+00 : f32
    %6 = vector.broadcast %cst_5 : f32 to vector<2048x32xf32>
    %7 = arith.maximumf %5, %6 : vector<2048x32xf32>
    %8 = arith.truncf %7 : vector<2048x32xf32> to vector<2048x32xbf16>
    %c0_6 = arith.constant 0 : index
    %c0_7 = arith.constant 0 : index
    %9 = vector.load %arg5[%c0_6, %c0_7] : memref<2048x32xbf16, #tpu.memory_space<vmem>>, vector<2048x32xbf16>
    tpu.vector_store %arg5[%c0_6, %c0_7], %8 {strides = array<i32>} : memref<2048x32xbf16, #tpu.memory_space<vmem>>, vector<2048x32xbf16>,
    return
  }
  func.func @transform_0(%arg0: i32, %arg1: i32) -> (i32, i32) {
    %c0_i32 = arith.constant 0 : i32
    %c0_i32_0 = arith.constant 0 : i32
    return %arg0, %c0_i32 : i32, i32
  }
  func.func @transform_1(%arg0: i32, %arg1: i32) -> (i32, i32) {
    %c0_i32 = arith.constant 0 : i32
    %c0_i32_0 = arith.constant 0 : i32
    return %c0_i32, %arg1 : i32, i32
  }
  func.func @transform_2(%arg0: i32, %arg1: i32) -> (i32, i32) {
    %c0_i32 = arith.constant 0 : i32
    %c0_i32_0 = arith.constant 0 : i32
    return %c0_i32, %arg1 : i32, i32
  }
  func.func @transform_3(%arg0: i32, %arg1: i32) -> (i32, i32) {
    %c0_i32 = arith.constant 0 : i32
    return %arg0, %arg1 : i32, i32
  }
}

</mosaic_0001>

<llo_original>
// kernel: tpu_custom_call.1
$region0: #{tpu_custom_call.1}
  #allocation0 [shape = 'u32[]', space=smem, size = 0x4, offset = 0x4, fixed_abs, tag = 'smem constant byte address 0x4 - core index']
  #allocation1 [shape = 'u32[144,128]{1,0:T(1,128)}', space=vmem, size = 0x12000, scoped, tag = 'internal scratch']
  %s0 = inlined_call_operand.hbm [shape: bf16[44402,27], index: 0, kind: input, shape index: {}]
  %s1 = inlined_call_operand.vmem [shape: bf16[27,32], index: 1, kind: input, shape index: {}]
  %s2 = inlined_call_operand.vmem [shape: f32[1,32], index: 2, kind: input, shape index: {}]
  %s3 = inlined_call_operand.vmem [shape: bf16[44402,32], index: 3, kind: output, shape index: {}]
  %s4 = sld [smem:[#allocation0]]
  $region93: #{tpu_custom_call.1} parent=0
    _
  %s6 = ssub.s32 1, %s4
  %s7 = scalar_select 0, %s6, %s4
  $region1: #{tpu_custom_call.1} parent=0
    #allocation2 [shape = 'u8[1048576]{0}', space=vmem, size = 0x100000, scoped, tag = 'input window, operand 0']
    #allocation3 [shape = 's32[2]{0}', space=sflag, size = 0x8, scoped, tag = 'scoped memory for tpu_custom_call.1']
    #allocation4 [shape = 'u8[1048576]{0}', space=vmem, size = 0x100000, scoped, tag = 'output window, operand 0']
    %8 = vsyncpa [#allocation3], 0
    %s9 = scalar_lea.sflag [#allocation3], 1
    %10 = vsyncpa %s9, 0
    loop: start=0, step=1, limit=24
    $region2: #{tpu_custom_call.1} parent=1 // loop_pre_header
      _
    $region3: #{tpu_custom_call.1} parent=1 // loop_header
      %s12 = sphi 0, %s16
      %p13 = scmp.ge.s32.totalorder %s12, 24
      %s19 = sphi 0, %s31
      %s20 = sphi 0, %s27
      %s21 = sphi 0, %s19
      %s22 = sphi 0, %s20
      %s23 = sphi 0, %s21
      %s24 = sphi 0, %s22
      %s34 = sphi 0, %s36
      %s37 = sphi 0, %s34
      %s38 = sphi 0, %s37
      %s54 = sphi 0, %s38
      %s60 = sphi 0, %s62
      %s63 = sphi 0, %s60
      %s64 = sphi 0, %s63
      %s80 = sphi 0, %s64
      %s86 = sphi 0, %s88
      %s89 = sphi 0, %s86
      %s90 = sphi 0, %s89
      %s106 = sphi 0, %s90
      %s114 = sphi 0, %s116
      %s117 = sphi 0, %s114
      %s118 = sphi 0, %s117
      %s134 = sphi 0, %s118
    $region4: #{tpu_custom_call.1} parent=1 // loop_header_branch
      %15 = sbr.rel (%p13) target = $region8
    $region5: #{tpu_custom_call.1} parent=1 // loop_body
      %s17 = ssub.s32 %s12, 1
      %s18 = ssub.s32 %s12, 2
      %s25 = sadd.s32 1, %s20
      %p26 = scmp.ge.s32.totalorder %s25, 1
      %s27 = scalar_select %p26, 0, %s25
      %s28 = sadd.s32 1, %s19
      %s29 = scalar_select %p26, %s28, %s19
      %p30 = scmp.ge.s32.totalorder %s29, 22
      %s31 = scalar_select %p30, 0, %s29
      %s32 = ssub.s32 %s19, %s31
      %p33 = scmp.eq.s32.totalorder %s32, 0
      %s35 = sadd.s32 %s34, 1
      %s36 = scalar_select %p33, %s34, %s35
      %p39 = pneg %p33
      %p40 = scmp.eq.s32.totalorder %s12, 21
      %p41 = por %p39, %p40
      %p42 = scmp.ne.s32.totalorder %s34, %s37
      %p43 = scmp.eq.s32.totalorder %s12, 0
      %p44 = por %p42, %p43
      %p45 = scmp.ne.s32.totalorder %s34, %s37
      %p46 = scmp.eq.s32.totalorder %s17, 21
      %p47 = por %p45, %p46
      %p48 = scmp.ne.s32.totalorder %s37, %s38
      %p49 = scmp.eq.s32.totalorder %s17, 0
      %p50 = por %p48, %p49
      %p51 = scmp.ne.s32.totalorder %s37, %s38
      %p52 = scmp.eq.s32.totalorder %s18, 21
      %p53 = por %p51, %p52
      %p55 = scmp.ne.s32.totalorder %s38, %s54
      %p56 = scmp.eq.s32.totalorder %s18, 0
      %p57 = por %p55, %p56
      %s58 = ssub.s32 %s20, %s27
      %p59 = scmp.eq.s32.totalorder %s58, 0
      %s61 = sadd.s32 %s60, 1
      %s62 = scalar_select %p59, %s60, %s61
      %p65 = pneg %p59
      %p66 = scmp.eq.s32.totalorder %s12, 21
      %p67 = por %p65, %p66
      %p68 = scmp.ne.s32.totalorder %s60, %s63
      %p69 = scmp.eq.s32.totalorder %s12, 0
      %p70 = por %p68, %p69
      %p71 = scmp.ne.s32.totalorder %s60, %s63
      %p72 = scmp.eq.s32.totalorder %s17, 21
      %p73 = por %p71, %p72
      %p74 = scmp.ne.s32.totalorder %s63, %s64
      %p75 = scmp.eq.s32.totalorder %s17, 0
      %p76 = por %p74, %p75
      %p77 = scmp.ne.s32.totalorder %s63, %s64
      %p78 = scmp.eq.s32.totalorder %s18, 21
      %p79 = por %p77, %p78
      %p81 = scmp.ne.s32.totalorder %s64, %s80
      %p82 = scmp.eq.s32.totalorder %s18, 0
      %p83 = por %p81, %p82
      %s84 = ssub.s32 %s20, %s27
      %p85 = scmp.eq.s32.totalorder %s84, 0
      %s87 = sadd.s32 %s86, 1
      %s88 = scalar_select %p85, %s86, %s87
      %p91 = pneg %p85
      %p92 = scmp.eq.s32.totalorder %s12, 21
      %p93 = por %p91, %p92
      %p94 = scmp.ne.s32.totalorder %s86, %s89
      %p95 = scmp.eq.s32.totalorder %s12, 0
      %p96 = por %p94, %p95
      %p97 = scmp.ne.s32.totalorder %s86, %s89
      %p98 = scmp.eq.s32.totalorder %s17, 21
      %p99 = por %p97, %p98
      %p100 = scmp.ne.s32.totalorder %s89, %s90
      %p101 = scmp.eq.s32.totalorder %s17, 0
      %p102 = por %p100, %p101
      %p103 = scmp.ne.s32.totalorder %s89, %s90
      %p104 = scmp.eq.s32.totalorder %s18, 21
      %p105 = por %p103, %p104
      %p107 = scmp.ne.s32.totalorder %s90, %s106
      %p108 = scmp.eq.s32.totalorder %s18, 0
      %p109 = por %p107, %p108
      %s110 = ssub.s32 %s19, %s31
      %s111 = ssub.s32 %s20, %s27
      %s112 = sor.u32 %s110, %s111
      %p113 = scmp.eq.s32.totalorder %s112, 0
      %s115 = sadd.s32 %s114, 1
      %s116 = scalar_select %p113, %s114, %s115
      %p119 = pneg %p113
      %p120 = scmp.eq.s32.totalorder %s12, 21
      %p121 = por %p119, %p120
      %p122 = scmp.ne.s32.totalorder %s114, %s117
      %p123 = scmp.eq.s32.totalorder %s12, 0
      %p124 = por %p122, %p123
      %p125 = scmp.ne.s32.totalorder %s114, %s117
      %p126 = scmp.eq.s32.totalorder %s17, 21
      %p127 = por %p125, %p126
      %p128 = scmp.ne.s32.totalorder %s117, %s118
      %p129 = scmp.eq.s32.totalorder %s17, 0
      %p130 = por %p128, %p129
      %p131 = scmp.ne.s32.totalorder %s117, %s118
      %p132 = scmp.eq.s32.totalorder %s18, 21
      %p133 = por %p131, %p132
      %p135 = scmp.ne.s32.totalorder %s118, %s134
      %p136 = scmp.eq.s32.totalorder %s18, 0
      %p137 = por %p135, %p136
      %p138 = scmp.le.s32.totalorder 1, %s12
      %p139 = scmp.lt.s32.totalorder %s12, 23
      %p140 = pnand %p138, %p139
      %p141 = pneg %p140
      // Predicated region
      $region9: #{tpu_custom_call.1} parent=5 // pred_check
        _
      $region10: #{tpu_custom_call.1} parent=5 // pred_check_branch
        %143 = sbr.rel (%p140) target = $region12
      $region11: #{tpu_custom_call.1} parent=5 // pred_region
        %s144 = ssub.s32 %s12, 1
        // Predicated region
        $region13: #{tpu_custom_call.1} parent=11 // pred_check
          %p145 = pneg %p76
        $region14: #{tpu_custom_call.1} parent=11 // pred_check_branch
          %147 = sbr.rel (%p145) target = $region16
        $region15: #{tpu_custom_call.1} parent=11 // pred_region
          %p148 = scmp.lt.s32.totalorder %s22, 0
          %s149 = scalar_select %p148, %s22, 0
          %s150 = smul.addr %s149, 4
          %s151 = scalar_lea.vmem %s1, %s150
        $region16: #{tpu_custom_call.1} parent=11 // pred_fallthru
          _
        // Predicated region
        $region17: #{tpu_custom_call.1} parent=11 // pred_check
          %p152 = pneg %p102
        $region18: #{tpu_custom_call.1} parent=11 // pred_check_branch
          %154 = sbr.rel (%p152) target = $region20
        $region19: #{tpu_custom_call.1} parent=11 // pred_region
          %p155 = scmp.lt.s32.totalorder %s22, 0
          %s156 = scalar_select %p155, %s22, 0
          %s157 = scalar_lea.vmem %s2, %s156
        $region20: #{tpu_custom_call.1} parent=11 // pred_fallthru
          _
      $region12: #{tpu_custom_call.1} parent=5 // pred_fallthru
        _
      %p158 = scmp.lt.s32.totalorder %s12, 22
      // Predicated region
      $region21: #{tpu_custom_call.1} parent=5 // pred_check
        %p159 = pneg %p158
      $region22: #{tpu_custom_call.1} parent=5 // pred_check_branch
        %161 = sbr.rel (%p159) target = $region24
      $region23: #{tpu_custom_call.1} parent=5 // pred_region
        // Predicated region
        $region25: #{tpu_custom_call.1} parent=23 // pred_check
          %p162 = pneg %p44
        $region26: #{tpu_custom_call.1} parent=23 // pred_check_branch
          %164 = sbr.rel (%p162) target = $region28
        $region27: #{tpu_custom_call.1} parent=23 // pred_region
          %s165 = sand.u32 %s34, 1
          %s166 = scalar_lea.sflag [#allocation3], %s165
          %s167 = sand.u32 %s34, 1
          %s168 = smul.addr %s167, 1024
          %s169 = scalar_lea.vmem [#allocation2], %s168
          %s170 = smul.u32 256, %s19
          %s171 = ssub.s32 5551, %s170
          %p172 = scmp.lt.s32.totalorder %s171, 256
          %s173 = scalar_select %p172, %s171, 256
          %s174 = smul.u32 64, %s173
          %s176 = ssub.s32 16384, %s174
          %177 = vsyncadd %s166, %s176
          %p178 = scmp.ne.s32.totalorder 0, %s174
          %s179 = smul.addr %s170, 64
          %s180 = scalar_lea.hbm %s0, %s179
          %s181 = smul.u32 4, %s173
          %s182 = sshll.u32 %s169, 4
          %s183 = int_to_ptr.vmem [resolvable:$true] %s182
          %s184 = sshll.u32 %s181, 4
          %188 = dma.hbm_to_vmem [thread:$0]  (%p178), %s180, %s184, %s183, %s166, 64, 64, 4
        $region28: #{tpu_custom_call.1} parent=23 // pred_fallthru
          _
      $region24: #{tpu_custom_call.1} parent=5 // pred_fallthru
        _
      %p189 = scmp.le.s32.totalorder 1, %s12
      %p190 = scmp.lt.s32.totalorder %s12, 23
      %p191 = pnand %p189, %p190
      %p192 = pneg %p191
      // Predicated region
      $region29: #{tpu_custom_call.1} parent=5 // pred_check
        _
      $region30: #{tpu_custom_call.1} parent=5 // pred_check_branch
        %194 = sbr.rel (%p191) target = $region32
      $region31: #{tpu_custom_call.1} parent=5 // pred_region
        %s195 = ssub.s32 %s12, 1
        %s196 = sand.u32 %s37, 1
        %s197 = scalar_lea.sflag [#allocation3], %s196
        %s198 = sand.u32 %s37, 1
        %s199 = smul.addr %s198, 1024
        %s200 = scalar_lea.vmem [#allocation2], %s199
        // Predicated region
        $region33: #{tpu_custom_call.1} parent=31 // pred_check
          %p201 = pneg %p50
        $region34: #{tpu_custom_call.1} parent=31 // pred_check_branch
          %203 = sbr.rel (%p201) target = $region36
        $region35: #{tpu_custom_call.1} parent=31 // pred_region
          %204 = dma.done %s197, 16384
        $region36: #{tpu_custom_call.1} parent=31 // pred_fallthru
          _
        %s205 = sand.u32 %s37, 1
        %s206 = scalar_lea.sflag [#allocation3], %s205
        %s207 = sand.u32 %s37, 1
        %s208 = smul.addr %s207, 1024
        %s209 = scalar_lea.vmem [#allocation2], %s208
        %p210 = pneg %p50
        %p211 = pneg %p47
        %p212 = scmp.lt.s32.totalorder %s22, 0
        %s213 = scalar_select %p212, %s22, 0
        %s214 = smul.addr %s213, 4
        %s215 = scalar_lea.vmem %s1, %s214
        %p216 = pneg %p76
        %p217 = pneg %p73
        %p218 = scmp.lt.s32.totalorder %s22, 0
        %s219 = scalar_select %p218, %s22, 0
        %s220 = scalar_lea.vmem %s2, %s219
        %p221 = pneg %p102
        %p222 = pneg %p99
        %p223 = pneg %p130
        %p224 = pneg %p127
        %s225 = sand.u32 %s117, 1
        %s226 = sand.u32 %s117, 1
        %s227 = smul.addr %s226, 1024
        %s228 = scalar_lea.vmem [#allocation4], %s227
        %s229 = smul.u32 256, %s21
        %s230 = ssub.s32 5551, %s229
        %p231 = scmp.lt.s32.totalorder %s230, 256
        %s232 = scalar_select %p231, %s230, 256
        %s233 = smul.u32 64, %s232
        %p234 = scmp.lt.s32.totalorder %s22, 0
        %s235 = scalar_select %p234, %s22, 0
        %s236 = smul.addr %s235, 4
        %s237 = scalar_lea.vmem %s1, %s236
        %p238 = scmp.lt.s32.totalorder %s22, 0
        %s239 = scalar_select %p238, %s22, 0
        %s240 = scalar_lea.vmem %s2, %s239
        %s241 = smul.u32 256, %s21
        %s242 = ssub.s32 5551, %s241
        %p243 = scmp.lt.s32.totalorder %s242, 256
        %s244 = scalar_select %p243, %s242, 256
        %s245 = smul.u32 64, %s244
        %v247 = vld [vmem:[%s200] sm:$0xf]
        %v248 = vld [vmem:[%s200 + $0x4] sm:$0xf]
        %v249 = vld [vmem:[%s200 + $0x8] sm:$0xf]
        %v250 = vld [vmem:[%s200 + $0xc] sm:$0xf]
        %v251 = vld [vmem:[%s200 + $0x10] sm:$0xf]
        %v252 = vld [vmem:[%s200 + $0x14] sm:$0xf]
        %v253 = vld [vmem:[%s200 + $0x18] sm:$0xf]
        %v254 = vld [vmem:[%s200 + $0x1c] sm:$0xf]
        %v255 = vld [vmem:[%s200 + $0x20] sm:$0xf]
        %v256 = vld [vmem:[%s200 + $0x24] sm:$0xf]
        %v257 = vld [vmem:[%s200 + $0x28] sm:$0xf]
        %v258 = vld [vmem:[%s200 + $0x2c] sm:$0xf]
        %v259 = vld [vmem:[%s200 + $0x30] sm:$0xf]
        %v260 = vld [vmem:[%s200 + $0x34] sm:$0xf]
        %v261 = vld [vmem:[%s200 + $0x38] sm:$0xf]
        %v262 = vld [vmem:[%s200 + $0x3c] sm:$0xf]
        %v263 = vld [vmem:[%s200 + $0x40] sm:$0xf]
        %v264 = vld [vmem:[%s200 + $0x44] sm:$0xf]
        %v265 = vld [vmem:[%s200 + $0x48] sm:$0xf]
        %v266 = vld [vmem:[%s200 + $0x4c] sm:$0xf]
        %v267 = vld [vmem:[%s200 + $0x50] sm:$0xf]
        %v268 = vld [vmem:[%s200 + $0x54] sm:$0xf]
        %v269 = vld [vmem:[%s200 + $0x58] sm:$0xf]
        %v270 = vld [vmem:[%s200 + $0x5c] sm:$0xf]
        %v271 = vld [vmem:[%s200 + $0x60] sm:$0xf]
        %v272 = vld [vmem:[%s200 + $0x64] sm:$0xf]
        %v273 = vld [vmem:[%s200 + $0x68] sm:$0xf]
        %v274 = vld [vmem:[%s200 + $0x6c] sm:$0xf]
        %v275 = vld [vmem:[%s200 + $0x70] sm:$0xf]
        %v276 = vld [vmem:[%s200 + $0x74] sm:$0xf]
        %v277 = vld [vmem:[%s200 + $0x78] sm:$0xf]
        %v278 = vld [vmem:[%s200 + $0x7c] sm:$0xf]
        %v279 = vld [vmem:[%s200 + $0x80] sm:$0xf]
        %v280 = vld [vmem:[%s200 + $0x84] sm:$0xf]
        %v281 = vld [vmem:[%s200 + $0x88] sm:$0xf]
        %v282 = vld [vmem:[%s200 + $0x8c] sm:$0xf]
        %v283 = vld [vmem:[%s200 + $0x90] sm:$0xf]
        %v284 = vld [vmem:[%s200 + $0x94] sm:$0xf]
        %v285 = vld [vmem:[%s200 + $0x98] sm:$0xf]
        %v286 = vld [vmem:[%s200 + $0x9c] sm:$0xf]
        %v287 = vld [vmem:[%s200 + $0xa0] sm:$0xf]
        %v288 = vld [vmem:[%s200 + $0xa4] sm:$0xf]
        %v289 = vld [vmem:[%s200 + $0xa8] sm:$0xf]
        %v290 = vld [vmem:[%s200 + $0xac] sm:$0xf]
        %v291 = vld [vmem:[%s200 + $0xb0] sm:$0xf]
        %v292 = vld [vmem:[%s200 + $0xb4] sm:$0xf]
        %v293 = vld [vmem:[%s200 + $0xb8] sm:$0xf]
        %v294 = vld [vmem:[%s200 + $0xbc] sm:$0xf]
        %v295 = vld [vmem:[%s200 + $0xc0] sm:$0xf]
        %v296 = vld [vmem:[%s200 + $0xc4] sm:$0xf]
        %v297 = vld [vmem:[%s200 + $0xc8] sm:$0xf]
        %v298 = vld [vmem:[%s200 + $0xcc] sm:$0xf]
        %v299 = vld [vmem:[%s200 + $0xd0] sm:$0xf]
        %v300 = vld [vmem:[%s200 + $0xd4] sm:$0xf]
        %v301 = vld [vmem:[%s200 + $0xd8] sm:$0xf]
        %v302 = vld [vmem:[%s200 + $0xdc] sm:$0xf]
        %v303 = vld [vmem:[%s200 + $0xe0] sm:$0xf]
        %v304 = vld [vmem:[%s200 + $0xe4] sm:$0xf]
        %v305 = vld [vmem:[%s200 + $0xe8] sm:$0xf]
        %v306 = vld [vmem:[%s200 + $0xec] sm:$0xf]
        %v307 = vld [vmem:[%s200 + $0xf0] sm:$0xf]
        %v308 = vld [vmem:[%s200 + $0xf4] sm:$0xf]
        %v309 = vld [vmem:[%s200 + $0xf8] sm:$0xf]
        %v310 = vld [vmem:[%s200 + $0xfc] sm:$0xf]
        %v311 = vld [vmem:[%s200 + $0x100] sm:$0xf]
        %v312 = vld [vmem:[%s200 + $0x104] sm:$0xf]
        %v313 = vld [vmem:[%s200 + $0x108] sm:$0xf]
        %v314 = vld [vmem:[%s200 + $0x10c] sm:$0xf]
        %v315 = vld [vmem:[%s200 + $0x110] sm:$0xf]
        %v316 = vld [vmem:[%s200 + $0x114] sm:$0xf]
        %v317 = vld [vmem:[%s200 + $0x118] sm:$0xf]
        %v318 = vld [vmem:[%s200 + $0x11c] sm:$0xf]
        %v319 = vld [vmem:[%s200 + $0x120] sm:$0xf]
        %v320 = vld [vmem:[%s200 + $0x124] sm:$0xf]
        %v321 = vld [vmem:[%s200 + $0x128] sm:$0xf]
        %v322 = vld [vmem:[%s200 + $0x12c] sm:$0xf]
        %v323 = vld [vmem:[%s200 + $0x130] sm:$0xf]
        %v324 = vld [vmem:[%s200 + $0x134] sm:$0xf]
        %v325 = vld [vmem:[%s200 + $0x138] sm:$0xf]
        %v326 = vld [vmem:[%s200 + $0x13c] sm:$0xf]
        %v327 = vld [vmem:[%s200 + $0x140] sm:$0xf]
        %v328 = vld [vmem:[%s200 + $0x144] sm:$0xf]
        %v329 = vld [vmem:[%s200 + $0x148] sm:$0xf]
        %v330 = vld [vmem:[%s200 + $0x14c] sm:$0xf]
        %v331 = vld [vmem:[%s200 + $0x150] sm:$0xf]
        %v332 = vld [vmem:[%s200 + $0x154] sm:$0xf]
        %v333 = vld [vmem:[%s200 + $0x158] sm:$0xf]
        %v334 = vld [vmem:[%s200 + $0x15c] sm:$0xf]
        %v335 = vld [vmem:[%s200 + $0x160] sm:$0xf]
        %v336 = vld [vmem:[%s200 + $0x164] sm:$0xf]
        %v337 = vld [vmem:[%s200 + $0x168] sm:$0xf]
        %v338 = vld [vmem:[%s200 + $0x16c] sm:$0xf]
        %v339 = vld [vmem:[%s200 + $0x170] sm:$0xf]
        %v340 = vld [vmem:[%s200 + $0x174] sm:$0xf]
        %v341 = vld [vmem:[%s200 + $0x178] sm:$0xf]
        %v342 = vld [vmem:[%s200 + $0x17c] sm:$0xf]
        %v343 = vld [vmem:[%s200 + $0x180] sm:$0xf]
        %v344 = vld [vmem:[%s200 + $0x184] sm:$0xf]
        %v345 = vld [vmem:[%s200 + $0x188] sm:$0xf]
        %v346 = vld [vmem:[%s200 + $0x18c] sm:$0xf]
        %v347 = vld [vmem:[%s200 + $0x190] sm:$0xf]
        %v348 = vld [vmem:[%s200 + $0x194] sm:$0xf]
        %v349 = vld [vmem:[%s200 + $0x198] sm:$0xf]
        %v350 = vld [vmem:[%s200 + $0x19c] sm:$0xf]
        %v351 = vld [vmem:[%s200 + $0x1a0] sm:$0xf]
        %v352 = vld [vmem:[%s200 + $0x1a4] sm:$0xf]
        %v353 = vld [vmem:[%s200 + $0x1a8] sm:$0xf]
        %v354 = vld [vmem:[%s200 + $0x1ac] sm:$0xf]
        %v355 = vld [vmem:[%s200 + $0x1b0] sm:$0xf]
        %v356 = vld [vmem:[%s200 + $0x1b4] sm:$0xf]
        %v357 = vld [vmem:[%s200 + $0x1b8] sm:$0xf]
        %v358 = vld [vmem:[%s200 + $0x1bc] sm:$0xf]
        %v359 = vld [vmem:[%s200 + $0x1c0] sm:$0xf]
        %v360 = vld [vmem:[%s200 + $0x1c4] sm:$0xf]
        %v361 = vld [vmem:[%s200 + $0x1c8] sm:$0xf]
        %v362 = vld [vmem:[%s200 + $0x1cc] sm:$0xf]
        %v363 = vld [vmem:[%s200 + $0x1d0] sm:$0xf]
        %v364 = vld [vmem:[%s200 + $0x1d4] sm:$0xf]
        %v365 = vld [vmem:[%s200 + $0x1d8] sm:$0xf]
        %v366 = vld [vmem:[%s200 + $0x1dc] sm:$0xf]
        %v367 = vld [vmem:[%s200 + $0x1e0] sm:$0xf]
        %v368 = vld [vmem:[%s200 + $0x1e4] sm:$0xf]
        %v369 = vld [vmem:[%s200 + $0x1e8] sm:$0xf]
        %v370 = vld [vmem:[%s200 + $0x1ec] sm:$0xf]
        %v371 = vld [vmem:[%s200 + $0x1f0] sm:$0xf]
        %v372 = vld [vmem:[%s200 + $0x1f4] sm:$0xf]
        %v373 = vld [vmem:[%s200 + $0x1f8] sm:$0xf]
        %v374 = vld [vmem:[%s200 + $0x1fc] sm:$0xf]
        %v375 = vld [vmem:[%s200 + $0x200] sm:$0xf]
        %v376 = vld [vmem:[%s200 + $0x204] sm:$0xf]
        %v377 = vld [vmem:[%s200 + $0x208] sm:$0xf]
        %v378 = vld [vmem:[%s200 + $0x20c] sm:$0xf]
        %v379 = vld [vmem:[%s200 + $0x210] sm:$0xf]
        %v380 = vld [vmem:[%s200 + $0x214] sm:$0xf]
        %v381 = vld [vmem:[%s200 + $0x218] sm:$0xf]
        %v382 = vld [vmem:[%s200 + $0x21c] sm:$0xf]
        %v383 = vld [vmem:[%s200 + $0x220] sm:$0xf]
        %v384 = vld [vmem:[%s200 + $0x224] sm:$0xf]
        %v385 = vld [vmem:[%s200 + $0x228] sm:$0xf]
        %v386 = vld [vmem:[%s200 + $0x22c] sm:$0xf]
        %v387 = vld [vmem:[%s200 + $0x230] sm:$0xf]
        %v388 = vld [vmem:[%s200 + $0x234] sm:$0xf]
        %v389 = vld [vmem:[%s200 + $0x238] sm:$0xf]
        %v390 = vld [vmem:[%s200 + $0x23c] sm:$0xf]
        %v391 = vld [vmem:[%s200 + $0x240] sm:$0xf]
        %v392 = vld [vmem:[%s200 + $0x244] sm:$0xf]
        %v393 = vld [vmem:[%s200 + $0x248] sm:$0xf]
        %v394 = vld [vmem:[%s200 + $0x24c] sm:$0xf]
        %v395 = vld [vmem:[%s200 + $0x250] sm:$0xf]
        %v396 = vld [vmem:[%s200 + $0x254] sm:$0xf]
        %v397 = vld [vmem:[%s200 + $0x258] sm:$0xf]
        %v398 = vld [vmem:[%s200 + $0x25c] sm:$0xf]
        %v399 = vld [vmem:[%s200 + $0x260] sm:$0xf]
        %v400 = vld [vmem:[%s200 + $0x264] sm:$0xf]
        %v401 = vld [vmem:[%s200 + $0x268] sm:$0xf]
        %v402 = vld [vmem:[%s200 + $0x26c] sm:$0xf]
        %v403 = vld [vmem:[%s200 + $0x270] sm:$0xf]
        %v404 = vld [vmem:[%s200 + $0x274] sm:$0xf]
        %v405 = vld [vmem:[%s200 + $0x278] sm:$0xf]
        %v406 = vld [vmem:[%s200 + $0x27c] sm:$0xf]
        %v407 = vld [vmem:[%s200 + $0x280] sm:$0xf]
        %v408 = vld [vmem:[%s200 + $0x284] sm:$0xf]
        %v409 = vld [vmem:[%s200 + $0x288] sm:$0xf]
        %v410 = vld [vmem:[%s200 + $0x28c] sm:$0xf]
        %v411 = vld [vmem:[%s200 + $0x290] sm:$0xf]
        %v412 = vld [vmem:[%s200 + $0x294] sm:$0xf]
        %v413 = vld [vmem:[%s200 + $0x298] sm:$0xf]
        %v414 = vld [vmem:[%s200 + $0x29c] sm:$0xf]
        %v415 = vld [vmem:[%s200 + $0x2a0] sm:$0xf]
        %v416 = vld [vmem:[%s200 + $0x2a4] sm:$0xf]
        %v417 = vld [vmem:[%s200 + $0x2a8] sm:$0xf]
        %v418 = vld [vmem:[%s200 + $0x2ac] sm:$0xf]
        %v419 = vld [vmem:[%s200 + $0x2b0] sm:$0xf]
        %v420 = vld [vmem:[%s200 + $0x2b4] sm:$0xf]
        %v421 = vld [vmem:[%s200 + $0x2b8] sm:$0xf]
        %v422 = vld [vmem:[%s200 + $0x2bc] sm:$0xf]
        %v423 = vld [vmem:[%s200 + $0x2c0] sm:$0xf]
        %v424 = vld [vmem:[%s200 + $0x2c4] sm:$0xf]
        %v425 = vld [vmem:[%s200 + $0x2c8] sm:$0xf]
        %v426 = vld [vmem:[%s200 + $0x2cc] sm:$0xf]
        %v427 = vld [vmem:[%s200 + $0x2d0] sm:$0xf]
        %v428 = vld [vmem:[%s200 + $0x2d4] sm:$0xf]
        %v429 = vld [vmem:[%s200 + $0x2d8] sm:$0xf]
        %v430 = vld [vmem:[%s200 + $0x2dc] sm:$0xf]
        %v431 = vld [vmem:[%s200 + $0x2e0] sm:$0xf]
        %v432 = vld [vmem:[%s200 + $0x2e4] sm:$0xf]
        %v433 = vld [vmem:[%s200 + $0x2e8] sm:$0xf]
        %v434 = vld [vmem:[%s200 + $0x2ec] sm:$0xf]
        %v435 = vld [vmem:[%s200 + $0x2f0] sm:$0xf]
        %v436 = vld [vmem:[%s200 + $0x2f4] sm:$0xf]
        %v437 = vld [vmem:[%s200 + $0x2f8] sm:$0xf]
        %v438 = vld [vmem:[%s200 + $0x2fc] sm:$0xf]
        %v439 = vld [vmem:[%s200 + $0x300] sm:$0xf]
        %v440 = vld [vmem:[%s200 + $0x304] sm:$0xf]
        %v441 = vld [vmem:[%s200 + $0x308] sm:$0xf]
        %v442 = vld [vmem:[%s200 + $0x30c] sm:$0xf]
        %v443 = vld [vmem:[%s200 + $0x310] sm:$0xf]
        %v444 = vld [vmem:[%s200 + $0x314] sm:$0xf]
        %v445 = vld [vmem:[%s200 + $0x318] sm:$0xf]
        %v446 = vld [vmem:[%s200 + $0x31c] sm:$0xf]
        %v447 = vld [vmem:[%s200 + $0x320] sm:$0xf]
        %v448 = vld [vmem:[%s200 + $0x324] sm:$0xf]
        %v449 = vld [vmem:[%s200 + $0x328] sm:$0xf]
        %v450 = vld [vmem:[%s200 + $0x32c] sm:$0xf]
        %v451 = vld [vmem:[%s200 + $0x330] sm:$0xf]
        %v452 = vld [vmem:[%s200 + $0x334] sm:$0xf]
        %v453 = vld [vmem:[%s200 + $0x338] sm:$0xf]
        %v454 = vld [vmem:[%s200 + $0x33c] sm:$0xf]
        %v455 = vld [vmem:[%s200 + $0x340] sm:$0xf]
        %v456 = vld [vmem:[%s200 + $0x344] sm:$0xf]
        %v457 = vld [vmem:[%s200 + $0x348] sm:$0xf]
        %v458 = vld [vmem:[%s200 + $0x34c] sm:$0xf]
        %v459 = vld [vmem:[%s200 + $0x350] sm:$0xf]
        %v460 = vld [vmem:[%s200 + $0x354] sm:$0xf]
        %v461 = vld [vmem:[%s200 + $0x358] sm:$0xf]
        %v462 = vld [vmem:[%s200 + $0x35c] sm:$0xf]
        %v463 = vld [vmem:[%s200 + $0x360] sm:$0xf]
        %v464 = vld [vmem:[%s200 + $0x364] sm:$0xf]
        %v465 = vld [vmem:[%s200 + $0x368] sm:$0xf]
        %v466 = vld [vmem:[%s200 + $0x36c] sm:$0xf]
        %v467 = vld [vmem:[%s200 + $0x370] sm:$0xf]
        %v468 = vld [vmem:[%s200 + $0x374] sm:$0xf]
        %v469 = vld [vmem:[%s200 + $0x378] sm:$0xf]
        %v470 = vld [vmem:[%s200 + $0x37c] sm:$0xf]
        %v471 = vld [vmem:[%s200 + $0x380] sm:$0xf]
        %v472 = vld [vmem:[%s200 + $0x384] sm:$0xf]
        %v473 = vld [vmem:[%s200 + $0x388] sm:$0xf]
        %v474 = vld [vmem:[%s200 + $0x38c] sm:$0xf]
        %v475 = vld [vmem:[%s200 + $0x390] sm:$0xf]
        %v476 = vld [vmem:[%s200 + $0x394] sm:$0xf]
        %v477 = vld [vmem:[%s200 + $0x398] sm:$0xf]
        %v478 = vld [vmem:[%s200 + $0x39c] sm:$0xf]
        %v479 = vld [vmem:[%s200 + $0x3a0] sm:$0xf]
        %v480 = vld [vmem:[%s200 + $0x3a4] sm:$0xf]
        %v481 = vld [vmem:[%s200 + $0x3a8] sm:$0xf]
        %v482 = vld [vmem:[%s200 + $0x3ac] sm:$0xf]
        %v483 = vld [vmem:[%s200 + $0x3b0] sm:$0xf]
        %v484 = vld [vmem:[%s200 + $0x3b4] sm:$0xf]
        %v485 = vld [vmem:[%s200 + $0x3b8] sm:$0xf]
        %v486 = vld [vmem:[%s200 + $0x3bc] sm:$0xf]
        %v487 = vld [vmem:[%s200 + $0x3c0] sm:$0xf]
        %v488 = vld [vmem:[%s200 + $0x3c4] sm:$0xf]
        %v489 = vld [vmem:[%s200 + $0x3c8] sm:$0xf]
        %v490 = vld [vmem:[%s200 + $0x3cc] sm:$0xf]
        %v491 = vld [vmem:[%s200 + $0x3d0] sm:$0xf]
        %v492 = vld [vmem:[%s200 + $0x3d4] sm:$0xf]
        %v493 = vld [vmem:[%s200 + $0x3d8] sm:$0xf]
        %v494 = vld [vmem:[%s200 + $0x3dc] sm:$0xf]
        %v495 = vld [vmem:[%s200 + $0x3e0] sm:$0xf]
        %v496 = vld [vmem:[%s200 + $0x3e4] sm:$0xf]
        %v497 = vld [vmem:[%s200 + $0x3e8] sm:$0xf]
        %v498 = vld [vmem:[%s200 + $0x3ec] sm:$0xf]
        %v499 = vld [vmem:[%s200 + $0x3f0] sm:$0xf]
        %v500 = vld [vmem:[%s200 + $0x3f4] sm:$0xf]
        %v501 = vld [vmem:[%s200 + $0x3f8] sm:$0xf]
        %v502 = vld [vmem:[%s200 + $0x3fc] sm:$0xf]
        %v503 = vld [vmem:[%s237] sm:$0xf]
        %v504 = vld [vmem:[%s237 + $0x4] sm:$0xf]
        %v505 = vld [vmem:[%s237 + $0x8] sm:$0xf]
        %v506 = vld [vmem:[%s237 + $0xc] sm:$0x3]
        %v507 = vld [vmem:[%s240] sm:$0x1]
        %v509 = vlaneseq
        %v510 = vshrl.u32 %v509, 7
        %v511 = vsub.s32 0, %v510
        %v512 = vrot.slane %v507, %v511
        %v770 = vunpack.c.l.b16 %v247
        %v771 = vunpack.c.l.b16 %v248
        %v772 = vunpack.c.l.b16 %v249
        %v773 = vunpack.c.l.b16 %v250
        %v774 = vunpack.c.l.b16 %v251
        %v775 = vunpack.c.l.b16 %v252
        %v776 = vunpack.c.l.b16 %v253
        %v777 = vunpack.c.l.b16 %v254
        %v778 = vunpack.c.l.b16 %v255
        %v779 = vunpack.c.l.b16 %v256
        %v780 = vunpack.c.l.b16 %v257
        %v781 = vunpack.c.l.b16 %v258
        %v782 = vunpack.c.l.b16 %v259
        %v783 = vunpack.c.l.b16 %v260
        %v784 = vunpack.c.l.b16 %v261
        %v785 = vunpack.c.l.b16 %v262
        %v786 = vunpack.c.l.b16 %v263
        %v787 = vunpack.c.l.b16 %v264
        %v788 = vunpack.c.l.b16 %v265
        %v789 = vunpack.c.l.b16 %v266
        %v790 = vunpack.c.l.b16 %v267
        %v791 = vunpack.c.l.b16 %v268
        %v792 = vunpack.c.l.b16 %v269
        %v793 = vunpack.c.l.b16 %v270
        %v794 = vunpack.c.l.b16 %v271
        %v795 = vunpack.c.l.b16 %v272
        %v796 = vunpack.c.l.b16 %v273
        %v797 = vunpack.c.l.b16 %v274
        %v798 = vunpack.c.l.b16 %v275
        %v799 = vunpack.c.l.b16 %v276
        %v800 = vunpack.c.l.b16 %v277
        %v801 = vunpack.c.l.b16 %v278
        %v802 = vunpack.c.l.b16 %v279
        %v803 = vunpack.c.l.b16 %v280
        %v804 = vunpack.c.l.b16 %v281
        %v805 = vunpack.c.l.b16 %v282
        %v806 = vunpack.c.l.b16 %v283
        %v807 = vunpack.c.l.b16 %v284
        %v808 = vunpack.c.l.b16 %v285
        %v809 = vunpack.c.l.b16 %v286
        %v810 = vunpack.c.l.b16 %v287
        %v811 = vunpack.c.l.b16 %v288
        %v812 = vunpack.c.l.b16 %v289
        %v813 = vunpack.c.l.b16 %v290
        %v814 = vunpack.c.l.b16 %v291
        %v815 = vunpack.c.l.b16 %v292
        %v816 = vunpack.c.l.b16 %v293
        %v817 = vunpack.c.l.b16 %v294
        %v818 = vunpack.c.l.b16 %v295
        %v819 = vunpack.c.l.b16 %v296
        %v820 = vunpack.c.l.b16 %v297
        %v821 = vunpack.c.l.b16 %v298
        %v822 = vunpack.c.l.b16 %v299
        %v823 = vunpack.c.l.b16 %v300
        %v824 = vunpack.c.l.b16 %v301
        %v825 = vunpack.c.l.b16 %v302
        %v826 = vunpack.c.l.b16 %v303
        %v827 = vunpack.c.l.b16 %v304
        %v828 = vunpack.c.l.b16 %v305
        %v829 = vunpack.c.l.b16 %v306
        %v830 = vunpack.c.l.b16 %v307
        %v831 = vunpack.c.l.b16 %v308
        %v832 = vunpack.c.l.b16 %v309
        %v833 = vunpack.c.l.b16 %v310
        %v834 = vunpack.c.l.b16 %v311
        %v835 = vunpack.c.l.b16 %v312
        %v836 = vunpack.c.l.b16 %v313
        %v837 = vunpack.c.l.b16 %v314
        %v838 = vunpack.c.l.b16 %v315
        %v839 = vunpack.c.l.b16 %v316
        %v840 = vunpack.c.l.b16 %v317
        %v841 = vunpack.c.l.b16 %v318
        %v842 = vunpack.c.l.b16 %v319
        %v843 = vunpack.c.l.b16 %v320
        %v844 = vunpack.c.l.b16 %v321
        %v845 = vunpack.c.l.b16 %v322
        %v846 = vunpack.c.l.b16 %v323
        %v847 = vunpack.c.l.b16 %v324
        %v848 = vunpack.c.l.b16 %v325
        %v849 = vunpack.c.l.b16 %v326
        %v850 = vunpack.c.l.b16 %v327
        %v851 = vunpack.c.l.b16 %v328
        %v852 = vunpack.c.l.b16 %v329
        %v853 = vunpack.c.l.b16 %v330
        %v854 = vunpack.c.l.b16 %v331
        %v855 = vunpack.c.l.b16 %v332
        %v856 = vunpack.c.l.b16 %v333
        %v857 = vunpack.c.l.b16 %v334
        %v858 = vunpack.c.l.b16 %v335
        %v859 = vunpack.c.l.b16 %v336
        %v860 = vunpack.c.l.b16 %v337
        %v861 = vunpack.c.l.b16 %v338
        %v862 = vunpack.c.l.b16 %v339
        %v863 = vunpack.c.l.b16 %v340
        %v864 = vunpack.c.l.b16 %v341
        %v865 = vunpack.c.l.b16 %v342
        %v866 = vunpack.c.l.b16 %v343
        %v867 = vunpack.c.l.b16 %v344
        %v868 = vunpack.c.l.b16 %v345
        %v869 = vunpack.c.l.b16 %v346
        %v870 = vunpack.c.l.b16 %v347
        %v871 = vunpack.c.l.b16 %v348
        %v872 = vunpack.c.l.b16 %v349
        %v873 = vunpack.c.l.b16 %v350
        %v874 = vunpack.c.l.b16 %v351
        %v875 = vunpack.c.l.b16 %v352
        %v876 = vunpack.c.l.b16 %v353
        %v877 = vunpack.c.l.b16 %v354
        %v878 = vunpack.c.l.b16 %v355
        %v879 = vunpack.c.l.b16 %v356
        %v880 = vunpack.c.l.b16 %v357
        %v881 = vunpack.c.l.b16 %v358
        %v882 = vunpack.c.l.b16 %v359
        %v883 = vunpack.c.l.b16 %v360
        %v884 = vunpack.c.l.b16 %v361
        %v885 = vunpack.c.l.b16 %v362
        %v886 = vunpack.c.l.b16 %v363
        %v887 = vunpack.c.l.b16 %v364
        %v888 = vunpack.c.l.b16 %v365
        %v889 = vunpack.c.l.b16 %v366
        %v890 = vunpack.c.l.b16 %v367
        %v891 = vunpack.c.l.b16 %v368
        %v892 = vunpack.c.l.b16 %v369
        %v893 = vunpack.c.l.b16 %v370
        %v894 = vunpack.c.l.b16 %v371
        %v895 = vunpack.c.l.b16 %v372
        %v896 = vunpack.c.l.b16 %v373
        %v897 = vunpack.c.l.b16 %v374
        %v898 = vunpack.c.l.b16 %v375
        %v899 = vunpack.c.l.b16 %v376
        %v900 = vunpack.c.l.b16 %v377
        %v901 = vunpack.c.l.b16 %v378
        %v902 = vunpack.c.l.b16 %v379
        %v903 = vunpack.c.l.b16 %v380
        %v904 = vunpack.c.l.b16 %v381
        %v905 = vunpack.c.l.b16 %v382
        %v906 = vunpack.c.l.b16 %v383
        %v907 = vunpack.c.l.b16 %v384
        %v908 = vunpack.c.l.b16 %v385
        %v909 = vunpack.c.l.b16 %v386
        %v910 = vunpack.c.l.b16 %v387
        %v911 = vunpack.c.l.b16 %v388
        %v912 = vunpack.c.l.b16 %v389
        %v913 = vunpack.c.l.b16 %v390
        %v914 = vunpack.c.l.b16 %v391
        %v915 = vunpack.c.l.b16 %v392
        %v916 = vunpack.c.l.b16 %v393
        %v917 = vunpack.c.l.b16 %v394
        %v918 = vunpack.c.l.b16 %v395
        %v919 = vunpack.c.l.b16 %v396
        %v920 = vunpack.c.l.b16 %v397
        %v921 = vunpack.c.l.b16 %v398
        %v922 = vunpack.c.l.b16 %v399
        %v923 = vunpack.c.l.b16 %v400
        %v924 = vunpack.c.l.b16 %v401
        %v925 = vunpack.c.l.b16 %v402
        %v926 = vunpack.c.l.b16 %v403
        %v927 = vunpack.c.l.b16 %v404
        %v928 = vunpack.c.l.b16 %v405
        %v929 = vunpack.c.l.b16 %v406
        %v930 = vunpack.c.l.b16 %v407
        %v931 = vunpack.c.l.b16 %v408
        %v932 = vunpack.c.l.b16 %v409
        %v933 = vunpack.c.l.b16 %v410
        %v934 = vunpack.c.l.b16 %v411
        %v935 = vunpack.c.l.b16 %v412
        %v936 = vunpack.c.l.b16 %v413
        %v937 = vunpack.c.l.b16 %v414
        %v938 = vunpack.c.l.b16 %v415
        %v939 = vunpack.c.l.b16 %v416
        %v940 = vunpack.c.l.b16 %v417
        %v941 = vunpack.c.l.b16 %v418
        %v942 = vunpack.c.l.b16 %v419
        %v943 = vunpack.c.l.b16 %v420
        %v944 = vunpack.c.l.b16 %v421
        %v945 = vunpack.c.l.b16 %v422
        %v946 = vunpack.c.l.b16 %v423
        %v947 = vunpack.c.l.b16 %v424
        %v948 = vunpack.c.l.b16 %v425
        %v949 = vunpack.c.l.b16 %v426
        %v950 = vunpack.c.l.b16 %v427
        %v951 = vunpack.c.l.b16 %v428
        %v952 = vunpack.c.l.b16 %v429
        %v953 = vunpack.c.l.b16 %v430
        %v954 = vunpack.c.l.b16 %v431
        %v955 = vunpack.c.l.b16 %v432
        %v956 = vunpack.c.l.b16 %v433
        %v957 = vunpack.c.l.b16 %v434
        %v958 = vunpack.c.l.b16 %v435
        %v959 = vunpack.c.l.b16 %v436
        %v960 = vunpack.c.l.b16 %v437
        %v961 = vunpack.c.l.b16 %v438
        %v962 = vunpack.c.l.b16 %v439
        %v963 = vunpack.c.l.b16 %v440
        %v964 = vunpack.c.l.b16 %v441
        %v965 = vunpack.c.l.b16 %v442
        %v966 = vunpack.c.l.b16 %v443
        %v967 = vunpack.c.l.b16 %v444
        %v968 = vunpack.c.l.b16 %v445
        %v969 = vunpack.c.l.b16 %v446
        %v970 = vunpack.c.l.b16 %v447
        %v971 = vunpack.c.l.b16 %v448
        %v972 = vunpack.c.l.b16 %v449
        %v973 = vunpack.c.l.b16 %v450
        %v974 = vunpack.c.l.b16 %v451
        %v975 = vunpack.c.l.b16 %v452
        %v976 = vunpack.c.l.b16 %v453
        %v977 = vunpack.c.l.b16 %v454
        %v978 = vunpack.c.l.b16 %v455
        %v979 = vunpack.c.l.b16 %v456
        %v980 = vunpack.c.l.b16 %v457
        %v981 = vunpack.c.l.b16 %v458
        %v982 = vunpack.c.l.b16 %v459
        %v983 = vunpack.c.l.b16 %v460
        %v984 = vunpack.c.l.b16 %v461
        %v985 = vunpack.c.l.b16 %v462
        %v986 = vunpack.c.l.b16 %v463
        %v987 = vunpack.c.l.b16 %v464
        %v988 = vunpack.c.l.b16 %v465
        %v989 = vunpack.c.l.b16 %v466
        %v990 = vunpack.c.l.b16 %v467
        %v991 = vunpack.c.l.b16 %v468
        %v992 = vunpack.c.l.b16 %v469
        %v993 = vunpack.c.l.b16 %v470
        %v994 = vunpack.c.l.b16 %v471
        %v995 = vunpack.c.l.b16 %v472
        %v996 = vunpack.c.l.b16 %v473
        %v997 = vunpack.c.l.b16 %v474
        %v998 = vunpack.c.l.b16 %v475
        %v999 = vunpack.c.l.b16 %v476
        %v1000 = vunpack.c.l.b16 %v477
        %v1001 = vunpack.c.l.b16 %v478
        %v1002 = vunpack.c.l.b16 %v479
        %v1003 = vunpack.c.l.b16 %v480
        %v1004 = vunpack.c.l.b16 %v481
        %v1005 = vunpack.c.l.b16 %v482
        %v1006 = vunpack.c.l.b16 %v483
        %v1007 = vunpack.c.l.b16 %v484
        %v1008 = vunpack.c.l.b16 %v485
        %v1009 = vunpack.c.l.b16 %v486
        %v1010 = vunpack.c.l.b16 %v487
        %v1011 = vunpack.c.l.b16 %v488
        %v1012 = vunpack.c.l.b16 %v489
        %v1013 = vunpack.c.l.b16 %v490
        %v1014 = vunpack.c.l.b16 %v491
        %v1015 = vunpack.c.l.b16 %v492
        %v1016 = vunpack.c.l.b16 %v493
        %v1017 = vunpack.c.l.b16 %v494
        %v1018 = vunpack.c.l.b16 %v495
        %v1019 = vunpack.c.l.b16 %v496
        %v1020 = vunpack.c.l.b16 %v497
        %v1021 = vunpack.c.l.b16 %v498
        %v1022 = vunpack.c.l.b16 %v499
        %v1023 = vunpack.c.l.b16 %v500
        %v1024 = vunpack.c.l.b16 %v501
        %v1025 = vunpack.c.l.b16 %v502
        %v1026 = vpack.c.b16 %v771, %v770
        %v1027 = vpack.c.b16 %v773, %v772
        %v1028 = vpack.c.b16 %v775, %v774
        %v1029 = vpack.c.b16 %v777, %v776
        %v1030 = vpack.c.b16 %v779, %v778
        %v1031 = vpack.c.b16 %v781, %v780
        %v1032 = vpack.c.b16 %v783, %v782
        %v1033 = vpack.c.b16 %v785, %v784
        %v1034 = vpack.c.b16 %v787, %v786
        %v1035 = vpack.c.b16 %v789, %v788
        %v1036 = vpack.c.b16 %v791, %v790
        %v1037 = vpack.c.b16 %v793, %v792
        %v1038 = vpack.c.b16 %v795, %v794
        %v1039 = vpack.c.b16 %v797, %v796
        %v1040 = vpack.c.b16 %v799, %v798
        %v1041 = vpack.c.b16 %v801, %v800
        %v1042 = vpack.c.b16 %v803, %v802
        %v1043 = vpack.c.b16 %v805, %v804
        %v1044 = vpack.c.b16 %v807, %v806
        %v1045 = vpack.c.b16 %v809, %v808
        %v1046 = vpack.c.b16 %v811, %v810
        %v1047 = vpack.c.b16 %v813, %v812
        %v1048 = vpack.c.b16 %v815, %v814
        %v1049 = vpack.c.b16 %v817, %v816
        %v1050 = vpack.c.b16 %v819, %v818
        %v1051 = vpack.c.b16 %v821, %v820
        %v1052 = vpack.c.b16 %v823, %v822
        %v1053 = vpack.c.b16 %v825, %v824
        %v1054 = vpack.c.b16 %v827, %v826
        %v1055 = vpack.c.b16 %v829, %v828
        %v1056 = vpack.c.b16 %v831, %v830
        %v1057 = vpack.c.b16 %v833, %v832
        %v1058 = vpack.c.b16 %v835, %v834
        %v1059 = vpack.c.b16 %v837, %v836
        %v1060 = vpack.c.b16 %v839, %v838
        %v1061 = vpack.c.b16 %v841, %v840
        %v1062 = vpack.c.b16 %v843, %v842
        %v1063 = vpack.c.b16 %v845, %v844
        %v1064 = vpack.c.b16 %v847, %v846
        %v1065 = vpack.c.b16 %v849, %v848
        %v1066 = vpack.c.b16 %v851, %v850
        %v1067 = vpack.c.b16 %v853, %v852
        %v1068 = vpack.c.b16 %v855, %v854
        %v1069 = vpack.c.b16 %v857, %v856
        %v1070 = vpack.c.b16 %v859, %v858
        %v1071 = vpack.c.b16 %v861, %v860
        %v1072 = vpack.c.b16 %v863, %v862
        %v1073 = vpack.c.b16 %v865, %v864
        %v1074 = vpack.c.b16 %v867, %v866
        %v1075 = vpack.c.b16 %v869, %v868
        %v1076 = vpack.c.b16 %v871, %v870
        %v1077 = vpack.c.b16 %v873, %v872
        %v1078 = vpack.c.b16 %v875, %v874
        %v1079 = vpack.c.b16 %v877, %v876
        %v1080 = vpack.c.b16 %v879, %v878
        %v1081 = vpack.c.b16 %v881, %v880
        %v1082 = vpack.c.b16 %v883, %v882
        %v1083 = vpack.c.b16 %v885, %v884
        %v1084 = vpack.c.b16 %v887, %v886
        %v1085 = vpack.c.b16 %v889, %v888
        %v1086 = vpack.c.b16 %v891, %v890
        %v1087 = vpack.c.b16 %v893, %v892
        %v1088 = vpack.c.b16 %v895, %v894
        %v1089 = vpack.c.b16 %v897, %v896
        %v1090 = vpack.c.b16 %v899, %v898
        %v1091 = vpack.c.b16 %v901, %v900
        %v1092 = vpack.c.b16 %v903, %v902
        %v1093 = vpack.c.b16 %v905, %v904
        %v1094 = vpack.c.b16 %v907, %v906
        %v1095 = vpack.c.b16 %v909, %v908
        %v1096 = vpack.c.b16 %v911, %v910
        %v1097 = vpack.c.b16 %v913, %v912
        %v1098 = vpack.c.b16 %v915, %v914
        %v1099 = vpack.c.b16 %v917, %v916
        %v1100 = vpack.c.b16 %v919, %v918
        %v1101 = vpack.c.b16 %v921, %v920
        %v1102 = vpack.c.b16 %v923, %v922
        %v1103 = vpack.c.b16 %v925, %v924
        %v1104 = vpack.c.b16 %v927, %v926
        %v1105 = vpack.c.b16 %v929, %v928
        %v1106 = vpack.c.b16 %v931, %v930
        %v1107 = vpack.c.b16 %v933, %v932
        %v1108 = vpack.c.b16 %v935, %v934
        %v1109 = vpack.c.b16 %v937, %v936
        %v1110 = vpack.c.b16 %v939, %v938
        %v1111 = vpack.c.b16 %v941, %v940
        %v1112 = vpack.c.b16 %v943, %v942
        %v1113 = vpack.c.b16 %v945, %v944
        %v1114 = vpack.c.b16 %v947, %v946
        %v1115 = vpack.c.b16 %v949, %v948
        %v1116 = vpack.c.b16 %v951, %v950
        %v1117 = vpack.c.b16 %v953, %v952
        %v1118 = vpack.c.b16 %v955, %v954
        %v1119 = vpack.c.b16 %v957, %v956
        %v1120 = vpack.c.b16 %v959, %v958
        %v1121 = vpack.c.b16 %v961, %v960
        %v1122 = vpack.c.b16 %v963, %v962
        %v1123 = vpack.c.b16 %v965, %v964
        %v1124 = vpack.c.b16 %v967, %v966
        %v1125 = vpack.c.b16 %v969, %v968
        %v1126 = vpack.c.b16 %v971, %v970
        %v1127 = vpack.c.b16 %v973, %v972
        %v1128 = vpack.c.b16 %v975, %v974
        %v1129 = vpack.c.b16 %v977, %v976
        %v1130 = vpack.c.b16 %v979, %v978
        %v1131 = vpack.c.b16 %v981, %v980
        %v1132 = vpack.c.b16 %v983, %v982
        %v1133 = vpack.c.b16 %v985, %v984
        %v1134 = vpack.c.b16 %v987, %v986
        %v1135 = vpack.c.b16 %v989, %v988
        %v1136 = vpack.c.b16 %v991, %v990
        %v1137 = vpack.c.b16 %v993, %v992
        %v1138 = vpack.c.b16 %v995, %v994
        %v1139 = vpack.c.b16 %v997, %v996
        %v1140 = vpack.c.b16 %v999, %v998
        %v1141 = vpack.c.b16 %v1001, %v1000
        %v1142 = vpack.c.b16 %v1003, %v1002
        %v1143 = vpack.c.b16 %v1005, %v1004
        %v1144 = vpack.c.b16 %v1007, %v1006
        %v1145 = vpack.c.b16 %v1009, %v1008
        %v1146 = vpack.c.b16 %v1011, %v1010
        %v1147 = vpack.c.b16 %v1013, %v1012
        %v1148 = vpack.c.b16 %v1015, %v1014
        %v1149 = vpack.c.b16 %v1017, %v1016
        %v1150 = vpack.c.b16 %v1019, %v1018
        %v1151 = vpack.c.b16 %v1021, %v1020
        %v1152 = vpack.c.b16 %v1023, %v1022
        %v1153 = vpack.c.b16 %v1025, %v1024
        %v1158 = vunpack.c.l.b16 %v503
        %v1159 = vunpack.c.l.b16 %v504
        %v1160 = vunpack.c.l.b16 %v505
        %v1161 = vunpack.c.l.b16 %v506
        %v1162 = vpack.c.b16 %v1159, %v1158
        %v1163 = vpack.c.b16 %v1161, %v1160
        %vm1165 = vcmask 220160
        %v1167 = vsel %vm1165, %v1026, 0
        %v1170 = vsel %vm1165, %v1027, 0
        %v1173 = vsel %vm1165, %v1028, 0
        %v1176 = vsel %vm1165, %v1029, 0
        %v1179 = vsel %vm1165, %v1030, 0
        %v1182 = vsel %vm1165, %v1031, 0
        %v1185 = vsel %vm1165, %v1032, 0
        %v1188 = vsel %vm1165, %v1033, 0
        %v1191 = vsel %vm1165, %v1034, 0
        %v1194 = vsel %vm1165, %v1035, 0
        %v1197 = vsel %vm1165, %v1036, 0
        %v1200 = vsel %vm1165, %v1037, 0
        %v1203 = vsel %vm1165, %v1038, 0
        %v1206 = vsel %vm1165, %v1039, 0
        %v1209 = vsel %vm1165, %v1040, 0
        %v1212 = vsel %vm1165, %v1041, 0
        %v1215 = vsel %vm1165, %v1042, 0
        %v1218 = vsel %vm1165, %v1043, 0
        %v1221 = vsel %vm1165, %v1044, 0
        %v1224 = vsel %vm1165, %v1045, 0
        %v1227 = vsel %vm1165, %v1046, 0
        %v1230 = vsel %vm1165, %v1047, 0
        %v1233 = vsel %vm1165, %v1048, 0
        %v1236 = vsel %vm1165, %v1049, 0
        %v1239 = vsel %vm1165, %v1050, 0
        %v1242 = vsel %vm1165, %v1051, 0
        %v1245 = vsel %vm1165, %v1052, 0
        %v1248 = vsel %vm1165, %v1053, 0
        %v1251 = vsel %vm1165, %v1054, 0
        %v1254 = vsel %vm1165, %v1055, 0
        %v1257 = vsel %vm1165, %v1056, 0
        %v1260 = vsel %vm1165, %v1057, 0
        %v1263 = vsel %vm1165, %v1058, 0
        %v1266 = vsel %vm1165, %v1059, 0
        %v1269 = vsel %vm1165, %v1060, 0
        %v1272 = vsel %vm1165, %v1061, 0
        %v1275 = vsel %vm1165, %v1062, 0
        %v1278 = vsel %vm1165, %v1063, 0
        %v1281 = vsel %vm1165, %v1064, 0
        %v1284 = vsel %vm1165, %v1065, 0
        %v1287 = vsel %vm1165, %v1066, 0
        %v1290 = vsel %vm1165, %v1067, 0
        %v1293 = vsel %vm1165, %v1068, 0
        %v1296 = vsel %vm1165, %v1069, 0
        %v1299 = vsel %vm1165, %v1070, 0
        %v1302 = vsel %vm1165, %v1071, 0
        %v1305 = vsel %vm1165, %v1072, 0
        %v1308 = vsel %vm1165, %v1073, 0
        %v1311 = vsel %vm1165, %v1074, 0
        %v1314 = vsel %vm1165, %v1075, 0
        %v1317 = vsel %vm1165, %v1076, 0
        %v1320 = vsel %vm1165, %v1077, 0
        %v1323 = vsel %vm1165, %v1078, 0
        %v1326 = vsel %vm1165, %v1079, 0
        %v1329 = vsel %vm1165, %v1080, 0
        %v1332 = vsel %vm1165, %v1081, 0
        %v1335 = vsel %vm1165, %v1082, 0
        %v1338 = vsel %vm1165, %v1083, 0
        %v1341 = vsel %vm1165, %v1084, 0
        %v1344 = vsel %vm1165, %v1085, 0
        %v1347 = vsel %vm1165, %v1086, 0
        %v1350 = vsel %vm1165, %v1087, 0
        %v1353 = vsel %vm1165, %v1088, 0
        %v1356 = vsel %vm1165, %v1089, 0
        %v1359 = vsel %vm1165, %v1090, 0
        %v1362 = vsel %vm1165, %v1091, 0
        %v1365 = vsel %vm1165, %v1092, 0
        %v1368 = vsel %vm1165, %v1093, 0
        %v1371 = vsel %vm1165, %v1094, 0
        %v1374 = vsel %vm1165, %v1095, 0
        %v1377 = vsel %vm1165, %v1096, 0
        %v1380 = vsel %vm1165, %v1097, 0
        %v1383 = vsel %vm1165, %v1098, 0
        %v1386 = vsel %vm1165, %v1099, 0
        %v1389 = vsel %vm1165, %v1100, 0
        %v1392 = vsel %vm1165, %v1101, 0
        %v1395 = vsel %vm1165, %v1102, 0
        %v1398 = vsel %vm1165, %v1103, 0
        %v1401 = vsel %vm1165, %v1104, 0
        %v1404 = vsel %vm1165, %v1105, 0
        %v1407 = vsel %vm1165, %v1106, 0
        %v1410 = vsel %vm1165, %v1107, 0
        %v1413 = vsel %vm1165, %v1108, 0
        %v1416 = vsel %vm1165, %v1109, 0
        %v1419 = vsel %vm1165, %v1110, 0
        %v1422 = vsel %vm1165, %v1111, 0
        %v1425 = vsel %vm1165, %v1112, 0
        %v1428 = vsel %vm1165, %v1113, 0
        %v1431 = vsel %vm1165, %v1114, 0
        %v1434 = vsel %vm1165, %v1115, 0
        %v1437 = vsel %vm1165, %v1116, 0
        %v1440 = vsel %vm1165, %v1117, 0
        %v1443 = vsel %vm1165, %v1118, 0
        %v1446 = vsel %vm1165, %v1119, 0
        %v1449 = vsel %vm1165, %v1120, 0
        %v1452 = vsel %vm1165, %v1121, 0
        %v1455 = vsel %vm1165, %v1122, 0
        %v1458 = vsel %vm1165, %v1123, 0
        %v1461 = vsel %vm1165, %v1124, 0
        %v1464 = vsel %vm1165, %v1125, 0
        %v1467 = vsel %vm1165, %v1126, 0
        %v1470 = vsel %vm1165, %v1127, 0
        %v1473 = vsel %vm1165, %v1128, 0
        %v1476 = vsel %vm1165, %v1129, 0
        %v1479 = vsel %vm1165, %v1130, 0
        %v1482 = vsel %vm1165, %v1131, 0
        %v1485 = vsel %vm1165, %v1132, 0
        %v1488 = vsel %vm1165, %v1133, 0
        %v1491 = vsel %vm1165, %v1134, 0
        %v1494 = vsel %vm1165, %v1135, 0
        %v1497 = vsel %vm1165, %v1136, 0
        %v1500 = vsel %vm1165, %v1137, 0
        %v1503 = vsel %vm1165, %v1138, 0
        %v1506 = vsel %vm1165, %v1139, 0
        %v1509 = vsel %vm1165, %v1140, 0
        %v1512 = vsel %vm1165, %v1141, 0
        %v1515 = vsel %vm1165, %v1142, 0
        %v1518 = vsel %vm1165, %v1143, 0
        %v1521 = vsel %vm1165, %v1144, 0
        %v1524 = vsel %vm1165, %v1145, 0
        %v1527 = vsel %vm1165, %v1146, 0
        %v1530 = vsel %vm1165, %v1147, 0
        %v1533 = vsel %vm1165, %v1148, 0
        %v1536 = vsel %vm1165, %v1149, 0
        %v1539 = vsel %vm1165, %v1150, 0
        %v1542 = vsel %vm1165, %v1151, 0
        %v1545 = vsel %vm1165, %v1152, 0
        %v1548 = vsel %vm1165, %v1153, 0
        %vm1550 = vcmask 1044480
        %vm1551 = vcmask 1045504
        %v1552 = vsel %vm1550, 4294967295, 65535
        %v1553 = vsel %vm1551, %v1552, 0
        %v1555 = vand.u32 %v1163, %v1553
        %1557 = vmatprep.subr.bf16.mxu0 0
        %1558 = vmatpush1.bf16.msra.mxu0 %v1162
        %1559 = vmatprep.subr.bf16.mxu0 0
        %1560 = vmatpush1.bf16.msra.mxu0 %v1555
        %1561 = vmatprep.subr.bf16.mxu0 0
        %1562 = vmatpush1.bf16.msra.mxu0 0
        %1563 = vmatprep.subr.bf16.mxu0 0
        %1564 = vmatpush1.bf16.msra.mxu0 0
        %1565 = vmatprep.subr.bf16.mxu0 0
        %1566 = vmatpush1.bf16.msra.mxu0 0
        %1567 = vmatprep.subr.bf16.mxu0 0
        %1568 = vmatpush1.bf16.msra.mxu0 0
        %1569 = vmatprep.subr.bf16.mxu0 0
        %1570 = vmatpush1.bf16.msra.mxu0 0
        %1571 = vmatprep.subr.bf16.mxu0 0
        %1572 = vmatpush1.bf16.msra.mxu0 0
        %1573 = vmatprep.subr.bf16.mxu0 0
        %1574 = vmatpush1.bf16.msra.mxu0 0
        %1575 = vmatprep.subr.bf16.mxu0 0
        %1576 = vmatpush1.bf16.msra.mxu0 0
        %1577 = vmatprep.subr.bf16.mxu0 0
        %1578 = vmatpush1.bf16.msra.mxu0 0
        %1579 = vmatprep.subr.bf16.mxu0 0
        %1580 = vmatpush1.bf16.msra.mxu0 0
        %1581 = vmatprep.subr.bf16.mxu0 0
        %1582 = vmatpush1.bf16.msra.mxu0 0
        %1583 = vmatprep.subr.bf16.mxu0 0
        %1584 = vmatpush1.bf16.msra.mxu0 0
        %1585 = vmatprep.subr.bf16.mxu0 0
        %1586 = vmatpush1.bf16.msra.mxu0 0
        %1587 = vmatprep.subr.bf16.mxu0 0
        %1588 = vmatpush1.bf16.msra.mxu0 0
        %1589 = vmatprep.mubr.bf16.mxu0 0
        %1590 = vmatmul.mubr.bf16.gmra.mrb[0].mxu0 %v1167
        %v1591 = vpop.f32.mrb[0].mxu0
        %v1592 = vadd.f32 %v512, %v1591
        %v1593 = vpop.f32.mrb[0].mxu0
        %v1594 = vpop.f32.mrb[0].mxu0
        %v1595 = vadd.f32 %v512, %v1594
        %v1596 = vpop.f32.mrb[0].mxu0
        %1597 = vmatprep.mubr.bf16.mxu0 0
        %1598 = vmatmul.mubr.bf16.gmra.mrb[0].mxu0 %v1170
        %v1599 = vpop.f32.mrb[0].mxu0
        %v1600 = vadd.f32 %v512, %v1599
        %v1601 = vpop.f32.mrb[0].mxu0
        %v1602 = vpop.f32.mrb[0].mxu0
        %v1603 = vadd.f32 %v512, %v1602
        %v1604 = vpop.f32.mrb[0].mxu0
        %1605 = vmatprep.mubr.bf16.mxu0 0
        %1606 = vmatmul.mubr.bf16.gmra.mrb[0].mxu0 %v1173
        %v1607 = vpop.f32.mrb[0].mxu0
        %v1608 = vadd.f32 %v512, %v1607
        %v1609 = vpop.f32.mrb[0].mxu0
        %v1610 = vpop.f32.mrb[0].mxu0
        %v1611 = vadd.f32 %v512, %v1610
        %v1612 = vpop.f32.mrb[0].mxu0
        %1613 = vmatprep.mubr.bf16.mxu0 0
        %1614 = vmatmul.mubr.bf16.gmra.mrb[0].mxu0 %v1176
        %v1615 = vpop.f32.mrb[0].mxu0
        %v1616 = vadd.f32 %v512, %v1615
        %v1617 = vpop.f32.mrb[0].mxu0
        %v1618 = vpop.f32.mrb[0].mxu0
        %v1619 = vadd.f32 %v512, %v1618
        %v1620 = vpop.f32.mrb[0].mxu0
        %1621 = vmatprep.mubr.bf16.mxu0 0
        %1622 = vmatmul.mubr.bf16.gmra.mrb[0].mxu0 %v1179
        %v1623 = vpop.f32.mrb[0].mxu0
        %v1624 = vadd.f32 %v512, %v1623
        %v1625 = vpop.f32.mrb[0].mxu0
        %v1626 = vpop.f32.mrb[0].mxu0
        %v1627 = vadd.f32 %v512, %v1626
        %v1628 = vpop.f32.mrb[0].mxu0
        %1629 = vmatprep.mubr.bf16.mxu0 0
        %1630 = vmatmul.mubr.bf16.gmra.mrb[0].mxu0 %v1182
        %v1631 = vpop.f32.mrb[0].mxu0
        %v1632 = vadd.f32 %v512, %v1631
        %v1633 = vpop.f32.mrb[0].mxu0
        %v1634 = vpop.f32.mrb[0].mxu0
        %v1635 = vadd.f32 %v512, %v1634
        %v1636 = vpop.f32.mrb[0].mxu0
        %1637 = vmatprep.mubr.bf16.mxu0 0
        %1638 = vmatmul.mubr.bf16.gmra.mrb[0].mxu0 %v1185
        %v1639 = vpop.f32.mrb[0].mxu0
        %v1640 = vadd.f32 %v512, %v1639
        %v1641 = vpop.f32.mrb[0].mxu0
        %v1642 = vpop.f32.mrb[0].mxu0
        %v1643 = vadd.f32 %v512, %v1642
        %v1644 = vpop.f32.mrb[0].mxu0
        %1645 = vmatprep.mubr.bf16.mxu0 0
        %1646 = vmatmul.mubr.bf16.gmra.mrb[0].mxu0 %v1188
        %v1647 = vpop.f32.mrb[0].mxu0
        %v1648 = vadd.f32 %v512, %v1647
        %v1649 = vpop.f32.mrb[0].mxu0
        %v1650 = vpop.f32.mrb[0].mxu0
        %v1651 = vadd.f32 %v512, %v1650
        %v1652 = vpop.f32.mrb[0].mxu0
        %1653 = vmatprep.mubr.bf16.mxu0 0
        %1654 = vmatmul.mubr.bf16.gmra.mrb[0].mxu0 %v1191
        %v1655 = vpop.f32.mrb[0].mxu0
        %v1656 = vadd.f32 %v512, %v1655
        %v1657 = vpop.f32.mrb[0].mxu0
        %v1658 = vpop.f32.mrb[0].mxu0
        %v1659 = vadd.f32 %v512, %v1658
        %v1660 = vpop.f32.mrb[0].mxu0
        %1661 = vmatprep.mubr.bf16.mxu0 0
        %1662 = vmatmul.mubr.bf16.gmra.mrb[0].mxu0 %v1194
        %v1663 = vpop.f32.mrb[0].mxu0
        %v1664 = vadd.f32 %v512, %v1663
        %v1665 = vpop.f32.mrb[0].mxu0
        %v1666 = vpop.f32.mrb[0].mxu0
        %v1667 = vadd.f32 %v512, %v1666
        %v1668 = vpop.f32.mrb[0].mxu0
        %1669 = vmatprep.mubr.bf16.mxu0 0
        %1670 = vmatmul.mubr.bf16.gmra.mrb[0].mxu0 %v1197
        %v1671 = vpop.f32.mrb[0].mxu0
        %v1672 = vadd.f32 %v512, %v1671
        %v1673 = vpop.f32.mrb[0].mxu0
        %v1674 = vpop.f32.mrb[0].mxu0
        %v1675 = vadd.f32 %v512, %v1674
        %v1676 = vpop.f32.mrb[0].mxu0
        %1677 = vmatprep.mubr.bf16.mxu0 0
        %1678 = vmatmul.mubr.bf16.gmra.mrb[0].mxu0 %v1200
        %v1679 = vpop.f32.mrb[0].mxu0
        %v1680 = vadd.f32 %v512, %v1679
        %v1681 = vpop.f32.mrb[0].mxu0
        %v1682 = vpop.f32.mrb[0].mxu0
        %v1683 = vadd.f32 %v512, %v1682
        %v1684 = vpop.f32.mrb[0].mxu0
        %1685 = vmatprep.mubr.bf16.mxu0 0
        %1686 = vmatmul.mubr.bf16.gmra.mrb[0].mxu0 %v1203
        %v1687 = vpop.f32.mrb[0].mxu0
        %v1688 = vadd.f32 %v512, %v1687
        %v1689 = vpop.f32.mrb[0].mxu0
        %v1690 = vpop.f32.mrb[0].mxu0
        %v1691 = vadd.f32 %v512, %v1690
        %v1692 = vpop.f32.mrb[0].mxu0
        %1693 = vmatprep.mubr.bf16.mxu0 0
        %1694 = vmatmul.mubr.bf16.gmra.mrb[0].mxu0 %v1206
        %v1695 = vpop.f32.mrb[0].mxu0
        %v1696 = vadd.f32 %v512, %v1695
        %v1697 = vpop.f32.mrb[0].mxu0
        %v1698 = vpop.f32.mrb[0].mxu0
        %v1699 = vadd.f32 %v512, %v1698
        %v1700 = vpop.f32.mrb[0].mxu0
        %1701 = vmatprep.mubr.bf16.mxu0 0
        %1702 = vmatmul.mubr.bf16.gmra.mrb[0].mxu0 %v1209
        %v1703 = vpop.f32.mrb[0].mxu0
        %v1704 = vadd.f32 %v512, %v1703
        %v1705 = vpop.f32.mrb[0].mxu0
        %v1706 = vpop.f32.mrb[0].mxu0
        %v1707 = vadd.f32 %v512, %v1706
        %v1708 = vpop.f32.mrb[0].mxu0
        %1709 = vmatprep.mubr.bf16.mxu0 0
        %1710 = vmatmul.mubr.bf16.gmra.mrb[0].mxu0 %v1212
        %v1711 = vpop.f32.mrb[0].mxu0
        %v1712 = vadd.f32 %v512, %v1711
        %v1713 = vpop.f32.mrb[0].mxu0
        %v1714 = vpop.f32.mrb[0].mxu0
        %v1715 = vadd.f32 %v512, %v1714
        %v1716 = vpop.f32.mrb[0].mxu0
        %1717 = vmatprep.mubr.bf16.mxu0 0
        %1718 = vmatmul.mubr.bf16.gmra.mrb[0].mxu0 %v1215
        %v1719 = vpop.f32.mrb[0].mxu0
        %v1720 = vadd.f32 %v512, %v1719
        %v1721 = vpop.f32.mrb[0].mxu0
        %v1722 = vpop.f32.mrb[0].mxu0
        %v1723 = vadd.f32 %v512, %v1722
        %v1724 = vpop.f32.mrb[0].mxu0
        %1725 = vmatprep.mubr.bf16.mxu0 0
        %1726 = vmatmul.mubr.bf16.gmra.mrb[0].mxu0 %v1218
        %v1727 = vpop.f32.mrb[0].mxu0
        %v1728 = vadd.f32 %v512, %v1727
        %v1729 = vpop.f32.mrb[0].mxu0
        %v1730 = vpop.f32.mrb[0].mxu0
        %v1731 = vadd.f32 %v512, %v1730
        %v1732 = vpop.f32.mrb[0].mxu0
        %1733 = vmatprep.mubr.bf16.mxu0 0
        %1734 = vmatmul.mubr.bf16.gmra.mrb[0].mxu0 %v1221
        %v1735 = vpop.f32.mrb[0].mxu0
        %v1736 = vadd.f32 %v512, %v1735
        %v1737 = vpop.f32.mrb[0].mxu0
        %v1738 = vpop.f32.mrb[0].mxu0
        %v1739 = vadd.f32 %v512, %v1738
        %v1740 = vpop.f32.mrb[0].mxu0
        %1741 = vmatprep.mubr.bf16.mxu0 0
        %1742 = vmatmul.mubr.bf16.gmra.mrb[0].mxu0 %v1224
        %v1743 = vpop.f32.mrb[0].mxu0
        %v1744 = vadd.f32 %v512, %v1743
        %v1745 = vpop.f32.mrb[0].mxu0
        %v1746 = vpop.f32.mrb[0].mxu0
        %v1747 = vadd.f32 %v512, %v1746
        %v1748 = vpop.f32.mrb[0].mxu0
        %1749 = vmatprep.mubr.bf16.mxu0 0
        %1750 = vmatmul.mubr.bf16.gmra.mrb[0].mxu0 %v1227
        %v1751 = vpop.f32.mrb[0].mxu0
        %v1752 = vadd.f32 %v512, %v1751
        %v1753 = vpop.f32.mrb[0].mxu0
        %v1754 = vpop.f32.mrb[0].mxu0
        %v1755 = vadd.f32 %v512, %v1754
        %v1756 = vpop.f32.mrb[0].mxu0
        %1757 = vmatprep.mubr.bf16.mxu0 0
        %1758 = vmatmul.mubr.bf16.gmra.mrb[0].mxu0 %v1230
        %v1759 = vpop.f32.mrb[0].mxu0
        %v1760 = vadd.f32 %v512, %v1759
        %v1761 = vpop.f32.mrb[0].mxu0
        %v1762 = vpop.f32.mrb[0].mxu0
        %v1763 = vadd.f32 %v512, %v1762
        %v1764 = vpop.f32.mrb[0].mxu0
        %1765 = vmatprep.mubr.bf16.mxu0 0
        %1766 = vmatmul.mubr.bf16.gmra.mrb[0].mxu0 %v1233
        %v1767 = vpop.f32.mrb[0].mxu0
        %v1768 = vadd.f32 %v512, %v1767
        %v1769 = vpop.f32.mrb[0].mxu0
        %v1770 = vpop.f32.mrb[0].mxu0
        %v1771 = vadd.f32 %v512, %v1770
        %v1772 = vpop.f32.mrb[0].mxu0
        %1773 = vmatprep.mubr.bf16.mxu0 0
        %1774 = vmatmul.mubr.bf16.gmra.mrb[0].mxu0 %v1236
        %v1775 = vpop.f32.mrb[0].mxu0
        %v1776 = vadd.f32 %v512, %v1775
        %v1777 = vpop.f32.mrb[0].mxu0
        %v1778 = vpop.f32.mrb[0].mxu0
        %v1779 = vadd.f32 %v512, %v1778
        %v1780 = vpop.f32.mrb[0].mxu0
        %1781 = vmatprep.mubr.bf16.mxu0 0
        %1782 = vmatmul.mubr.bf16.gmra.mrb[0].mxu0 %v1239
        %v1783 = vpop.f32.mrb[0].mxu0
        %v1784 = vadd.f32 %v512, %v1783
        %v1785 = vpop.f32.mrb[0].mxu0
        %v1786 = vpop.f32.mrb[0].mxu0
        %v1787 = vadd.f32 %v512, %v1786
        %v1788 = vpop.f32.mrb[0].mxu0
        %1789 = vmatprep.mubr.bf16.mxu0 0
        %1790 = vmatmul.mubr.bf16.gmra.mrb[0].mxu0 %v1242
        %v1791 = vpop.f32.mrb[0].mxu0
        %v1792 = vadd.f32 %v512, %v1791
        %v1793 = vpop.f32.mrb[0].mxu0
        %v1794 = vpop.f32.mrb[0].mxu0
        %v1795 = vadd.f32 %v512, %v1794
        %v1796 = vpop.f32.mrb[0].mxu0
        %1797 = vmatprep.mubr.bf16.mxu0 0
        %1798 = vmatmul.mubr.bf16.gmra.mrb[0].mxu0 %v1245
        %v1799 = vpop.f32.mrb[0].mxu0
        %v1800 = vadd.f32 %v512, %v1799
        %v1801 = vpop.f32.mrb[0].mxu0
        %v1802 = vpop.f32.mrb[0].mxu0
        %v1803 = vadd.f32 %v512, %v1802
        %v1804 = vpop.f32.mrb[0].mxu0
        %1805 = vmatprep.mubr.bf16.mxu0 0
        %1806 = vmatmul.mubr.bf16.gmra.mrb[0].mxu0 %v1248
        %v1807 = vpop.f32.mrb[0].mxu0
        %v1808 = vadd.f32 %v512, %v1807
        %v1809 = vpop.f32.mrb[0].mxu0
        %v1810 = vpop.f32.mrb[0].mxu0
        %v1811 = vadd.f32 %v512, %v1810
        %v1812 = vpop.f32.mrb[0].mxu0
        %1813 = vmatprep.mubr.bf16.mxu0 0
        %1814 = vmatmul.mubr.bf16.gmra.mrb[0].mxu0 %v1251
        %v1815 = vpop.f32.mrb[0].mxu0
        %v1816 = vadd.f32 %v512, %v1815
        %v1817 = vpop.f32.mrb[0].mxu0
        %v1818 = vpop.f32.mrb[0].mxu0
        %v1819 = vadd.f32 %v512, %v1818
        %v1820 = vpop.f32.mrb[0].mxu0
        %1821 = vmatprep.mubr.bf16.mxu0 0
        %1822 = vmatmul.mubr.bf16.gmra.mrb[0].mxu0 %v1254
        %v1823 = vpop.f32.mrb[0].mxu0
        %v1824 = vadd.f32 %v512, %v1823
        %v1825 = vpop.f32.mrb[0].mxu0
        %v1826 = vpop.f32.mrb[0].mxu0
        %v1827 = vadd.f32 %v512, %v1826
        %v1828 = vpop.f32.mrb[0].mxu0
        %1829 = vmatprep.mubr.bf16.mxu0 0
        %1830 = vmatmul.mubr.bf16.gmra.mrb[0].mxu0 %v1257
        %v1831 = vpop.f32.mrb[0].mxu0
        %v1832 = vadd.f32 %v512, %v1831
        %v1833 = vpop.f32.mrb[0].mxu0
        %v1834 = vpop.f32.mrb[0].mxu0
        %v1835 = vadd.f32 %v512, %v1834
        %v1836 = vpop.f32.mrb[0].mxu0
        %1837 = vmatprep.mubr.bf16.mxu0 0
        %1838 = vmatmul.mubr.bf16.gmra.mrb[0].mxu0 %v1260
        %v1839 = vpop.f32.mrb[0].mxu0
        %v1840 = vadd.f32 %v512, %v1839
        %v1841 = vpop.f32.mrb[0].mxu0
        %v1842 = vpop.f32.mrb[0].mxu0
        %v1843 = vadd.f32 %v512, %v1842
        %v1844 = vpop.f32.mrb[0].mxu0
        %1845 = vmatprep.mubr.bf16.mxu0 0
        %1846 = vmatmul.mubr.bf16.gmra.mrb[0].mxu0 %v1263
        %v1847 = vpop.f32.mrb[0].mxu0
        %v1848 = vadd.f32 %v512, %v1847
        %v1849 = vpop.f32.mrb[0].mxu0
        %v1850 = vpop.f32.mrb[0].mxu0
        %v1851 = vadd.f32 %v512, %v1850
        %v1852 = vpop.f32.mrb[0].mxu0
        %1853 = vmatprep.mubr.bf16.mxu0 0
        %1854 = vmatmul.mubr.bf16.gmra.mrb[0].mxu0 %v1266
        %v1855 = vpop.f32.mrb[0].mxu0
        %v1856 = vadd.f32 %v512, %v1855
        %v1857 = vpop.f32.mrb[0].mxu0
        %v1858 = vpop.f32.mrb[0].mxu0
        %v1859 = vadd.f32 %v512, %v1858
        %v1860 = vpop.f32.mrb[0].mxu0
        %1861 = vmatprep.mubr.bf16.mxu0 0
        %1862 = vmatmul.mubr.bf16.gmra.mrb[0].mxu0 %v1269
        %v1863 = vpop.f32.mrb[0].mxu0
        %v1864 = vadd.f32 %v512, %v1863
        %v1865 = vpop.f32.mrb[0].mxu0
        %v1866 = vpop.f32.mrb[0].mxu0
        %v1867 = vadd.f32 %v512, %v1866
        %v1868 = vpop.f32.mrb[0].mxu0
        %1869 = vmatprep.mubr.bf16.mxu0 0
        %1870 = vmatmul.mubr.bf16.gmra.mrb[0].mxu0 %v1272
        %v1871 = vpop.f32.mrb[0].mxu0
        %v1872 = vadd.f32 %v512, %v1871
        %v1873 = vpop.f32.mrb[0].mxu0
        %v1874 = vpop.f32.mrb[0].mxu0
        %v1875 = vadd.f32 %v512, %v1874
        %v1876 = vpop.f32.mrb[0].mxu0
        %1877 = vmatprep.mubr.bf16.mxu0 0
        %1878 = vmatmul.mubr.bf16.gmra.mrb[0].mxu0 %v1275
        %v1879 = vpop.f32.mrb[0].mxu0
        %v1880 = vadd.f32 %v512, %v1879
        %v1881 = vpop.f32.mrb[0].mxu0
        %v1882 = vpop.f32.mrb[0].mxu0
        %v1883 = vadd.f32 %v512, %v1882
        %v1884 = vpop.f32.mrb[0].mxu0
        %1885 = vmatprep.mubr.bf16.mxu0 0
        %1886 = vmatmul.mubr.bf16.gmra.mrb[0].mxu0 %v1278
        %v1887 = vpop.f32.mrb[0].mxu0
        %v1888 = vadd.f32 %v512, %v1887
        %v1889 = vpop.f32.mrb[0].mxu0
        %v1890 = vpop.f32.mrb[0].mxu0
        %v1891 = vadd.f32 %v512, %v1890
        %v1892 = vpop.f32.mrb[0].mxu0
        %1893 = vmatprep.mubr.bf16.mxu0 0
        %1894 = vmatmul.mubr.bf16.gmra.mrb[0].mxu0 %v1281
        %v1895 = vpop.f32.mrb[0].mxu0
        %v1896 = vadd.f32 %v512, %v1895
        %v1897 = vpop.f32.mrb[0].mxu0
        %v1898 = vpop.f32.mrb[0].mxu0
        %v1899 = vadd.f32 %v512, %v1898
        %v1900 = vpop.f32.mrb[0].mxu0
        %1901 = vmatprep.mubr.bf16.mxu0 0
        %1902 = vmatmul.mubr.bf16.gmra.mrb[0].mxu0 %v1284
        %v1903 = vpop.f32.mrb[0].mxu0
        %v1904 = vadd.f32 %v512, %v1903
        %v1905 = vpop.f32.mrb[0].mxu0
        %v1906 = vpop.f32.mrb[0].mxu0
        %v1907 = vadd.f32 %v512, %v1906
        %v1908 = vpop.f32.mrb[0].mxu0
        %1909 = vmatprep.mubr.bf16.mxu0 0
        %1910 = vmatmul.mubr.bf16.gmra.mrb[0].mxu0 %v1287
        %v1911 = vpop.f32.mrb[0].mxu0
        %v1912 = vadd.f32 %v512, %v1911
        %v1913 = vpop.f32.mrb[0].mxu0
        %v1914 = vpop.f32.mrb[0].mxu0
        %v1915 = vadd.f32 %v512, %v1914
        %v1916 = vpop.f32.mrb[0].mxu0
        %1917 = vmatprep.mubr.bf16.mxu0 0
        %1918 = vmatmul.mubr.bf16.gmra.mrb[0].mxu0 %v1290
        %v1919 = vpop.f32.mrb[0].mxu0
        %v1920 = vadd.f32 %v512, %v1919
        %v1921 = vpop.f32.mrb[0].mxu0
        %v1922 = vpop.f32.mrb[0].mxu0
        %v1923 = vadd.f32 %v512, %v1922
        %v1924 = vpop.f32.mrb[0].mxu0
        %1925 = vmatprep.mubr.bf16.mxu0 0
        %1926 = vmatmul.mubr.bf16.gmra.mrb[0].mxu0 %v1293
        %v1927 = vpop.f32.mrb[0].mxu0
        %v1928 = vadd.f32 %v512, %v1927
        %v1929 = vpop.f32.mrb[0].mxu0
        %v1930 = vpop.f32.mrb[0].mxu0
        %v1931 = vadd.f32 %v512, %v1930
        %v1932 = vpop.f32.mrb[0].mxu0
        %1933 = vmatprep.mubr.bf16.mxu0 0
        %1934 = vmatmul.mubr.bf16.gmra.mrb[0].mxu0 %v1296
        %v1935 = vpop.f32.mrb[0].mxu0
        %v1936 = vadd.f32 %v512, %v1935
        %v1937 = vpop.f32.mrb[0].mxu0
        %v1938 = vpop.f32.mrb[0].mxu0
        %v1939 = vadd.f32 %v512, %v1938
        %v1940 = vpop.f32.mrb[0].mxu0
        %1941 = vmatprep.mubr.bf16.mxu0 0
        %1942 = vmatmul.mubr.bf16.gmra.mrb[0].mxu0 %v1299
        %v1943 = vpop.f32.mrb[0].mxu0
        %v1944 = vadd.f32 %v512, %v1943
        %v1945 = vpop.f32.mrb[0].mxu0
        %v1946 = vpop.f32.mrb[0].mxu0
        %v1947 = vadd.f32 %v512, %v1946
        %v1948 = vpop.f32.mrb[0].mxu0
        %1949 = vmatprep.mubr.bf16.mxu0 0
        %1950 = vmatmul.mubr.bf16.gmra.mrb[0].mxu0 %v1302
        %v1951 = vpop.f32.mrb[0].mxu0
        %v1952 = vadd.f32 %v512, %v1951
        %v1953 = vpop.f32.mrb[0].mxu0
        %v1954 = vpop.f32.mrb[0].mxu0
        %v1955 = vadd.f32 %v512, %v1954
        %v1956 = vpop.f32.mrb[0].mxu0
        %1957 = vmatprep.mubr.bf16.mxu0 0
        %1958 = vmatmul.mubr.bf16.gmra.mrb[0].mxu0 %v1305
        %v1959 = vpop.f32.mrb[0].mxu0
        %v1960 = vadd.f32 %v512, %v1959
        %v1961 = vpop.f32.mrb[0].mxu0
        %v1962 = vpop.f32.mrb[0].mxu0
        %v1963 = vadd.f32 %v512, %v1962
        %v1964 = vpop.f32.mrb[0].mxu0
        %1965 = vmatprep.mubr.bf16.mxu0 0
        %1966 = vmatmul.mubr.bf16.gmra.mrb[0].mxu0 %v1308
        %v1967 = vpop.f32.mrb[0].mxu0
        %v1968 = vadd.f32 %v512, %v1967
        %v1969 = vpop.f32.mrb[0].mxu0
        %v1970 = vpop.f32.mrb[0].mxu0
        %v1971 = vadd.f32 %v512, %v1970
        %v1972 = vpop.f32.mrb[0].mxu0
        %1973 = vmatprep.mubr.bf16.mxu0 0
        %1974 = vmatmul.mubr.bf16.gmra.mrb[0].mxu0 %v1311
        %v1975 = vpop.f32.mrb[0].mxu0
        %v1976 = vadd.f32 %v512, %v1975
        %v1977 = vpop.f32.mrb[0].mxu0
        %v1978 = vpop.f32.mrb[0].mxu0
        %v1979 = vadd.f32 %v512, %v1978
        %v1980 = vpop.f32.mrb[0].mxu0
        %1981 = vmatprep.mubr.bf16.mxu0 0
        %1982 = vmatmul.mubr.bf16.gmra.mrb[0].mxu0 %v1314
        %v1983 = vpop.f32.mrb[0].mxu0
        %v1984 = vadd.f32 %v512, %v1983
        %v1985 = vpop.f32.mrb[0].mxu0
        %v1986 = vpop.f32.mrb[0].mxu0
        %v1987 = vadd.f32 %v512, %v1986
        %v1988 = vpop.f32.mrb[0].mxu0
        %1989 = vmatprep.mubr.bf16.mxu0 0
        %1990 = vmatmul.mubr.bf16.gmra.mrb[0].mxu0 %v1317
        %v1991 = vpop.f32.mrb[0].mxu0
        %v1992 = vadd.f32 %v512, %v1991
        %v1993 = vpop.f32.mrb[0].mxu0
        %v1994 = vpop.f32.mrb[0].mxu0
        %v1995 = vadd.f32 %v512, %v1994
        %v1996 = vpop.f32.mrb[0].mxu0
        %1997 = vmatprep.mubr.bf16.mxu0 0
        %1998 = vmatmul.mubr.bf16.gmra.mrb[0].mxu0 %v1320
        %v1999 = vpop.f32.mrb[0].mxu0
        %v2000 = vadd.f32 %v512, %v1999
        %v2001 = vpop.f32.mrb[0].mxu0
        %v2002 = vpop.f32.mrb[0].mxu0
        %v2003 = vadd.f32 %v512, %v2002
        %v2004 = vpop.f32.mrb[0].mxu0
        %2005 = vmatprep.mubr.bf16.mxu0 0
        %2006 = vmatmul.mubr.bf16.gmra.mrb[0].mxu0 %v1323
        %v2007 = vpop.f32.mrb[0].mxu0
        %v2008 = vadd.f32 %v512, %v2007
        %v2009 = vpop.f32.mrb[0].mxu0
        %v2010 = vpop.f32.mrb[0].mxu0
        %v2011 = vadd.f32 %v512, %v2010
        %v2012 = vpop.f32.mrb[0].mxu0
        %2013 = vmatprep.mubr.bf16.mxu0 0
        %2014 = vmatmul.mubr.bf16.gmra.mrb[0].mxu0 %v1326
        %v2015 = vpop.f32.mrb[0].mxu0
        %v2016 = vadd.f32 %v512, %v2015
        %v2017 = vpop.f32.mrb[0].mxu0
        %v2018 = vpop.f32.mrb[0].mxu0
        %v2019 = vadd.f32 %v512, %v2018
        %v2020 = vpop.f32.mrb[0].mxu0
        %2021 = vmatprep.mubr.bf16.mxu0 0
        %2022 = vmatmul.mubr.bf16.gmra.mrb[0].mxu0 %v1329
        %v2023 = vpop.f32.mrb[0].mxu0
        %v2024 = vadd.f32 %v512, %v2023
        %v2025 = vpop.f32.mrb[0].mxu0
        %v2026 = vpop.f32.mrb[0].mxu0
        %v2027 = vadd.f32 %v512, %v2026
        %v2028 = vpop.f32.mrb[0].mxu0
        %2029 = vmatprep.mubr.bf16.mxu0 0
        %2030 = vmatmul.mubr.bf16.gmra.mrb[0].mxu0 %v1332
        %v2031 = vpop.f32.mrb[0].mxu0
        %v2032 = vadd.f32 %v512, %v2031
        %v2033 = vpop.f32.mrb[0].mxu0
        %v2034 = vpop.f32.mrb[0].mxu0
        %v2035 = vadd.f32 %v512, %v2034
        %v2036 = vpop.f32.mrb[0].mxu0
        %2037 = vmatprep.mubr.bf16.mxu0 0
        %2038 = vmatmul.mubr.bf16.gmra.mrb[0].mxu0 %v1335
        %v2039 = vpop.f32.mrb[0].mxu0
        %v2040 = vadd.f32 %v512, %v2039
        %v2041 = vpop.f32.mrb[0].mxu0
        %v2042 = vpop.f32.mrb[0].mxu0
        %v2043 = vadd.f32 %v512, %v2042
        %v2044 = vpop.f32.mrb[0].mxu0
        %2045 = vmatprep.mubr.bf16.mxu0 0
        %2046 = vmatmul.mubr.bf16.gmra.mrb[0].mxu0 %v1338
        %v2047 = vpop.f32.mrb[0].mxu0
        %v2048 = vadd.f32 %v512, %v2047
        %v2049 = vpop.f32.mrb[0].mxu0
        %v2050 = vpop.f32.mrb[0].mxu0
        %v2051 = vadd.f32 %v512, %v2050
        %v2052 = vpop.f32.mrb[0].mxu0
        %2053 = vmatprep.mubr.bf16.mxu0 0
        %2054 = vmatmul.mubr.bf16.gmra.mrb[0].mxu0 %v1341
        %v2055 = vpop.f32.mrb[0].mxu0
        %v2056 = vadd.f32 %v512, %v2055
        %v2057 = vpop.f32.mrb[0].mxu0
        %v2058 = vpop.f32.mrb[0].mxu0
        %v2059 = vadd.f32 %v512, %v2058
        %v2060 = vpop.f32.mrb[0].mxu0
        %2061 = vmatprep.mubr.bf16.mxu0 0
        %2062 = vmatmul.mubr.bf16.gmra.mrb[0].mxu0 %v1344
        %v2063 = vpop.f32.mrb[0].mxu0
        %v2064 = vadd.f32 %v512, %v2063
        %v2065 = vpop.f32.mrb[0].mxu0
        %v2066 = vpop.f32.mrb[0].mxu0
        %v2067 = vadd.f32 %v512, %v2066
        %v2068 = vpop.f32.mrb[0].mxu0
        %2069 = vmatprep.mubr.bf16.mxu0 0
        %2070 = vmatmul.mubr.bf16.gmra.mrb[0].mxu0 %v1347
        %v2071 = vpop.f32.mrb[0].mxu0
        %v2072 = vadd.f32 %v512, %v2071
        %v2073 = vpop.f32.mrb[0].mxu0
        %v2074 = vpop.f32.mrb[0].mxu0
        %v2075 = vadd.f32 %v512, %v2074
        %v2076 = vpop.f32.mrb[0].mxu0
        %2077 = vmatprep.mubr.bf16.mxu0 0
        %2078 = vmatmul.mubr.bf16.gmra.mrb[0].mxu0 %v1350
        %v2079 = vpop.f32.mrb[0].mxu0
        %v2080 = vadd.f32 %v512, %v2079
        %v2081 = vpop.f32.mrb[0].mxu0
        %v2082 = vpop.f32.mrb[0].mxu0
        %v2083 = vadd.f32 %v512, %v2082
        %v2084 = vpop.f32.mrb[0].mxu0
        %2085 = vmatprep.mubr.bf16.mxu0 0
        %2086 = vmatmul.mubr.bf16.gmra.mrb[0].mxu0 %v1353
        %v2087 = vpop.f32.mrb[0].mxu0
        %v2088 = vadd.f32 %v512, %v2087
        %v2089 = vpop.f32.mrb[0].mxu0
        %v2090 = vpop.f32.mrb[0].mxu0
        %v2091 = vadd.f32 %v512, %v2090
        %v2092 = vpop.f32.mrb[0].mxu0
        %2093 = vmatprep.mubr.bf16.mxu0 0
        %2094 = vmatmul.mubr.bf16.gmra.mrb[0].mxu0 %v1356
        %v2095 = vpop.f32.mrb[0].mxu0
        %v2096 = vadd.f32 %v512, %v2095
        %v2097 = vpop.f32.mrb[0].mxu0
        %v2098 = vpop.f32.mrb[0].mxu0
        %v2099 = vadd.f32 %v512, %v2098
        %v2100 = vpop.f32.mrb[0].mxu0
        %2101 = vmatprep.mubr.bf16.mxu0 0
        %2102 = vmatmul.mubr.bf16.gmra.mrb[0].mxu0 %v1359
        %v2103 = vpop.f32.mrb[0].mxu0
        %v2104 = vadd.f32 %v512, %v2103
        %v2105 = vpop.f32.mrb[0].mxu0
        %v2106 = vpop.f32.mrb[0].mxu0
        %v2107 = vadd.f32 %v512, %v2106
        %v2108 = vpop.f32.mrb[0].mxu0
        %2109 = vmatprep.mubr.bf16.mxu0 0
        %2110 = vmatmul.mubr.bf16.gmra.mrb[0].mxu0 %v1362
        %v2111 = vpop.f32.mrb[0].mxu0
        %v2112 = vadd.f32 %v512, %v2111
        %v2113 = vpop.f32.mrb[0].mxu0
        %v2114 = vpop.f32.mrb[0].mxu0
        %v2115 = vadd.f32 %v512, %v2114
        %v2116 = vpop.f32.mrb[0].mxu0
        %2117 = vmatprep.mubr.bf16.mxu0 0
        %2118 = vmatmul.mubr.bf16.gmra.mrb[0].mxu0 %v1365
        %v2119 = vpop.f32.mrb[0].mxu0
        %v2120 = vadd.f32 %v512, %v2119
        %v2121 = vpop.f32.mrb[0].mxu0
        %v2122 = vpop.f32.mrb[0].mxu0
        %v2123 = vadd.f32 %v512, %v2122
        %v2124 = vpop.f32.mrb[0].mxu0
        %2125 = vmatprep.mubr.bf16.mxu0 0
        %2126 = vmatmul.mubr.bf16.gmra.mrb[0].mxu0 %v1368
        %v2127 = vpop.f32.mrb[0].mxu0
        %v2128 = vadd.f32 %v512, %v2127
        %v2129 = vpop.f32.mrb[0].mxu0
        %v2130 = vpop.f32.mrb[0].mxu0
        %v2131 = vadd.f32 %v512, %v2130
        %v2132 = vpop.f32.mrb[0].mxu0
        %2133 = vmatprep.mubr.bf16.mxu0 0
        %2134 = vmatmul.mubr.bf16.gmra.mrb[0].mxu0 %v1371
        %v2135 = vpop.f32.mrb[0].mxu0
        %v2136 = vadd.f32 %v512, %v2135
        %v2137 = vpop.f32.mrb[0].mxu0
        %v2138 = vpop.f32.mrb[0].mxu0
        %v2139 = vadd.f32 %v512, %v2138
        %v2140 = vpop.f32.mrb[0].mxu0
        %2141 = vmatprep.mubr.bf16.mxu0 0
        %2142 = vmatmul.mubr.bf16.gmra.mrb[0].mxu0 %v1374
        %v2143 = vpop.f32.mrb[0].mxu0
        %v2144 = vadd.f32 %v512, %v2143
        %v2145 = vpop.f32.mrb[0].mxu0
        %v2146 = vpop.f32.mrb[0].mxu0
        %v2147 = vadd.f32 %v512, %v2146
        %v2148 = vpop.f32.mrb[0].mxu0
        %2149 = vmatprep.mubr.bf16.mxu0 0
        %2150 = vmatmul.mubr.bf16.gmra.mrb[0].mxu0 %v1377
        %v2151 = vpop.f32.mrb[0].mxu0
        %v2152 = vadd.f32 %v512, %v2151
        %v2153 = vpop.f32.mrb[0].mxu0
        %v2154 = vpop.f32.mrb[0].mxu0
        %v2155 = vadd.f32 %v512, %v2154
        %v2156 = vpop.f32.mrb[0].mxu0
        %2157 = vmatprep.mubr.bf16.mxu0 0
        %2158 = vmatmul.mubr.bf16.gmra.mrb[0].mxu0 %v1380
        %v2159 = vpop.f32.mrb[0].mxu0
        %v2160 = vadd.f32 %v512, %v2159
        %v2161 = vpop.f32.mrb[0].mxu0
        %v2162 = vpop.f32.mrb[0].mxu0
        %v2163 = vadd.f32 %v512, %v2162
        %v2164 = vpop.f32.mrb[0].mxu0
        %2165 = vmatprep.mubr.bf16.mxu0 0
        %2166 = vmatmul.mubr.bf16.gmra.mrb[0].mxu0 %v1383
        %v2167 = vpop.f32.mrb[0].mxu0
        %v2168 = vadd.f32 %v512, %v2167
        %v2169 = vpop.f32.mrb[0].mxu0
        %v2170 = vpop.f32.mrb[0].mxu0
        %v2171 = vadd.f32 %v512, %v2170
        %v2172 = vpop.f32.mrb[0].mxu0
        %2173 = vmatprep.mubr.bf16.mxu0 0
        %2174 = vmatmul.mubr.bf16.gmra.mrb[0].mxu0 %v1386
        %v2175 = vpop.f32.mrb[0].mxu0
        %v2176 = vadd.f32 %v512, %v2175
        %v2177 = vpop.f32.mrb[0].mxu0
        %v2178 = vpop.f32.mrb[0].mxu0
        %v2179 = vadd.f32 %v512, %v2178
        %v2180 = vpop.f32.mrb[0].mxu0
        %2181 = vmatprep.mubr.bf16.mxu0 0
        %2182 = vmatmul.mubr.bf16.gmra.mrb[0].mxu0 %v1389
        %v2183 = vpop.f32.mrb[0].mxu0
        %v2184 = vadd.f32 %v512, %v2183
        %v2185 = vpop.f32.mrb[0].mxu0
        %v2186 = vpop.f32.mrb[0].mxu0
        %v2187 = vadd.f32 %v512, %v2186
        %v2188 = vpop.f32.mrb[0].mxu0
        %2189 = vmatprep.mubr.bf16.mxu0 0
        %2190 = vmatmul.mubr.bf16.gmra.mrb[0].mxu0 %v1392
        %v2191 = vpop.f32.mrb[0].mxu0
        %v2192 = vadd.f32 %v512, %v2191
        %v2193 = vpop.f32.mrb[0].mxu0
        %v2194 = vpop.f32.mrb[0].mxu0
        %v2195 = vadd.f32 %v512, %v2194
        %v2196 = vpop.f32.mrb[0].mxu0
        %2197 = vmatprep.mubr.bf16.mxu0 0
        %2198 = vmatmul.mubr.bf16.gmra.mrb[0].mxu0 %v1395
        %v2199 = vpop.f32.mrb[0].mxu0
        %v2200 = vadd.f32 %v512, %v2199
        %v2201 = vpop.f32.mrb[0].mxu0
        %v2202 = vpop.f32.mrb[0].mxu0
        %v2203 = vadd.f32 %v512, %v2202
        %v2204 = vpop.f32.mrb[0].mxu0
        %2205 = vmatprep.mubr.bf16.mxu0 0
        %2206 = vmatmul.mubr.bf16.gmra.mrb[0].mxu0 %v1398
        %v2207 = vpop.f32.mrb[0].mxu0
        %v2208 = vadd.f32 %v512, %v2207
        %v2209 = vpop.f32.mrb[0].mxu0
        %v2210 = vpop.f32.mrb[0].mxu0
        %v2211 = vadd.f32 %v512, %v2210
        %v2212 = vpop.f32.mrb[0].mxu0
        %2213 = vmatprep.mubr.bf16.mxu0 0
        %2214 = vmatmul.mubr.bf16.gmra.mrb[0].mxu0 %v1401
        %v2215 = vpop.f32.mrb[0].mxu0
        %v2216 = vadd.f32 %v512, %v2215
        %v2217 = vpop.f32.mrb[0].mxu0
        %v2218 = vpop.f32.mrb[0].mxu0
        %v2219 = vadd.f32 %v512, %v2218
        %v2220 = vpop.f32.mrb[0].mxu0
        %2221 = vmatprep.mubr.bf16.mxu0 0
        %2222 = vmatmul.mubr.bf16.gmra.mrb[0].mxu0 %v1404
        %v2223 = vpop.f32.mrb[0].mxu0
        %v2224 = vadd.f32 %v512, %v2223
        %v2225 = vpop.f32.mrb[0].mxu0
        %v2226 = vpop.f32.mrb[0].mxu0
        %v2227 = vadd.f32 %v512, %v2226
        %v2228 = vpop.f32.mrb[0].mxu0
        %2229 = vmatprep.mubr.bf16.mxu0 0
        %2230 = vmatmul.mubr.bf16.gmra.mrb[0].mxu0 %v1407
        %v2231 = vpop.f32.mrb[0].mxu0
        %v2232 = vadd.f32 %v512, %v2231
        %v2233 = vpop.f32.mrb[0].mxu0
        %v2234 = vpop.f32.mrb[0].mxu0
        %v2235 = vadd.f32 %v512, %v2234
        %v2236 = vpop.f32.mrb[0].mxu0
        %2237 = vmatprep.mubr.bf16.mxu0 0
        %2238 = vmatmul.mubr.bf16.gmra.mrb[0].mxu0 %v1410
        %v2239 = vpop.f32.mrb[0].mxu0
        %v2240 = vadd.f32 %v512, %v2239
        %v2241 = vpop.f32.mrb[0].mxu0
        %v2242 = vpop.f32.mrb[0].mxu0
        %v2243 = vadd.f32 %v512, %v2242
        %v2244 = vpop.f32.mrb[0].mxu0
        %2245 = vmatprep.mubr.bf16.mxu0 0
        %2246 = vmatmul.mubr.bf16.gmra.mrb[0].mxu0 %v1413
        %v2247 = vpop.f32.mrb[0].mxu0
        %v2248 = vadd.f32 %v512, %v2247
        %v2249 = vpop.f32.mrb[0].mxu0
        %v2250 = vpop.f32.mrb[0].mxu0
        %v2251 = vadd.f32 %v512, %v2250
        %v2252 = vpop.f32.mrb[0].mxu0
        %2253 = vmatprep.mubr.bf16.mxu0 0
        %2254 = vmatmul.mubr.bf16.gmra.mrb[0].mxu0 %v1416
        %v2255 = vpop.f32.mrb[0].mxu0
        %v2256 = vadd.f32 %v512, %v2255
        %v2257 = vpop.f32.mrb[0].mxu0
        %v2258 = vpop.f32.mrb[0].mxu0
        %v2259 = vadd.f32 %v512, %v2258
        %v2260 = vpop.f32.mrb[0].mxu0
        %2261 = vmatprep.mubr.bf16.mxu0 0
        %2262 = vmatmul.mubr.bf16.gmra.mrb[0].mxu0 %v1419
        %v2263 = vpop.f32.mrb[0].mxu0
        %v2264 = vadd.f32 %v512, %v2263
        %v2265 = vpop.f32.mrb[0].mxu0
        %v2266 = vpop.f32.mrb[0].mxu0
        %v2267 = vadd.f32 %v512, %v2266
        %v2268 = vpop.f32.mrb[0].mxu0
        %2269 = vmatprep.mubr.bf16.mxu0 0
        %2270 = vmatmul.mubr.bf16.gmra.mrb[0].mxu0 %v1422
        %v2271 = vpop.f32.mrb[0].mxu0
        %v2272 = vadd.f32 %v512, %v2271
        %v2273 = vpop.f32.mrb[0].mxu0
        %v2274 = vpop.f32.mrb[0].mxu0
        %v2275 = vadd.f32 %v512, %v2274
        %v2276 = vpop.f32.mrb[0].mxu0
        %2277 = vmatprep.mubr.bf16.mxu0 0
        %2278 = vmatmul.mubr.bf16.gmra.mrb[0].mxu0 %v1425
        %v2279 = vpop.f32.mrb[0].mxu0
        %v2280 = vadd.f32 %v512, %v2279
        %v2281 = vpop.f32.mrb[0].mxu0
        %v2282 = vpop.f32.mrb[0].mxu0
        %v2283 = vadd.f32 %v512, %v2282
        %v2284 = vpop.f32.mrb[0].mxu0
        %2285 = vmatprep.mubr.bf16.mxu0 0
        %2286 = vmatmul.mubr.bf16.gmra.mrb[0].mxu0 %v1428
        %v2287 = vpop.f32.mrb[0].mxu0
        %v2288 = vadd.f32 %v512, %v2287
        %v2289 = vpop.f32.mrb[0].mxu0
        %v2290 = vpop.f32.mrb[0].mxu0
        %v2291 = vadd.f32 %v512, %v2290
        %v2292 = vpop.f32.mrb[0].mxu0
        %2293 = vmatprep.mubr.bf16.mxu0 0
        %2294 = vmatmul.mubr.bf16.gmra.mrb[0].mxu0 %v1431
        %v2295 = vpop.f32.mrb[0].mxu0
        %v2296 = vadd.f32 %v512, %v2295
        %v2297 = vpop.f32.mrb[0].mxu0
        %v2298 = vpop.f32.mrb[0].mxu0
        %v2299 = vadd.f32 %v512, %v2298
        %v2300 = vpop.f32.mrb[0].mxu0
        %2301 = vmatprep.mubr.bf16.mxu0 0
        %2302 = vmatmul.mubr.bf16.gmra.mrb[0].mxu0 %v1434
        %v2303 = vpop.f32.mrb[0].mxu0
        %v2304 = vadd.f32 %v512, %v2303
        %v2305 = vpop.f32.mrb[0].mxu0
        %v2306 = vpop.f32.mrb[0].mxu0
        %v2307 = vadd.f32 %v512, %v2306
        %v2308 = vpop.f32.mrb[0].mxu0
        %2309 = vmatprep.mubr.bf16.mxu0 0
        %2310 = vmatmul.mubr.bf16.gmra.mrb[0].mxu0 %v1437
        %v2311 = vpop.f32.mrb[0].mxu0
        %v2312 = vadd.f32 %v512, %v2311
        %v2313 = vpop.f32.mrb[0].mxu0
        %v2314 = vpop.f32.mrb[0].mxu0
        %v2315 = vadd.f32 %v512, %v2314
        %v2316 = vpop.f32.mrb[0].mxu0
        %2317 = vmatprep.mubr.bf16.mxu0 0
        %2318 = vmatmul.mubr.bf16.gmra.mrb[0].mxu0 %v1440
        %v2319 = vpop.f32.mrb[0].mxu0
        %v2320 = vadd.f32 %v512, %v2319
        %v2321 = vpop.f32.mrb[0].mxu0
        %v2322 = vpop.f32.mrb[0].mxu0
        %v2323 = vadd.f32 %v512, %v2322
        %v2324 = vpop.f32.mrb[0].mxu0
        %2325 = vmatprep.mubr.bf16.mxu0 0
        %2326 = vmatmul.mubr.bf16.gmra.mrb[0].mxu0 %v1443
        %v2327 = vpop.f32.mrb[0].mxu0
        %v2328 = vadd.f32 %v512, %v2327
        %v2329 = vpop.f32.mrb[0].mxu0
        %v2330 = vpop.f32.mrb[0].mxu0
        %v2331 = vadd.f32 %v512, %v2330
        %v2332 = vpop.f32.mrb[0].mxu0
        %2333 = vmatprep.mubr.bf16.mxu0 0
        %2334 = vmatmul.mubr.bf16.gmra.mrb[0].mxu0 %v1446
        %v2335 = vpop.f32.mrb[0].mxu0
        %v2336 = vadd.f32 %v512, %v2335
        %v2337 = vpop.f32.mrb[0].mxu0
        %v2338 = vpop.f32.mrb[0].mxu0
        %v2339 = vadd.f32 %v512, %v2338
        %v2340 = vpop.f32.mrb[0].mxu0
        %2341 = vmatprep.mubr.bf16.mxu0 0
        %2342 = vmatmul.mubr.bf16.gmra.mrb[0].mxu0 %v1449
        %v2343 = vpop.f32.mrb[0].mxu0
        %v2344 = vadd.f32 %v512, %v2343
        %v2345 = vpop.f32.mrb[0].mxu0
        %v2346 = vpop.f32.mrb[0].mxu0
        %v2347 = vadd.f32 %v512, %v2346
        %v2348 = vpop.f32.mrb[0].mxu0
        %2349 = vmatprep.mubr.bf16.mxu0 0
        %2350 = vmatmul.mubr.bf16.gmra.mrb[0].mxu0 %v1452
        %v2351 = vpop.f32.mrb[0].mxu0
        %v2352 = vadd.f32 %v512, %v2351
        %v2353 = vpop.f32.mrb[0].mxu0
        %v2354 = vpop.f32.mrb[0].mxu0
        %v2355 = vadd.f32 %v512, %v2354
        %v2356 = vpop.f32.mrb[0].mxu0
        %2357 = vmatprep.mubr.bf16.mxu0 0
        %2358 = vmatmul.mubr.bf16.gmra.mrb[0].mxu0 %v1455
        %v2359 = vpop.f32.mrb[0].mxu0
        %v2360 = vadd.f32 %v512, %v2359
        %v2361 = vpop.f32.mrb[0].mxu0
        %v2362 = vpop.f32.mrb[0].mxu0
        %v2363 = vadd.f32 %v512, %v2362
        %v2364 = vpop.f32.mrb[0].mxu0
        %2365 = vmatprep.mubr.bf16.mxu0 0
        %2366 = vmatmul.mubr.bf16.gmra.mrb[0].mxu0 %v1458
        %v2367 = vpop.f32.mrb[0].mxu0
        %v2368 = vadd.f32 %v512, %v2367
        %v2369 = vpop.f32.mrb[0].mxu0
        %v2370 = vpop.f32.mrb[0].mxu0
        %v2371 = vadd.f32 %v512, %v2370
        %v2372 = vpop.f32.mrb[0].mxu0
        %2373 = vmatprep.mubr.bf16.mxu0 0
        %2374 = vmatmul.mubr.bf16.gmra.mrb[0].mxu0 %v1461
        %v2375 = vpop.f32.mrb[0].mxu0
        %v2376 = vadd.f32 %v512, %v2375
        %v2377 = vpop.f32.mrb[0].mxu0
        %v2378 = vpop.f32.mrb[0].mxu0
        %v2379 = vadd.f32 %v512, %v2378
        %v2380 = vpop.f32.mrb[0].mxu0
        %2381 = vmatprep.mubr.bf16.mxu0 0
        %2382 = vmatmul.mubr.bf16.gmra.mrb[0].mxu0 %v1464
        %v2383 = vpop.f32.mrb[0].mxu0
        %v2384 = vadd.f32 %v512, %v2383
        %v2385 = vpop.f32.mrb[0].mxu0
        %v2386 = vpop.f32.mrb[0].mxu0
        %v2387 = vadd.f32 %v512, %v2386
        %v2388 = vpop.f32.mrb[0].mxu0
        %2389 = vmatprep.mubr.bf16.mxu0 0
        %2390 = vmatmul.mubr.bf16.gmra.mrb[0].mxu0 %v1467
        %v2391 = vpop.f32.mrb[0].mxu0
        %v2392 = vadd.f32 %v512, %v2391
        %v2393 = vpop.f32.mrb[0].mxu0
        %v2394 = vpop.f32.mrb[0].mxu0
        %v2395 = vadd.f32 %v512, %v2394
        %v2396 = vpop.f32.mrb[0].mxu0
        %2397 = vmatprep.mubr.bf16.mxu0 0
        %2398 = vmatmul.mubr.bf16.gmra.mrb[0].mxu0 %v1470
        %v2399 = vpop.f32.mrb[0].mxu0
        %v2400 = vadd.f32 %v512, %v2399
        %v2401 = vpop.f32.mrb[0].mxu0
        %v2402 = vpop.f32.mrb[0].mxu0
        %v2403 = vadd.f32 %v512, %v2402
        %v2404 = vpop.f32.mrb[0].mxu0
        %2405 = vmatprep.mubr.bf16.mxu0 0
        %2406 = vmatmul.mubr.bf16.gmra.mrb[0].mxu0 %v1473
        %v2407 = vpop.f32.mrb[0].mxu0
        %v2408 = vadd.f32 %v512, %v2407
        %v2409 = vpop.f32.mrb[0].mxu0
        %v2410 = vpop.f32.mrb[0].mxu0
        %v2411 = vadd.f32 %v512, %v2410
        %v2412 = vpop.f32.mrb[0].mxu0
        %2413 = vmatprep.mubr.bf16.mxu0 0
        %2414 = vmatmul.mubr.bf16.gmra.mrb[0].mxu0 %v1476
        %v2415 = vpop.f32.mrb[0].mxu0
        %v2416 = vadd.f32 %v512, %v2415
        %v2417 = vpop.f32.mrb[0].mxu0
        %v2418 = vpop.f32.mrb[0].mxu0
        %v2419 = vadd.f32 %v512, %v2418
        %v2420 = vpop.f32.mrb[0].mxu0
        %2421 = vmatprep.mubr.bf16.mxu0 0
        %2422 = vmatmul.mubr.bf16.gmra.mrb[0].mxu0 %v1479
        %v2423 = vpop.f32.mrb[0].mxu0
        %v2424 = vadd.f32 %v512, %v2423
        %v2425 = vpop.f32.mrb[0].mxu0
        %v2426 = vpop.f32.mrb[0].mxu0
        %v2427 = vadd.f32 %v512, %v2426
        %v2428 = vpop.f32.mrb[0].mxu0
        %2429 = vmatprep.mubr.bf16.mxu0 0
        %2430 = vmatmul.mubr.bf16.gmra.mrb[0].mxu0 %v1482
        %v2431 = vpop.f32.mrb[0].mxu0
        %v2432 = vadd.f32 %v512, %v2431
        %v2433 = vpop.f32.mrb[0].mxu0
        %v2434 = vpop.f32.mrb[0].mxu0
        %v2435 = vadd.f32 %v512, %v2434
        %v2436 = vpop.f32.mrb[0].mxu0
        %2437 = vmatprep.mubr.bf16.mxu0 0
        %2438 = vmatmul.mubr.bf16.gmra.mrb[0].mxu0 %v1485
        %v2439 = vpop.f32.mrb[0].mxu0
        %v2440 = vadd.f32 %v512, %v2439
        %v2441 = vpop.f32.mrb[0].mxu0
        %v2442 = vpop.f32.mrb[0].mxu0
        %v2443 = vadd.f32 %v512, %v2442
        %v2444 = vpop.f32.mrb[0].mxu0
        %2445 = vmatprep.mubr.bf16.mxu0 0
        %2446 = vmatmul.mubr.bf16.gmra.mrb[0].mxu0 %v1488
        %v2447 = vpop.f32.mrb[0].mxu0
        %v2448 = vadd.f32 %v512, %v2447
        %v2449 = vpop.f32.mrb[0].mxu0
        %v2450 = vpop.f32.mrb[0].mxu0
        %v2451 = vadd.f32 %v512, %v2450
        %v2452 = vpop.f32.mrb[0].mxu0
        %2453 = vmatprep.mubr.bf16.mxu0 0
        %2454 = vmatmul.mubr.bf16.gmra.mrb[0].mxu0 %v1491
        %v2455 = vpop.f32.mrb[0].mxu0
        %v2456 = vadd.f32 %v512, %v2455
        %v2457 = vpop.f32.mrb[0].mxu0
        %v2458 = vpop.f32.mrb[0].mxu0
        %v2459 = vadd.f32 %v512, %v2458
        %v2460 = vpop.f32.mrb[0].mxu0
        %2461 = vmatprep.mubr.bf16.mxu0 0
        %2462 = vmatmul.mubr.bf16.gmra.mrb[0].mxu0 %v1494
        %v2463 = vpop.f32.mrb[0].mxu0
        %v2464 = vadd.f32 %v512, %v2463
        %v2465 = vpop.f32.mrb[0].mxu0
        %v2466 = vpop.f32.mrb[0].mxu0
        %v2467 = vadd.f32 %v512, %v2466
        %v2468 = vpop.f32.mrb[0].mxu0
        %2469 = vmatprep.mubr.bf16.mxu0 0
        %2470 = vmatmul.mubr.bf16.gmra.mrb[0].mxu0 %v1497
        %v2471 = vpop.f32.mrb[0].mxu0
        %v2472 = vadd.f32 %v512, %v2471
        %v2473 = vpop.f32.mrb[0].mxu0
        %v2474 = vpop.f32.mrb[0].mxu0
        %v2475 = vadd.f32 %v512, %v2474
        %v2476 = vpop.f32.mrb[0].mxu0
        %2477 = vmatprep.mubr.bf16.mxu0 0
        %2478 = vmatmul.mubr.bf16.gmra.mrb[0].mxu0 %v1500
        %v2479 = vpop.f32.mrb[0].mxu0
        %v2480 = vadd.f32 %v512, %v2479
        %v2481 = vpop.f32.mrb[0].mxu0
        %v2482 = vpop.f32.mrb[0].mxu0
        %v2483 = vadd.f32 %v512, %v2482
        %v2484 = vpop.f32.mrb[0].mxu0
        %2485 = vmatprep.mubr.bf16.mxu0 0
        %2486 = vmatmul.mubr.bf16.gmra.mrb[0].mxu0 %v1503
        %v2487 = vpop.f32.mrb[0].mxu0
        %v2488 = vadd.f32 %v512, %v2487
        %v2489 = vpop.f32.mrb[0].mxu0
        %v2490 = vpop.f32.mrb[0].mxu0
        %v2491 = vadd.f32 %v512, %v2490
        %v2492 = vpop.f32.mrb[0].mxu0
        %2493 = vmatprep.mubr.bf16.mxu0 0
        %2494 = vmatmul.mubr.bf16.gmra.mrb[0].mxu0 %v1506
        %v2495 = vpop.f32.mrb[0].mxu0
        %v2496 = vadd.f32 %v512, %v2495
        %v2497 = vpop.f32.mrb[0].mxu0
        %v2498 = vpop.f32.mrb[0].mxu0
        %v2499 = vadd.f32 %v512, %v2498
        %v2500 = vpop.f32.mrb[0].mxu0
        %2501 = vmatprep.mubr.bf16.mxu0 0
        %2502 = vmatmul.mubr.bf16.gmra.mrb[0].mxu0 %v1509
        %v2503 = vpop.f32.mrb[0].mxu0
        %v2504 = vadd.f32 %v512, %v2503
        %v2505 = vpop.f32.mrb[0].mxu0
        %v2506 = vpop.f32.mrb[0].mxu0
        %v2507 = vadd.f32 %v512, %v2506
        %v2508 = vpop.f32.mrb[0].mxu0
        %2509 = vmatprep.mubr.bf16.mxu0 0
        %2510 = vmatmul.mubr.bf16.gmra.mrb[0].mxu0 %v1512
        %v2511 = vpop.f32.mrb[0].mxu0
        %v2512 = vadd.f32 %v512, %v2511
        %v2513 = vpop.f32.mrb[0].mxu0
        %v2514 = vpop.f32.mrb[0].mxu0
        %v2515 = vadd.f32 %v512, %v2514
        %v2516 = vpop.f32.mrb[0].mxu0
        %2517 = vmatprep.mubr.bf16.mxu0 0
        %2518 = vmatmul.mubr.bf16.gmra.mrb[0].mxu0 %v1515
        %v2519 = vpop.f32.mrb[0].mxu0
        %v2520 = vadd.f32 %v512, %v2519
        %v2521 = vpop.f32.mrb[0].mxu0
        %v2522 = vpop.f32.mrb[0].mxu0
        %v2523 = vadd.f32 %v512, %v2522
        %v2524 = vpop.f32.mrb[0].mxu0
        %2525 = vmatprep.mubr.bf16.mxu0 0
        %2526 = vmatmul.mubr.bf16.gmra.mrb[0].mxu0 %v1518
        %v2527 = vpop.f32.mrb[0].mxu0
        %v2528 = vadd.f32 %v512, %v2527
        %v2529 = vpop.f32.mrb[0].mxu0
        %v2530 = vpop.f32.mrb[0].mxu0
        %v2531 = vadd.f32 %v512, %v2530
        %v2532 = vpop.f32.mrb[0].mxu0
        %2533 = vmatprep.mubr.bf16.mxu0 0
        %2534 = vmatmul.mubr.bf16.gmra.mrb[0].mxu0 %v1521
        %v2535 = vpop.f32.mrb[0].mxu0
        %v2536 = vadd.f32 %v512, %v2535
        %v2537 = vpop.f32.mrb[0].mxu0
        %v2538 = vpop.f32.mrb[0].mxu0
        %v2539 = vadd.f32 %v512, %v2538
        %v2540 = vpop.f32.mrb[0].mxu0
        %2541 = vmatprep.mubr.bf16.mxu0 0
        %2542 = vmatmul.mubr.bf16.gmra.mrb[0].mxu0 %v1524
        %v2543 = vpop.f32.mrb[0].mxu0
        %v2544 = vadd.f32 %v512, %v2543
        %v2545 = vpop.f32.mrb[0].mxu0
        %v2546 = vpop.f32.mrb[0].mxu0
        %v2547 = vadd.f32 %v512, %v2546
        %v2548 = vpop.f32.mrb[0].mxu0
        %2549 = vmatprep.mubr.bf16.mxu0 0
        %2550 = vmatmul.mubr.bf16.gmra.mrb[0].mxu0 %v1527
        %v2551 = vpop.f32.mrb[0].mxu0
        %v2552 = vadd.f32 %v512, %v2551
        %v2553 = vpop.f32.mrb[0].mxu0
        %v2554 = vpop.f32.mrb[0].mxu0
        %v2555 = vadd.f32 %v512, %v2554
        %v2556 = vpop.f32.mrb[0].mxu0
        %2557 = vmatprep.mubr.bf16.mxu0 0
        %2558 = vmatmul.mubr.bf16.gmra.mrb[0].mxu0 %v1530
        %v2559 = vpop.f32.mrb[0].mxu0
        %v2560 = vadd.f32 %v512, %v2559
        %v2561 = vpop.f32.mrb[0].mxu0
        %v2562 = vpop.f32.mrb[0].mxu0
        %v2563 = vadd.f32 %v512, %v2562
        %v2564 = vpop.f32.mrb[0].mxu0
        %2565 = vmatprep.mubr.bf16.mxu0 0
        %2566 = vmatmul.mubr.bf16.gmra.mrb[0].mxu0 %v1533
        %v2567 = vpop.f32.mrb[0].mxu0
        %v2568 = vadd.f32 %v512, %v2567
        %v2569 = vpop.f32.mrb[0].mxu0
        %v2570 = vpop.f32.mrb[0].mxu0
        %v2571 = vadd.f32 %v512, %v2570
        %v2572 = vpop.f32.mrb[0].mxu0
        %2573 = vmatprep.mubr.bf16.mxu0 0
        %2574 = vmatmul.mubr.bf16.gmra.mrb[0].mxu0 %v1536
        %v2575 = vpop.f32.mrb[0].mxu0
        %v2576 = vadd.f32 %v512, %v2575
        %v2577 = vpop.f32.mrb[0].mxu0
        %v2578 = vpop.f32.mrb[0].mxu0
        %v2579 = vadd.f32 %v512, %v2578
        %v2580 = vpop.f32.mrb[0].mxu0
        %2581 = vmatprep.mubr.bf16.mxu0 0
        %2582 = vmatmul.mubr.bf16.gmra.mrb[0].mxu0 %v1539
        %v2583 = vpop.f32.mrb[0].mxu0
        %v2584 = vadd.f32 %v512, %v2583
        %v2585 = vpop.f32.mrb[0].mxu0
        %v2586 = vpop.f32.mrb[0].mxu0
        %v2587 = vadd.f32 %v512, %v2586
        %v2588 = vpop.f32.mrb[0].mxu0
        %2589 = vmatprep.mubr.bf16.mxu0 0
        %2590 = vmatmul.mubr.bf16.gmra.mrb[0].mxu0 %v1542
        %v2591 = vpop.f32.mrb[0].mxu0
        %v2592 = vadd.f32 %v512, %v2591
        %v2593 = vpop.f32.mrb[0].mxu0
        %v2594 = vpop.f32.mrb[0].mxu0
        %v2595 = vadd.f32 %v512, %v2594
        %v2596 = vpop.f32.mrb[0].mxu0
        %2597 = vmatprep.mubr.bf16.mxu0 0
        %2598 = vmatmul.mubr.bf16.gmra.mrb[0].mxu0 %v1545
        %v2599 = vpop.f32.mrb[0].mxu0
        %v2600 = vadd.f32 %v512, %v2599
        %v2601 = vpop.f32.mrb[0].mxu0
        %v2602 = vpop.f32.mrb[0].mxu0
        %v2603 = vadd.f32 %v512, %v2602
        %v2604 = vpop.f32.mrb[0].mxu0
        %2605 = vmatprep.mubr.bf16.mxu0 0
        %2606 = vmatmul.mubr.bf16.gmra.mrb[0].mxu0 %v1548
        %v2607 = vpop.f32.mrb[0].mxu0
        %v2608 = vadd.f32 %v512, %v2607
        %v2609 = vpop.f32.mrb[0].mxu0
        %v2610 = vpop.f32.mrb[0].mxu0
        %v2611 = vadd.f32 %v512, %v2610
        %v2612 = vpop.f32.mrb[0].mxu0
        %2613 = vdwg.mxu0
        %v2614 = vmax.f32 %v1592, 0.0
        %v2615 = vmax.f32 %v1595, 0.0
        %v2616 = vmax.f32 %v1600, 0.0
        %v2617 = vmax.f32 %v1603, 0.0
        %v2618 = vmax.f32 %v1608, 0.0
        %v2619 = vmax.f32 %v1611, 0.0
        %v2620 = vmax.f32 %v1616, 0.0
        %v2621 = vmax.f32 %v1619, 0.0
        %v2622 = vmax.f32 %v1624, 0.0
        %v2623 = vmax.f32 %v1627, 0.0
        %v2624 = vmax.f32 %v1632, 0.0
        %v2625 = vmax.f32 %v1635, 0.0
        %v2626 = vmax.f32 %v1640, 0.0
        %v2627 = vmax.f32 %v1643, 0.0
        %v2628 = vmax.f32 %v1648, 0.0
        %v2629 = vmax.f32 %v1651, 0.0
        %v2630 = vmax.f32 %v1656, 0.0
        %v2631 = vmax.f32 %v1659, 0.0
        %v2632 = vmax.f32 %v1664, 0.0
        %v2633 = vmax.f32 %v1667, 0.0
        %v2634 = vmax.f32 %v1672, 0.0
        %v2635 = vmax.f32 %v1675, 0.0
        %v2636 = vmax.f32 %v1680, 0.0
        %v2637 = vmax.f32 %v1683, 0.0
        %v2638 = vmax.f32 %v1688, 0.0
        %v2639 = vmax.f32 %v1691, 0.0
        %v2640 = vmax.f32 %v1696, 0.0
        %v2641 = vmax.f32 %v1699, 0.0
        %v2642 = vmax.f32 %v1704, 0.0
        %v2643 = vmax.f32 %v1707, 0.0
        %v2644 = vmax.f32 %v1712, 0.0
        %v2645 = vmax.f32 %v1715, 0.0
        %v2646 = vmax.f32 %v1720, 0.0
        %v2647 = vmax.f32 %v1723, 0.0
        %v2648 = vmax.f32 %v1728, 0.0
        %v2649 = vmax.f32 %v1731, 0.0
        %v2650 = vmax.f32 %v1736, 0.0
        %v2651 = vmax.f32 %v1739, 0.0
        %v2652 = vmax.f32 %v1744, 0.0
        %v2653 = vmax.f32 %v1747, 0.0
        %v2654 = vmax.f32 %v1752, 0.0
        %v2655 = vmax.f32 %v1755, 0.0
        %v2656 = vmax.f32 %v1760, 0.0
        %v2657 = vmax.f32 %v1763, 0.0
        %v2658 = vmax.f32 %v1768, 0.0
        %v2659 = vmax.f32 %v1771, 0.0
        %v2660 = vmax.f32 %v1776, 0.0
        %v2661 = vmax.f32 %v1779, 0.0
        %v2662 = vmax.f32 %v1784, 0.0
        %v2663 = vmax.f32 %v1787, 0.0
        %v2664 = vmax.f32 %v1792, 0.0
        %v2665 = vmax.f32 %v1795, 0.0
        %v2666 = vmax.f32 %v1800, 0.0
        %v2667 = vmax.f32 %v1803, 0.0
        %v2668 = vmax.f32 %v1808, 0.0
        %v2669 = vmax.f32 %v1811, 0.0
        %v2670 = vmax.f32 %v1816, 0.0
        %v2671 = vmax.f32 %v1819, 0.0
        %v2672 = vmax.f32 %v1824, 0.0
        %v2673 = vmax.f32 %v1827, 0.0
        %v2674 = vmax.f32 %v1832, 0.0
        %v2675 = vmax.f32 %v1835, 0.0
        %v2676 = vmax.f32 %v1840, 0.0
        %v2677 = vmax.f32 %v1843, 0.0
        %v2678 = vmax.f32 %v1848, 0.0
        %v2679 = vmax.f32 %v1851, 0.0
        %v2680 = vmax.f32 %v1856, 0.0
        %v2681 = vmax.f32 %v1859, 0.0
        %v2682 = vmax.f32 %v1864, 0.0
        %v2683 = vmax.f32 %v1867, 0.0
        %v2684 = vmax.f32 %v1872, 0.0
        %v2685 = vmax.f32 %v1875, 0.0
        %v2686 = vmax.f32 %v1880, 0.0
        %v2687 = vmax.f32 %v1883, 0.0
        %v2688 = vmax.f32 %v1888, 0.0
        %v2689 = vmax.f32 %v1891, 0.0
        %v2690 = vmax.f32 %v1896, 0.0
        %v2691 = vmax.f32 %v1899, 0.0
        %v2692 = vmax.f32 %v1904, 0.0
        %v2693 = vmax.f32 %v1907, 0.0
        %v2694 = vmax.f32 %v1912, 0.0
        %v2695 = vmax.f32 %v1915, 0.0
        %v2696 = vmax.f32 %v1920, 0.0
        %v2697 = vmax.f32 %v1923, 0.0
        %v2698 = vmax.f32 %v1928, 0.0
        %v2699 = vmax.f32 %v1931, 0.0
        %v2700 = vmax.f32 %v1936, 0.0
        %v2701 = vmax.f32 %v1939, 0.0
        %v2702 = vmax.f32 %v1944, 0.0
        %v2703 = vmax.f32 %v1947, 0.0
        %v2704 = vmax.f32 %v1952, 0.0
        %v2705 = vmax.f32 %v1955, 0.0
        %v2706 = vmax.f32 %v1960, 0.0
        %v2707 = vmax.f32 %v1963, 0.0
        %v2708 = vmax.f32 %v1968, 0.0
        %v2709 = vmax.f32 %v1971, 0.0
        %v2710 = vmax.f32 %v1976, 0.0
        %v2711 = vmax.f32 %v1979, 0.0
        %v2712 = vmax.f32 %v1984, 0.0
        %v2713 = vmax.f32 %v1987, 0.0
        %v2714 = vmax.f32 %v1992, 0.0
        %v2715 = vmax.f32 %v1995, 0.0
        %v2716 = vmax.f32 %v2000, 0.0
        %v2717 = vmax.f32 %v2003, 0.0
        %v2718 = vmax.f32 %v2008, 0.0
        %v2719 = vmax.f32 %v2011, 0.0
        %v2720 = vmax.f32 %v2016, 0.0
        %v2721 = vmax.f32 %v2019, 0.0
        %v2722 = vmax.f32 %v2024, 0.0
        %v2723 = vmax.f32 %v2027, 0.0
        %v2724 = vmax.f32 %v2032, 0.0
        %v2725 = vmax.f32 %v2035, 0.0
        %v2726 = vmax.f32 %v2040, 0.0
        %v2727 = vmax.f32 %v2043, 0.0
        %v2728 = vmax.f32 %v2048, 0.0
        %v2729 = vmax.f32 %v2051, 0.0
        %v2730 = vmax.f32 %v2056, 0.0
        %v2731 = vmax.f32 %v2059, 0.0
        %v2732 = vmax.f32 %v2064, 0.0
        %v2733 = vmax.f32 %v2067, 0.0
        %v2734 = vmax.f32 %v2072, 0.0
        %v2735 = vmax.f32 %v2075, 0.0
        %v2736 = vmax.f32 %v2080, 0.0
        %v2737 = vmax.f32 %v2083, 0.0
        %v2738 = vmax.f32 %v2088, 0.0
        %v2739 = vmax.f32 %v2091, 0.0
        %v2740 = vmax.f32 %v2096, 0.0
        %v2741 = vmax.f32 %v2099, 0.0
        %v2742 = vmax.f32 %v2104, 0.0
        %v2743 = vmax.f32 %v2107, 0.0
        %v2744 = vmax.f32 %v2112, 0.0
        %v2745 = vmax.f32 %v2115, 0.0
        %v2746 = vmax.f32 %v2120, 0.0
        %v2747 = vmax.f32 %v2123, 0.0
        %v2748 = vmax.f32 %v2128, 0.0
        %v2749 = vmax.f32 %v2131, 0.0
        %v2750 = vmax.f32 %v2136, 0.0
        %v2751 = vmax.f32 %v2139, 0.0
        %v2752 = vmax.f32 %v2144, 0.0
        %v2753 = vmax.f32 %v2147, 0.0
        %v2754 = vmax.f32 %v2152, 0.0
        %v2755 = vmax.f32 %v2155, 0.0
        %v2756 = vmax.f32 %v2160, 0.0
        %v2757 = vmax.f32 %v2163, 0.0
        %v2758 = vmax.f32 %v2168, 0.0
        %v2759 = vmax.f32 %v2171, 0.0
        %v2760 = vmax.f32 %v2176, 0.0
        %v2761 = vmax.f32 %v2179, 0.0
        %v2762 = vmax.f32 %v2184, 0.0
        %v2763 = vmax.f32 %v2187, 0.0
        %v2764 = vmax.f32 %v2192, 0.0
        %v2765 = vmax.f32 %v2195, 0.0
        %v2766 = vmax.f32 %v2200, 0.0
        %v2767 = vmax.f32 %v2203, 0.0
        %v2768 = vmax.f32 %v2208, 0.0
        %v2769 = vmax.f32 %v2211, 0.0
        %v2770 = vmax.f32 %v2216, 0.0
        %v2771 = vmax.f32 %v2219, 0.0
        %v2772 = vmax.f32 %v2224, 0.0
        %v2773 = vmax.f32 %v2227, 0.0
        %v2774 = vmax.f32 %v2232, 0.0
        %v2775 = vmax.f32 %v2235, 0.0
        %v2776 = vmax.f32 %v2240, 0.0
        %v2777 = vmax.f32 %v2243, 0.0
        %v2778 = vmax.f32 %v2248, 0.0
        %v2779 = vmax.f32 %v2251, 0.0
        %v2780 = vmax.f32 %v2256, 0.0
        %v2781 = vmax.f32 %v2259, 0.0
        %v2782 = vmax.f32 %v2264, 0.0
        %v2783 = vmax.f32 %v2267, 0.0
        %v2784 = vmax.f32 %v2272, 0.0
        %v2785 = vmax.f32 %v2275, 0.0
        %v2786 = vmax.f32 %v2280, 0.0
        %v2787 = vmax.f32 %v2283, 0.0
        %v2788 = vmax.f32 %v2288, 0.0
        %v2789 = vmax.f32 %v2291, 0.0
        %v2790 = vmax.f32 %v2296, 0.0
        %v2791 = vmax.f32 %v2299, 0.0
        %v2792 = vmax.f32 %v2304, 0.0
        %v2793 = vmax.f32 %v2307, 0.0
        %v2794 = vmax.f32 %v2312, 0.0
        %v2795 = vmax.f32 %v2315, 0.0
        %v2796 = vmax.f32 %v2320, 0.0
        %v2797 = vmax.f32 %v2323, 0.0
        %v2798 = vmax.f32 %v2328, 0.0
        %v2799 = vmax.f32 %v2331, 0.0
        %v2800 = vmax.f32 %v2336, 0.0
        %v2801 = vmax.f32 %v2339, 0.0
        %v2802 = vmax.f32 %v2344, 0.0
        %v2803 = vmax.f32 %v2347, 0.0
        %v2804 = vmax.f32 %v2352, 0.0
        %v2805 = vmax.f32 %v2355, 0.0
        %v2806 = vmax.f32 %v2360, 0.0
        %v2807 = vmax.f32 %v2363, 0.0
        %v2808 = vmax.f32 %v2368, 0.0
        %v2809 = vmax.f32 %v2371, 0.0
        %v2810 = vmax.f32 %v2376, 0.0
        %v2811 = vmax.f32 %v2379, 0.0
        %v2812 = vmax.f32 %v2384, 0.0
        %v2813 = vmax.f32 %v2387, 0.0
        %v2814 = vmax.f32 %v2392, 0.0
        %v2815 = vmax.f32 %v2395, 0.0
        %v2816 = vmax.f32 %v2400, 0.0
        %v2817 = vmax.f32 %v2403, 0.0
        %v2818 = vmax.f32 %v2408, 0.0
        %v2819 = vmax.f32 %v2411, 0.0
        %v2820 = vmax.f32 %v2416, 0.0
        %v2821 = vmax.f32 %v2419, 0.0
        %v2822 = vmax.f32 %v2424, 0.0
        %v2823 = vmax.f32 %v2427, 0.0
        %v2824 = vmax.f32 %v2432, 0.0
        %v2825 = vmax.f32 %v2435, 0.0
        %v2826 = vmax.f32 %v2440, 0.0
        %v2827 = vmax.f32 %v2443, 0.0
        %v2828 = vmax.f32 %v2448, 0.0
        %v2829 = vmax.f32 %v2451, 0.0
        %v2830 = vmax.f32 %v2456, 0.0
        %v2831 = vmax.f32 %v2459, 0.0
        %v2832 = vmax.f32 %v2464, 0.0
        %v2833 = vmax.f32 %v2467, 0.0
        %v2834 = vmax.f32 %v2472, 0.0
        %v2835 = vmax.f32 %v2475, 0.0
        %v2836 = vmax.f32 %v2480, 0.0
        %v2837 = vmax.f32 %v2483, 0.0
        %v2838 = vmax.f32 %v2488, 0.0
        %v2839 = vmax.f32 %v2491, 0.0
        %v2840 = vmax.f32 %v2496, 0.0
        %v2841 = vmax.f32 %v2499, 0.0
        %v2842 = vmax.f32 %v2504, 0.0
        %v2843 = vmax.f32 %v2507, 0.0
        %v2844 = vmax.f32 %v2512, 0.0
        %v2845 = vmax.f32 %v2515, 0.0
        %v2846 = vmax.f32 %v2520, 0.0
        %v2847 = vmax.f32 %v2523, 0.0
        %v2848 = vmax.f32 %v2528, 0.0
        %v2849 = vmax.f32 %v2531, 0.0
        %v2850 = vmax.f32 %v2536, 0.0
        %v2851 = vmax.f32 %v2539, 0.0
        %v2852 = vmax.f32 %v2544, 0.0
        %v2853 = vmax.f32 %v2547, 0.0
        %v2854 = vmax.f32 %v2552, 0.0
        %v2855 = vmax.f32 %v2555, 0.0
        %v2856 = vmax.f32 %v2560, 0.0
        %v2857 = vmax.f32 %v2563, 0.0
        %v2858 = vmax.f32 %v2568, 0.0
        %v2859 = vmax.f32 %v2571, 0.0
        %v2860 = vmax.f32 %v2576, 0.0
        %v2861 = vmax.f32 %v2579, 0.0
        %v2862 = vmax.f32 %v2584, 0.0
        %v2863 = vmax.f32 %v2587, 0.0
        %v2864 = vmax.f32 %v2592, 0.0
        %v2865 = vmax.f32 %v2595, 0.0
        %v2866 = vmax.f32 %v2600, 0.0
        %v2867 = vmax.f32 %v2603, 0.0
        %v2868 = vmax.f32 %v2608, 0.0
        %v2869 = vmax.f32 %v2611, 0.0
        %v2870 = vpack.c.bf16 %v2615, %v2614
        %v2871 = vpack.c.bf16 %v2617, %v2616
        %v2872 = vpack.c.bf16 %v2619, %v2618
        %v2873 = vpack.c.bf16 %v2621, %v2620
        %v2874 = vpack.c.bf16 %v2623, %v2622
        %v2875 = vpack.c.bf16 %v2625, %v2624
        %v2876 = vpack.c.bf16 %v2627, %v2626
        %v2877 = vpack.c.bf16 %v2629, %v2628
        %v2878 = vpack.c.bf16 %v2631, %v2630
        %v2879 = vpack.c.bf16 %v2633, %v2632
        %v2880 = vpack.c.bf16 %v2635, %v2634
        %v2881 = vpack.c.bf16 %v2637, %v2636
        %v2882 = vpack.c.bf16 %v2639, %v2638
        %v2883 = vpack.c.bf16 %v2641, %v2640
        %v2884 = vpack.c.bf16 %v2643, %v2642
        %v2885 = vpack.c.bf16 %v2645, %v2644
        %v2886 = vpack.c.bf16 %v2647, %v2646
        %v2887 = vpack.c.bf16 %v2649, %v2648
        %v2888 = vpack.c.bf16 %v2651, %v2650
        %v2889 = vpack.c.bf16 %v2653, %v2652
        %v2890 = vpack.c.bf16 %v2655, %v2654
        %v2891 = vpack.c.bf16 %v2657, %v2656
        %v2892 = vpack.c.bf16 %v2659, %v2658
        %v2893 = vpack.c.bf16 %v2661, %v2660
        %v2894 = vpack.c.bf16 %v2663, %v2662
        %v2895 = vpack.c.bf16 %v2665, %v2664
        %v2896 = vpack.c.bf16 %v2667, %v2666
        %v2897 = vpack.c.bf16 %v2669, %v2668
        %v2898 = vpack.c.bf16 %v2671, %v2670
        %v2899 = vpack.c.bf16 %v2673, %v2672
        %v2900 = vpack.c.bf16 %v2675, %v2674
        %v2901 = vpack.c.bf16 %v2677, %v2676
        %v2902 = vpack.c.bf16 %v2679, %v2678
        %v2903 = vpack.c.bf16 %v2681, %v2680
        %v2904 = vpack.c.bf16 %v2683, %v2682
        %v2905 = vpack.c.bf16 %v2685, %v2684
        %v2906 = vpack.c.bf16 %v2687, %v2686
        %v2907 = vpack.c.bf16 %v2689, %v2688
        %v2908 = vpack.c.bf16 %v2691, %v2690
        %v2909 = vpack.c.bf16 %v2693, %v2692
        %v2910 = vpack.c.bf16 %v2695, %v2694
        %v2911 = vpack.c.bf16 %v2697, %v2696
        %v2912 = vpack.c.bf16 %v2699, %v2698
        %v2913 = vpack.c.bf16 %v2701, %v2700
        %v2914 = vpack.c.bf16 %v2703, %v2702
        %v2915 = vpack.c.bf16 %v2705, %v2704
        %v2916 = vpack.c.bf16 %v2707, %v2706
        %v2917 = vpack.c.bf16 %v2709, %v2708
        %v2918 = vpack.c.bf16 %v2711, %v2710
        %v2919 = vpack.c.bf16 %v2713, %v2712
        %v2920 = vpack.c.bf16 %v2715, %v2714
        %v2921 = vpack.c.bf16 %v2717, %v2716
        %v2922 = vpack.c.bf16 %v2719, %v2718
        %v2923 = vpack.c.bf16 %v2721, %v2720
        %v2924 = vpack.c.bf16 %v2723, %v2722
        %v2925 = vpack.c.bf16 %v2725, %v2724
        %v2926 = vpack.c.bf16 %v2727, %v2726
        %v2927 = vpack.c.bf16 %v2729, %v2728
        %v2928 = vpack.c.bf16 %v2731, %v2730
        %v2929 = vpack.c.bf16 %v2733, %v2732
        %v2930 = vpack.c.bf16 %v2735, %v2734
        %v2931 = vpack.c.bf16 %v2737, %v2736
        %v2932 = vpack.c.bf16 %v2739, %v2738
        %v2933 = vpack.c.bf16 %v2741, %v2740
        %v2934 = vpack.c.bf16 %v2743, %v2742
        %v2935 = vpack.c.bf16 %v2745, %v2744
        %v2936 = vpack.c.bf16 %v2747, %v2746
        %v2937 = vpack.c.bf16 %v2749, %v2748
        %v2938 = vpack.c.bf16 %v2751, %v2750
        %v2939 = vpack.c.bf16 %v2753, %v2752
        %v2940 = vpack.c.bf16 %v2755, %v2754
        %v2941 = vpack.c.bf16 %v2757, %v2756
        %v2942 = vpack.c.bf16 %v2759, %v2758
        %v2943 = vpack.c.bf16 %v2761, %v2760
        %v2944 = vpack.c.bf16 %v2763, %v2762
        %v2945 = vpack.c.bf16 %v2765, %v2764
        %v2946 = vpack.c.bf16 %v2767, %v2766
        %v2947 = vpack.c.bf16 %v2769, %v2768
        %v2948 = vpack.c.bf16 %v2771, %v2770
        %v2949 = vpack.c.bf16 %v2773, %v2772
        %v2950 = vpack.c.bf16 %v2775, %v2774
        %v2951 = vpack.c.bf16 %v2777, %v2776
        %v2952 = vpack.c.bf16 %v2779, %v2778
        %v2953 = vpack.c.bf16 %v2781, %v2780
        %v2954 = vpack.c.bf16 %v2783, %v2782
        %v2955 = vpack.c.bf16 %v2785, %v2784
        %v2956 = vpack.c.bf16 %v2787, %v2786
        %v2957 = vpack.c.bf16 %v2789, %v2788
        %v2958 = vpack.c.bf16 %v2791, %v2790
        %v2959 = vpack.c.bf16 %v2793, %v2792
        %v2960 = vpack.c.bf16 %v2795, %v2794
        %v2961 = vpack.c.bf16 %v2797, %v2796
        %v2962 = vpack.c.bf16 %v2799, %v2798
        %v2963 = vpack.c.bf16 %v2801, %v2800
        %v2964 = vpack.c.bf16 %v2803, %v2802
        %v2965 = vpack.c.bf16 %v2805, %v2804
        %v2966 = vpack.c.bf16 %v2807, %v2806
        %v2967 = vpack.c.bf16 %v2809, %v2808
        %v2968 = vpack.c.bf16 %v2811, %v2810
        %v2969 = vpack.c.bf16 %v2813, %v2812
        %v2970 = vpack.c.bf16 %v2815, %v2814
        %v2971 = vpack.c.bf16 %v2817, %v2816
        %v2972 = vpack.c.bf16 %v2819, %v2818
        %v2973 = vpack.c.bf16 %v2821, %v2820
        %v2974 = vpack.c.bf16 %v2823, %v2822
        %v2975 = vpack.c.bf16 %v2825, %v2824
        %v2976 = vpack.c.bf16 %v2827, %v2826
        %v2977 = vpack.c.bf16 %v2829, %v2828
        %v2978 = vpack.c.bf16 %v2831, %v2830
        %v2979 = vpack.c.bf16 %v2833, %v2832
        %v2980 = vpack.c.bf16 %v2835, %v2834
        %v2981 = vpack.c.bf16 %v2837, %v2836
        %v2982 = vpack.c.bf16 %v2839, %v2838
        %v2983 = vpack.c.bf16 %v2841, %v2840
        %v2984 = vpack.c.bf16 %v2843, %v2842
        %v2985 = vpack.c.bf16 %v2845, %v2844
        %v2986 = vpack.c.bf16 %v2847, %v2846
        %v2987 = vpack.c.bf16 %v2849, %v2848
        %v2988 = vpack.c.bf16 %v2851, %v2850
        %v2989 = vpack.c.bf16 %v2853, %v2852
        %v2990 = vpack.c.bf16 %v2855, %v2854
        %v2991 = vpack.c.bf16 %v2857, %v2856
        %v2992 = vpack.c.bf16 %v2859, %v2858
        %v2993 = vpack.c.bf16 %v2861, %v2860
        %v2994 = vpack.c.bf16 %v2863, %v2862
        %v2995 = vpack.c.bf16 %v2865, %v2864
        %v2996 = vpack.c.bf16 %v2867, %v2866
        %v2997 = vpack.c.bf16 %v2869, %v2868
        %v3126 = vunpack.c.l.b16 %v2870
        %v3127 = vunpack.c.h.b16 %v2870
        %v3128 = vunpack.c.l.b16 %v2871
        %v3129 = vunpack.c.h.b16 %v2871
        %v3130 = vunpack.c.l.b16 %v2872
        %v3131 = vunpack.c.h.b16 %v2872
        %v3132 = vunpack.c.l.b16 %v2873
        %v3133 = vunpack.c.h.b16 %v2873
        %v3134 = vunpack.c.l.b16 %v2874
        %v3135 = vunpack.c.h.b16 %v2874
        %v3136 = vunpack.c.l.b16 %v2875
        %v3137 = vunpack.c.h.b16 %v2875
        %v3138 = vunpack.c.l.b16 %v2876
        %v3139 = vunpack.c.h.b16 %v2876
        %v3140 = vunpack.c.l.b16 %v2877
        %v3141 = vunpack.c.h.b16 %v2877
        %v3142 = vunpack.c.l.b16 %v2878
        %v3143 = vunpack.c.h.b16 %v2878
        %v3144 = vunpack.c.l.b16 %v2879
        %v3145 = vunpack.c.h.b16 %v2879
        %v3146 = vunpack.c.l.b16 %v2880
        %v3147 = vunpack.c.h.b16 %v2880
        %v3148 = vunpack.c.l.b16 %v2881
        %v3149 = vunpack.c.h.b16 %v2881
        %v3150 = vunpack.c.l.b16 %v2882
        %v3151 = vunpack.c.h.b16 %v2882
        %v3152 = vunpack.c.l.b16 %v2883
        %v3153 = vunpack.c.h.b16 %v2883
        %v3154 = vunpack.c.l.b16 %v2884
        %v3155 = vunpack.c.h.b16 %v2884
        %v3156 = vunpack.c.l.b16 %v2885
        %v3157 = vunpack.c.h.b16 %v2885
        %v3158 = vunpack.c.l.b16 %v2886
        %v3159 = vunpack.c.h.b16 %v2886
        %v3160 = vunpack.c.l.b16 %v2887
        %v3161 = vunpack.c.h.b16 %v2887
        %v3162 = vunpack.c.l.b16 %v2888
        %v3163 = vunpack.c.h.b16 %v2888
        %v3164 = vunpack.c.l.b16 %v2889
        %v3165 = vunpack.c.h.b16 %v2889
        %v3166 = vunpack.c.l.b16 %v2890
        %v3167 = vunpack.c.h.b16 %v2890
        %v3168 = vunpack.c.l.b16 %v2891
        %v3169 = vunpack.c.h.b16 %v2891
        %v3170 = vunpack.c.l.b16 %v2892
        %v3171 = vunpack.c.h.b16 %v2892
        %v3172 = vunpack.c.l.b16 %v2893
        %v3173 = vunpack.c.h.b16 %v2893
        %v3174 = vunpack.c.l.b16 %v2894
        %v3175 = vunpack.c.h.b16 %v2894
        %v3176 = vunpack.c.l.b16 %v2895
        %v3177 = vunpack.c.h.b16 %v2895
        %v3178 = vunpack.c.l.b16 %v2896
        %v3179 = vunpack.c.h.b16 %v2896
        %v3180 = vunpack.c.l.b16 %v2897
        %v3181 = vunpack.c.h.b16 %v2897
        %v3182 = vunpack.c.l.b16 %v2898
        %v3183 = vunpack.c.h.b16 %v2898
        %v3184 = vunpack.c.l.b16 %v2899
        %v3185 = vunpack.c.h.b16 %v2899
        %v3186 = vunpack.c.l.b16 %v2900
        %v3187 = vunpack.c.h.b16 %v2900
        %v3188 = vunpack.c.l.b16 %v2901
        %v3189 = vunpack.c.h.b16 %v2901
        %v3190 = vunpack.c.l.b16 %v2902
        %v3191 = vunpack.c.h.b16 %v2902
        %v3192 = vunpack.c.l.b16 %v2903
        %v3193 = vunpack.c.h.b16 %v2903
        %v3194 = vunpack.c.l.b16 %v2904
        %v3195 = vunpack.c.h.b16 %v2904
        %v3196 = vunpack.c.l.b16 %v2905
        %v3197 = vunpack.c.h.b16 %v2905
        %v3198 = vunpack.c.l.b16 %v2906
        %v3199 = vunpack.c.h.b16 %v2906
        %v3200 = vunpack.c.l.b16 %v2907
        %v3201 = vunpack.c.h.b16 %v2907
        %v3202 = vunpack.c.l.b16 %v2908
        %v3203 = vunpack.c.h.b16 %v2908
        %v3204 = vunpack.c.l.b16 %v2909
        %v3205 = vunpack.c.h.b16 %v2909
        %v3206 = vunpack.c.l.b16 %v2910
        %v3207 = vunpack.c.h.b16 %v2910
        %v3208 = vunpack.c.l.b16 %v2911
        %v3209 = vunpack.c.h.b16 %v2911
        %v3210 = vunpack.c.l.b16 %v2912
        %v3211 = vunpack.c.h.b16 %v2912
        %v3212 = vunpack.c.l.b16 %v2913
        %v3213 = vunpack.c.h.b16 %v2913
        %v3214 = vunpack.c.l.b16 %v2914
        %v3215 = vunpack.c.h.b16 %v2914
        %v3216 = vunpack.c.l.b16 %v2915
        %v3217 = vunpack.c.h.b16 %v2915
        %v3218 = vunpack.c.l.b16 %v2916
        %v3219 = vunpack.c.h.b16 %v2916
        %v3220 = vunpack.c.l.b16 %v2917
        %v3221 = vunpack.c.h.b16 %v2917
        %v3222 = vunpack.c.l.b16 %v2918
        %v3223 = vunpack.c.h.b16 %v2918
        %v3224 = vunpack.c.l.b16 %v2919
        %v3225 = vunpack.c.h.b16 %v2919
        %v3226 = vunpack.c.l.b16 %v2920
        %v3227 = vunpack.c.h.b16 %v2920
        %v3228 = vunpack.c.l.b16 %v2921
        %v3229 = vunpack.c.h.b16 %v2921
        %v3230 = vunpack.c.l.b16 %v2922
        %v3231 = vunpack.c.h.b16 %v2922
        %v3232 = vunpack.c.l.b16 %v2923
        %v3233 = vunpack.c.h.b16 %v2923
        %v3234 = vunpack.c.l.b16 %v2924
        %v3235 = vunpack.c.h.b16 %v2924
        %v3236 = vunpack.c.l.b16 %v2925
        %v3237 = vunpack.c.h.b16 %v2925
        %v3238 = vunpack.c.l.b16 %v2926
        %v3239 = vunpack.c.h.b16 %v2926
        %v3240 = vunpack.c.l.b16 %v2927
        %v3241 = vunpack.c.h.b16 %v2927
        %v3242 = vunpack.c.l.b16 %v2928
        %v3243 = vunpack.c.h.b16 %v2928
        %v3244 = vunpack.c.l.b16 %v2929
        %v3245 = vunpack.c.h.b16 %v2929
        %v3246 = vunpack.c.l.b16 %v2930
        %v3247 = vunpack.c.h.b16 %v2930
        %v3248 = vunpack.c.l.b16 %v2931
        %v3249 = vunpack.c.h.b16 %v2931
        %v3250 = vunpack.c.l.b16 %v2932
        %v3251 = vunpack.c.h.b16 %v2932
        %v3252 = vunpack.c.l.b16 %v2933
        %v3253 = vunpack.c.h.b16 %v2933
        %v3254 = vunpack.c.l.b16 %v2934
        %v3255 = vunpack.c.h.b16 %v2934
        %v3256 = vunpack.c.l.b16 %v2935
        %v3257 = vunpack.c.h.b16 %v2935
        %v3258 = vunpack.c.l.b16 %v2936
        %v3259 = vunpack.c.h.b16 %v2936
        %v3260 = vunpack.c.l.b16 %v2937
        %v3261 = vunpack.c.h.b16 %v2937
        %v3262 = vunpack.c.l.b16 %v2938
        %v3263 = vunpack.c.h.b16 %v2938
        %v3264 = vunpack.c.l.b16 %v2939
        %v3265 = vunpack.c.h.b16 %v2939
        %v3266 = vunpack.c.l.b16 %v2940
        %v3267 = vunpack.c.h.b16 %v2940
        %v3268 = vunpack.c.l.b16 %v2941
        %v3269 = vunpack.c.h.b16 %v2941
        %v3270 = vunpack.c.l.b16 %v2942
        %v3271 = vunpack.c.h.b16 %v2942
        %v3272 = vunpack.c.l.b16 %v2943
        %v3273 = vunpack.c.h.b16 %v2943
        %v3274 = vunpack.c.l.b16 %v2944
        %v3275 = vunpack.c.h.b16 %v2944
        %v3276 = vunpack.c.l.b16 %v2945
        %v3277 = vunpack.c.h.b16 %v2945
        %v3278 = vunpack.c.l.b16 %v2946
        %v3279 = vunpack.c.h.b16 %v2946
        %v3280 = vunpack.c.l.b16 %v2947
        %v3281 = vunpack.c.h.b16 %v2947
        %v3282 = vunpack.c.l.b16 %v2948
        %v3283 = vunpack.c.h.b16 %v2948
        %v3284 = vunpack.c.l.b16 %v2949
        %v3285 = vunpack.c.h.b16 %v2949
        %v3286 = vunpack.c.l.b16 %v2950
        %v3287 = vunpack.c.h.b16 %v2950
        %v3288 = vunpack.c.l.b16 %v2951
        %v3289 = vunpack.c.h.b16 %v2951
        %v3290 = vunpack.c.l.b16 %v2952
        %v3291 = vunpack.c.h.b16 %v2952
        %v3292 = vunpack.c.l.b16 %v2953
        %v3293 = vunpack.c.h.b16 %v2953
        %v3294 = vunpack.c.l.b16 %v2954
        %v3295 = vunpack.c.h.b16 %v2954
        %v3296 = vunpack.c.l.b16 %v2955
        %v3297 = vunpack.c.h.b16 %v2955
        %v3298 = vunpack.c.l.b16 %v2956
        %v3299 = vunpack.c.h.b16 %v2956
        %v3300 = vunpack.c.l.b16 %v2957
        %v3301 = vunpack.c.h.b16 %v2957
        %v3302 = vunpack.c.l.b16 %v2958
        %v3303 = vunpack.c.h.b16 %v2958
        %v3304 = vunpack.c.l.b16 %v2959
        %v3305 = vunpack.c.h.b16 %v2959
        %v3306 = vunpack.c.l.b16 %v2960
        %v3307 = vunpack.c.h.b16 %v2960
        %v3308 = vunpack.c.l.b16 %v2961
        %v3309 = vunpack.c.h.b16 %v2961
        %v3310 = vunpack.c.l.b16 %v2962
        %v3311 = vunpack.c.h.b16 %v2962
        %v3312 = vunpack.c.l.b16 %v2963
        %v3313 = vunpack.c.h.b16 %v2963
        %v3314 = vunpack.c.l.b16 %v2964
        %v3315 = vunpack.c.h.b16 %v2964
        %v3316 = vunpack.c.l.b16 %v2965
        %v3317 = vunpack.c.h.b16 %v2965
        %v3318 = vunpack.c.l.b16 %v2966
        %v3319 = vunpack.c.h.b16 %v2966
        %v3320 = vunpack.c.l.b16 %v2967
        %v3321 = vunpack.c.h.b16 %v2967
        %v3322 = vunpack.c.l.b16 %v2968
        %v3323 = vunpack.c.h.b16 %v2968
        %v3324 = vunpack.c.l.b16 %v2969
        %v3325 = vunpack.c.h.b16 %v2969
        %v3326 = vunpack.c.l.b16 %v2970
        %v3327 = vunpack.c.h.b16 %v2970
        %v3328 = vunpack.c.l.b16 %v2971
        %v3329 = vunpack.c.h.b16 %v2971
        %v3330 = vunpack.c.l.b16 %v2972
        %v3331 = vunpack.c.h.b16 %v2972
        %v3332 = vunpack.c.l.b16 %v2973
        %v3333 = vunpack.c.h.b16 %v2973
        %v3334 = vunpack.c.l.b16 %v2974
        %v3335 = vunpack.c.h.b16 %v2974
        %v3336 = vunpack.c.l.b16 %v2975
        %v3337 = vunpack.c.h.b16 %v2975
        %v3338 = vunpack.c.l.b16 %v2976
        %v3339 = vunpack.c.h.b16 %v2976
        %v3340 = vunpack.c.l.b16 %v2977
        %v3341 = vunpack.c.h.b16 %v2977
        %v3342 = vunpack.c.l.b16 %v2978
        %v3343 = vunpack.c.h.b16 %v2978
        %v3344 = vunpack.c.l.b16 %v2979
        %v3345 = vunpack.c.h.b16 %v2979
        %v3346 = vunpack.c.l.b16 %v2980
        %v3347 = vunpack.c.h.b16 %v2980
        %v3348 = vunpack.c.l.b16 %v2981
        %v3349 = vunpack.c.h.b16 %v2981
        %v3350 = vunpack.c.l.b16 %v2982
        %v3351 = vunpack.c.h.b16 %v2982
        %v3352 = vunpack.c.l.b16 %v2983
        %v3353 = vunpack.c.h.b16 %v2983
        %v3354 = vunpack.c.l.b16 %v2984
        %v3355 = vunpack.c.h.b16 %v2984
        %v3356 = vunpack.c.l.b16 %v2985
        %v3357 = vunpack.c.h.b16 %v2985
        %v3358 = vunpack.c.l.b16 %v2986
        %v3359 = vunpack.c.h.b16 %v2986
        %v3360 = vunpack.c.l.b16 %v2987
        %v3361 = vunpack.c.h.b16 %v2987
        %v3362 = vunpack.c.l.b16 %v2988
        %v3363 = vunpack.c.h.b16 %v2988
        %v3364 = vunpack.c.l.b16 %v2989
        %v3365 = vunpack.c.h.b16 %v2989
        %v3366 = vunpack.c.l.b16 %v2990
        %v3367 = vunpack.c.h.b16 %v2990
        %v3368 = vunpack.c.l.b16 %v2991
        %v3369 = vunpack.c.h.b16 %v2991
        %v3370 = vunpack.c.l.b16 %v2992
        %v3371 = vunpack.c.h.b16 %v2992
        %v3372 = vunpack.c.l.b16 %v2993
        %v3373 = vunpack.c.h.b16 %v2993
        %v3374 = vunpack.c.l.b16 %v2994
        %v3375 = vunpack.c.h.b16 %v2994
        %v3376 = vunpack.c.l.b16 %v2995
        %v3377 = vunpack.c.h.b16 %v2995
        %v3378 = vunpack.c.l.b16 %v2996
        %v3379 = vunpack.c.h.b16 %v2996
        %v3380 = vunpack.c.l.b16 %v2997
        %v3381 = vunpack.c.h.b16 %v2997
        %v3382 = vpack.c.b16 %v3126, %v3126
        %v3383 = vpack.c.b16 %v3127, %v3127
        %v3384 = vpack.c.b16 %v3128, %v3128
        %v3385 = vpack.c.b16 %v3129, %v3129
        %v3386 = vpack.c.b16 %v3130, %v3130
        %v3387 = vpack.c.b16 %v3131, %v3131
        %v3388 = vpack.c.b16 %v3132, %v3132
        %v3389 = vpack.c.b16 %v3133, %v3133
        %v3390 = vpack.c.b16 %v3134, %v3134
        %v3391 = vpack.c.b16 %v3135, %v3135
        %v3392 = vpack.c.b16 %v3136, %v3136
        %v3393 = vpack.c.b16 %v3137, %v3137
        %v3394 = vpack.c.b16 %v3138, %v3138
        %v3395 = vpack.c.b16 %v3139, %v3139
        %v3396 = vpack.c.b16 %v3140, %v3140
        %v3397 = vpack.c.b16 %v3141, %v3141
        %v3398 = vpack.c.b16 %v3142, %v3142
        %v3399 = vpack.c.b16 %v3143, %v3143
        %v3400 = vpack.c.b16 %v3144, %v3144
        %v3401 = vpack.c.b16 %v3145, %v3145
        %v3402 = vpack.c.b16 %v3146, %v3146
        %v3403 = vpack.c.b16 %v3147, %v3147
        %v3404 = vpack.c.b16 %v3148, %v3148
        %v3405 = vpack.c.b16 %v3149, %v3149
        %v3406 = vpack.c.b16 %v3150, %v3150
        %v3407 = vpack.c.b16 %v3151, %v3151
        %v3408 = vpack.c.b16 %v3152, %v3152
        %v3409 = vpack.c.b16 %v3153, %v3153
        %v3410 = vpack.c.b16 %v3154, %v3154
        %v3411 = vpack.c.b16 %v3155, %v3155
        %v3412 = vpack.c.b16 %v3156, %v3156
        %v3413 = vpack.c.b16 %v3157, %v3157
        %v3414 = vpack.c.b16 %v3158, %v3158
        %v3415 = vpack.c.b16 %v3159, %v3159
        %v3416 = vpack.c.b16 %v3160, %v3160
        %v3417 = vpack.c.b16 %v3161, %v3161
        %v3418 = vpack.c.b16 %v3162, %v3162
        %v3419 = vpack.c.b16 %v3163, %v3163
        %v3420 = vpack.c.b16 %v3164, %v3164
        %v3421 = vpack.c.b16 %v3165, %v3165
        %v3422 = vpack.c.b16 %v3166, %v3166
        %v3423 = vpack.c.b16 %v3167, %v3167
        %v3424 = vpack.c.b16 %v3168, %v3168
        %v3425 = vpack.c.b16 %v3169, %v3169
        %v3426 = vpack.c.b16 %v3170, %v3170
        %v3427 = vpack.c.b16 %v3171, %v3171
        %v3428 = vpack.c.b16 %v3172, %v3172
        %v3429 = vpack.c.b16 %v3173, %v3173
        %v3430 = vpack.c.b16 %v3174, %v3174
        %v3431 = vpack.c.b16 %v3175, %v3175
        %v3432 = vpack.c.b16 %v3176, %v3176
        %v3433 = vpack.c.b16 %v3177, %v3177
        %v3434 = vpack.c.b16 %v3178, %v3178
        %v3435 = vpack.c.b16 %v3179, %v3179
        %v3436 = vpack.c.b16 %v3180, %v3180
        %v3437 = vpack.c.b16 %v3181, %v3181
        %v3438 = vpack.c.b16 %v3182, %v3182
        %v3439 = vpack.c.b16 %v3183, %v3183
        %v3440 = vpack.c.b16 %v3184, %v3184
        %v3441 = vpack.c.b16 %v3185, %v3185
        %v3442 = vpack.c.b16 %v3186, %v3186
        %v3443 = vpack.c.b16 %v3187, %v3187
        %v3444 = vpack.c.b16 %v3188, %v3188
        %v3445 = vpack.c.b16 %v3189, %v3189
        %v3446 = vpack.c.b16 %v3190, %v3190
        %v3447 = vpack.c.b16 %v3191, %v3191
        %v3448 = vpack.c.b16 %v3192, %v3192
        %v3449 = vpack.c.b16 %v3193, %v3193
        %v3450 = vpack.c.b16 %v3194, %v3194
        %v3451 = vpack.c.b16 %v3195, %v3195
        %v3452 = vpack.c.b16 %v3196, %v3196
        %v3453 = vpack.c.b16 %v3197, %v3197
        %v3454 = vpack.c.b16 %v3198, %v3198
        %v3455 = vpack.c.b16 %v3199, %v3199
        %v3456 = vpack.c.b16 %v3200, %v3200
        %v3457 = vpack.c.b16 %v3201, %v3201
        %v3458 = vpack.c.b16 %v3202, %v3202
        %v3459 = vpack.c.b16 %v3203, %v3203
        %v3460 = vpack.c.b16 %v3204, %v3204
        %v3461 = vpack.c.b16 %v3205, %v3205
        %v3462 = vpack.c.b16 %v3206, %v3206
        %v3463 = vpack.c.b16 %v3207, %v3207
        %v3464 = vpack.c.b16 %v3208, %v3208
        %v3465 = vpack.c.b16 %v3209, %v3209
        %v3466 = vpack.c.b16 %v3210, %v3210
        %v3467 = vpack.c.b16 %v3211, %v3211
        %v3468 = vpack.c.b16 %v3212, %v3212
        %v3469 = vpack.c.b16 %v3213, %v3213
        %v3470 = vpack.c.b16 %v3214, %v3214
        %v3471 = vpack.c.b16 %v3215, %v3215
        %v3472 = vpack.c.b16 %v3216, %v3216
        %v3473 = vpack.c.b16 %v3217, %v3217
        %v3474 = vpack.c.b16 %v3218, %v3218
        %v3475 = vpack.c.b16 %v3219, %v3219
        %v3476 = vpack.c.b16 %v3220, %v3220
        %v3477 = vpack.c.b16 %v3221, %v3221
        %v3478 = vpack.c.b16 %v3222, %v3222
        %v3479 = vpack.c.b16 %v3223, %v3223
        %v3480 = vpack.c.b16 %v3224, %v3224
        %v3481 = vpack.c.b16 %v3225, %v3225
        %v3482 = vpack.c.b16 %v3226, %v3226
        %v3483 = vpack.c.b16 %v3227, %v3227
        %v3484 = vpack.c.b16 %v3228, %v3228
        %v3485 = vpack.c.b16 %v3229, %v3229
        %v3486 = vpack.c.b16 %v3230, %v3230
        %v3487 = vpack.c.b16 %v3231, %v3231
        %v3488 = vpack.c.b16 %v3232, %v3232
        %v3489 = vpack.c.b16 %v3233, %v3233
        %v3490 = vpack.c.b16 %v3234, %v3234
        %v3491 = vpack.c.b16 %v3235, %v3235
        %v3492 = vpack.c.b16 %v3236, %v3236
        %v3493 = vpack.c.b16 %v3237, %v3237
        %v3494 = vpack.c.b16 %v3238, %v3238
        %v3495 = vpack.c.b16 %v3239, %v3239
        %v3496 = vpack.c.b16 %v3240, %v3240
        %v3497 = vpack.c.b16 %v3241, %v3241
        %v3498 = vpack.c.b16 %v3242, %v3242
        %v3499 = vpack.c.b16 %v3243, %v3243
        %v3500 = vpack.c.b16 %v3244, %v3244
        %v3501 = vpack.c.b16 %v3245, %v3245
        %v3502 = vpack.c.b16 %v3246, %v3246
        %v3503 = vpack.c.b16 %v3247, %v3247
        %v3504 = vpack.c.b16 %v3248, %v3248
        %v3505 = vpack.c.b16 %v3249, %v3249
        %v3506 = vpack.c.b16 %v3250, %v3250
        %v3507 = vpack.c.b16 %v3251, %v3251
        %v3508 = vpack.c.b16 %v3252, %v3252
        %v3509 = vpack.c.b16 %v3253, %v3253
        %v3510 = vpack.c.b16 %v3254, %v3254
        %v3511 = vpack.c.b16 %v3255, %v3255
        %v3512 = vpack.c.b16 %v3256, %v3256
        %v3513 = vpack.c.b16 %v3257, %v3257
        %v3514 = vpack.c.b16 %v3258, %v3258
        %v3515 = vpack.c.b16 %v3259, %v3259
        %v3516 = vpack.c.b16 %v3260, %v3260
        %v3517 = vpack.c.b16 %v3261, %v3261
        %v3518 = vpack.c.b16 %v3262, %v3262
        %v3519 = vpack.c.b16 %v3263, %v3263
        %v3520 = vpack.c.b16 %v3264, %v3264
        %v3521 = vpack.c.b16 %v3265, %v3265
        %v3522 = vpack.c.b16 %v3266, %v3266
        %v3523 = vpack.c.b16 %v3267, %v3267
        %v3524 = vpack.c.b16 %v3268, %v3268
        %v3525 = vpack.c.b16 %v3269, %v3269
        %v3526 = vpack.c.b16 %v3270, %v3270
        %v3527 = vpack.c.b16 %v3271, %v3271
        %v3528 = vpack.c.b16 %v3272, %v3272
        %v3529 = vpack.c.b16 %v3273, %v3273
        %v3530 = vpack.c.b16 %v3274, %v3274
        %v3531 = vpack.c.b16 %v3275, %v3275
        %v3532 = vpack.c.b16 %v3276, %v3276
        %v3533 = vpack.c.b16 %v3277, %v3277
        %v3534 = vpack.c.b16 %v3278, %v3278
        %v3535 = vpack.c.b16 %v3279, %v3279
        %v3536 = vpack.c.b16 %v3280, %v3280
        %v3537 = vpack.c.b16 %v3281, %v3281
        %v3538 = vpack.c.b16 %v3282, %v3282
        %v3539 = vpack.c.b16 %v3283, %v3283
        %v3540 = vpack.c.b16 %v3284, %v3284
        %v3541 = vpack.c.b16 %v3285, %v3285
        %v3542 = vpack.c.b16 %v3286, %v3286
        %v3543 = vpack.c.b16 %v3287, %v3287
        %v3544 = vpack.c.b16 %v3288, %v3288
        %v3545 = vpack.c.b16 %v3289, %v3289
        %v3546 = vpack.c.b16 %v3290, %v3290
        %v3547 = vpack.c.b16 %v3291, %v3291
        %v3548 = vpack.c.b16 %v3292, %v3292
        %v3549 = vpack.c.b16 %v3293, %v3293
        %v3550 = vpack.c.b16 %v3294, %v3294
        %v3551 = vpack.c.b16 %v3295, %v3295
        %v3552 = vpack.c.b16 %v3296, %v3296
        %v3553 = vpack.c.b16 %v3297, %v3297
        %v3554 = vpack.c.b16 %v3298, %v3298
        %v3555 = vpack.c.b16 %v3299, %v3299
        %v3556 = vpack.c.b16 %v3300, %v3300
        %v3557 = vpack.c.b16 %v3301, %v3301
        %v3558 = vpack.c.b16 %v3302, %v3302
        %v3559 = vpack.c.b16 %v3303, %v3303
        %v3560 = vpack.c.b16 %v3304, %v3304
        %v3561 = vpack.c.b16 %v3305, %v3305
        %v3562 = vpack.c.b16 %v3306, %v3306
        %v3563 = vpack.c.b16 %v3307, %v3307
        %v3564 = vpack.c.b16 %v3308, %v3308
        %v3565 = vpack.c.b16 %v3309, %v3309
        %v3566 = vpack.c.b16 %v3310, %v3310
        %v3567 = vpack.c.b16 %v3311, %v3311
        %v3568 = vpack.c.b16 %v3312, %v3312
        %v3569 = vpack.c.b16 %v3313, %v3313
        %v3570 = vpack.c.b16 %v3314, %v3314
        %v3571 = vpack.c.b16 %v3315, %v3315
        %v3572 = vpack.c.b16 %v3316, %v3316
        %v3573 = vpack.c.b16 %v3317, %v3317
        %v3574 = vpack.c.b16 %v3318, %v3318
        %v3575 = vpack.c.b16 %v3319, %v3319
        %v3576 = vpack.c.b16 %v3320, %v3320
        %v3577 = vpack.c.b16 %v3321, %v3321
        %v3578 = vpack.c.b16 %v3322, %v3322
        %v3579 = vpack.c.b16 %v3323, %v3323
        %v3580 = vpack.c.b16 %v3324, %v3324
        %v3581 = vpack.c.b16 %v3325, %v3325
        %v3582 = vpack.c.b16 %v3326, %v3326
        %v3583 = vpack.c.b16 %v3327, %v3327
        %v3584 = vpack.c.b16 %v3328, %v3328
        %v3585 = vpack.c.b16 %v3329, %v3329
        %v3586 = vpack.c.b16 %v3330, %v3330
        %v3587 = vpack.c.b16 %v3331, %v3331
        %v3588 = vpack.c.b16 %v3332, %v3332
        %v3589 = vpack.c.b16 %v3333, %v3333
        %v3590 = vpack.c.b16 %v3334, %v3334
        %v3591 = vpack.c.b16 %v3335, %v3335
        %v3592 = vpack.c.b16 %v3336, %v3336
        %v3593 = vpack.c.b16 %v3337, %v3337
        %v3594 = vpack.c.b16 %v3338, %v3338
        %v3595 = vpack.c.b16 %v3339, %v3339
        %v3596 = vpack.c.b16 %v3340, %v3340
        %v3597 = vpack.c.b16 %v3341, %v3341
        %v3598 = vpack.c.b16 %v3342, %v3342
        %v3599 = vpack.c.b16 %v3343, %v3343
        %v3600 = vpack.c.b16 %v3344, %v3344
        %v3601 = vpack.c.b16 %v3345, %v3345
        %v3602 = vpack.c.b16 %v3346, %v3346
        %v3603 = vpack.c.b16 %v3347, %v3347
        %v3604 = vpack.c.b16 %v3348, %v3348
        %v3605 = vpack.c.b16 %v3349, %v3349
        %v3606 = vpack.c.b16 %v3350, %v3350
        %v3607 = vpack.c.b16 %v3351, %v3351
        %v3608 = vpack.c.b16 %v3352, %v3352
        %v3609 = vpack.c.b16 %v3353, %v3353
        %v3610 = vpack.c.b16 %v3354, %v3354
        %v3611 = vpack.c.b16 %v3355, %v3355
        %v3612 = vpack.c.b16 %v3356, %v3356
        %v3613 = vpack.c.b16 %v3357, %v3357
        %v3614 = vpack.c.b16 %v3358, %v3358
        %v3615 = vpack.c.b16 %v3359, %v3359
        %v3616 = vpack.c.b16 %v3360, %v3360
        %v3617 = vpack.c.b16 %v3361, %v3361
        %v3618 = vpack.c.b16 %v3362, %v3362
        %v3619 = vpack.c.b16 %v3363, %v3363
        %v3620 = vpack.c.b16 %v3364, %v3364
        %v3621 = vpack.c.b16 %v3365, %v3365
        %v3622 = vpack.c.b16 %v3366, %v3366
        %v3623 = vpack.c.b16 %v3367, %v3367
        %v3624 = vpack.c.b16 %v3368, %v3368
        %v3625 = vpack.c.b16 %v3369, %v3369
        %v3626 = vpack.c.b16 %v3370, %v3370
        %v3627 = vpack.c.b16 %v3371, %v3371
        %v3628 = vpack.c.b16 %v3372, %v3372
        %v3629 = vpack.c.b16 %v3373, %v3373
        %v3630 = vpack.c.b16 %v3374, %v3374
        %v3631 = vpack.c.b16 %v3375, %v3375
        %v3632 = vpack.c.b16 %v3376, %v3376
        %v3633 = vpack.c.b16 %v3377, %v3377
        %v3634 = vpack.c.b16 %v3378, %v3378
        %v3635 = vpack.c.b16 %v3379, %v3379
        %v3636 = vpack.c.b16 %v3380, %v3380
        %v3637 = vpack.c.b16 %v3381, %v3381
        %vm3894 = vcmask 257024
        %3895 = vst.msk [vmem:[%s228] sm:$0xf] %vm3894, %v3382
        %3896 = vst.msk [vmem:[%s228 + $0x4] sm:$0xf] %vm3894, %v3383
        %3897 = vst.msk [vmem:[%s228 + $0x8] sm:$0xf] %vm3894, %v3384
        %3898 = vst.msk [vmem:[%s228 + $0xc] sm:$0xf] %vm3894, %v3385
        %3899 = vst.msk [vmem:[%s228 + $0x10] sm:$0xf] %vm3894, %v3386
        %3900 = vst.msk [vmem:[%s228 + $0x14] sm:$0xf] %vm3894, %v3387
        %3901 = vst.msk [vmem:[%s228 + $0x18] sm:$0xf] %vm3894, %v3388
        %3902 = vst.msk [vmem:[%s228 + $0x1c] sm:$0xf] %vm3894, %v3389
        %3903 = vst.msk [vmem:[%s228 + $0x20] sm:$0xf] %vm3894, %v3390
        %3904 = vst.msk [vmem:[%s228 + $0x24] sm:$0xf] %vm3894, %v3391
        %3905 = vst.msk [vmem:[%s228 + $0x28] sm:$0xf] %vm3894, %v3392
        %3906 = vst.msk [vmem:[%s228 + $0x2c] sm:$0xf] %vm3894, %v3393
        %3907 = vst.msk [vmem:[%s228 + $0x30] sm:$0xf] %vm3894, %v3394
        %3908 = vst.msk [vmem:[%s228 + $0x34] sm:$0xf] %vm3894, %v3395
        %3909 = vst.msk [vmem:[%s228 + $0x38] sm:$0xf] %vm3894, %v3396
        %3910 = vst.msk [vmem:[%s228 + $0x3c] sm:$0xf] %vm3894, %v3397
        %3911 = vst.msk [vmem:[%s228 + $0x40] sm:$0xf] %vm3894, %v3398
        %3912 = vst.msk [vmem:[%s228 + $0x44] sm:$0xf] %vm3894, %v3399
        %3913 = vst.msk [vmem:[%s228 + $0x48] sm:$0xf] %vm3894, %v3400
        %3914 = vst.msk [vmem:[%s228 + $0x4c] sm:$0xf] %vm3894, %v3401
        %3915 = vst.msk [vmem:[%s228 + $0x50] sm:$0xf] %vm3894, %v3402
        %3916 = vst.msk [vmem:[%s228 + $0x54] sm:$0xf] %vm3894, %v3403
        %3917 = vst.msk [vmem:[%s228 + $0x58] sm:$0xf] %vm3894, %v3404
        %3918 = vst.msk [vmem:[%s228 + $0x5c] sm:$0xf] %vm3894, %v3405
        %3919 = vst.msk [vmem:[%s228 + $0x60] sm:$0xf] %vm3894, %v3406
        %3920 = vst.msk [vmem:[%s228 + $0x64] sm:$0xf] %vm3894, %v3407
        %3921 = vst.msk [vmem:[%s228 + $0x68] sm:$0xf] %vm3894, %v3408
        %3922 = vst.msk [vmem:[%s228 + $0x6c] sm:$0xf] %vm3894, %v3409
        %3923 = vst.msk [vmem:[%s228 + $0x70] sm:$0xf] %vm3894, %v3410
        %3924 = vst.msk [vmem:[%s228 + $0x74] sm:$0xf] %vm3894, %v3411
        %3925 = vst.msk [vmem:[%s228 + $0x78] sm:$0xf] %vm3894, %v3412
        %3926 = vst.msk [vmem:[%s228 + $0x7c] sm:$0xf] %vm3894, %v3413
        %3927 = vst.msk [vmem:[%s228 + $0x80] sm:$0xf] %vm3894, %v3414
        %3928 = vst.msk [vmem:[%s228 + $0x84] sm:$0xf] %vm3894, %v3415
        %3929 = vst.msk [vmem:[%s228 + $0x88] sm:$0xf] %vm3894, %v3416
        %3930 = vst.msk [vmem:[%s228 + $0x8c] sm:$0xf] %vm3894, %v3417
        %3931 = vst.msk [vmem:[%s228 + $0x90] sm:$0xf] %vm3894, %v3418
        %3932 = vst.msk [vmem:[%s228 + $0x94] sm:$0xf] %vm3894, %v3419
        %3933 = vst.msk [vmem:[%s228 + $0x98] sm:$0xf] %vm3894, %v3420
        %3934 = vst.msk [vmem:[%s228 + $0x9c] sm:$0xf] %vm3894, %v3421
        %3935 = vst.msk [vmem:[%s228 + $0xa0] sm:$0xf] %vm3894, %v3422
        %3936 = vst.msk [vmem:[%s228 + $0xa4] sm:$0xf] %vm3894, %v3423
        %3937 = vst.msk [vmem:[%s228 + $0xa8] sm:$0xf] %vm3894, %v3424
        %3938 = vst.msk [vmem:[%s228 + $0xac] sm:$0xf] %vm3894, %v3425
        %3939 = vst.msk [vmem:[%s228 + $0xb0] sm:$0xf] %vm3894, %v3426
        %3940 = vst.msk [vmem:[%s228 + $0xb4] sm:$0xf] %vm3894, %v3427
        %3941 = vst.msk [vmem:[%s228 + $0xb8] sm:$0xf] %vm3894, %v3428
        %3942 = vst.msk [vmem:[%s228 + $0xbc] sm:$0xf] %vm3894, %v3429
        %3943 = vst.msk [vmem:[%s228 + $0xc0] sm:$0xf] %vm3894, %v3430
        %3944 = vst.msk [vmem:[%s228 + $0xc4] sm:$0xf] %vm3894, %v3431
        %3945 = vst.msk [vmem:[%s228 + $0xc8] sm:$0xf] %vm3894, %v3432
        %3946 = vst.msk [vmem:[%s228 + $0xcc] sm:$0xf] %vm3894, %v3433
        %3947 = vst.msk [vmem:[%s228 + $0xd0] sm:$0xf] %vm3894, %v3434
        %3948 = vst.msk [vmem:[%s228 + $0xd4] sm:$0xf] %vm3894, %v3435
        %3949 = vst.msk [vmem:[%s228 + $0xd8] sm:$0xf] %vm3894, %v3436
        %3950 = vst.msk [vmem:[%s228 + $0xdc] sm:$0xf] %vm3894, %v3437
        %3951 = vst.msk [vmem:[%s228 + $0xe0] sm:$0xf] %vm3894, %v3438
        %3952 = vst.msk [vmem:[%s228 + $0xe4] sm:$0xf] %vm3894, %v3439
        %3953 = vst.msk [vmem:[%s228 + $0xe8] sm:$0xf] %vm3894, %v3440
        %3954 = vst.msk [vmem:[%s228 + $0xec] sm:$0xf] %vm3894, %v3441
        %3955 = vst.msk [vmem:[%s228 + $0xf0] sm:$0xf] %vm3894, %v3442
        %3956 = vst.msk [vmem:[%s228 + $0xf4] sm:$0xf] %vm3894, %v3443
        %3957 = vst.msk [vmem:[%s228 + $0xf8] sm:$0xf] %vm3894, %v3444
        %3958 = vst.msk [vmem:[%s228 + $0xfc] sm:$0xf] %vm3894, %v3445
        %3959 = vst.msk [vmem:[%s228 + $0x100] sm:$0xf] %vm3894, %v3446
        %3960 = vst.msk [vmem:[%s228 + $0x104] sm:$0xf] %vm3894, %v3447
        %3961 = vst.msk [vmem:[%s228 + $0x108] sm:$0xf] %vm3894, %v3448
        %3962 = vst.msk [vmem:[%s228 + $0x10c] sm:$0xf] %vm3894, %v3449
        %3963 = vst.msk [vmem:[%s228 + $0x110] sm:$0xf] %vm3894, %v3450
        %3964 = vst.msk [vmem:[%s228 + $0x114] sm:$0xf] %vm3894, %v3451
        %3965 = vst.msk [vmem:[%s228 + $0x118] sm:$0xf] %vm3894, %v3452
        %3966 = vst.msk [vmem:[%s228 + $0x11c] sm:$0xf] %vm3894, %v3453
        %3967 = vst.msk [vmem:[%s228 + $0x120] sm:$0xf] %vm3894, %v3454
        %3968 = vst.msk [vmem:[%s228 + $0x124] sm:$0xf] %vm3894, %v3455
        %3969 = vst.msk [vmem:[%s228 + $0x128] sm:$0xf] %vm3894, %v3456
        %3970 = vst.msk [vmem:[%s228 + $0x12c] sm:$0xf] %vm3894, %v3457
        %3971 = vst.msk [vmem:[%s228 + $0x130] sm:$0xf] %vm3894, %v3458
        %3972 = vst.msk [vmem:[%s228 + $0x134] sm:$0xf] %vm3894, %v3459
        %3973 = vst.msk [vmem:[%s228 + $0x138] sm:$0xf] %vm3894, %v3460
        %3974 = vst.msk [vmem:[%s228 + $0x13c] sm:$0xf] %vm3894, %v3461
        %3975 = vst.msk [vmem:[%s228 + $0x140] sm:$0xf] %vm3894, %v3462
        %3976 = vst.msk [vmem:[%s228 + $0x144] sm:$0xf] %vm3894, %v3463
        %3977 = vst.msk [vmem:[%s228 + $0x148] sm:$0xf] %vm3894, %v3464
        %3978 = vst.msk [vmem:[%s228 + $0x14c] sm:$0xf] %vm3894, %v3465
        %3979 = vst.msk [vmem:[%s228 + $0x150] sm:$0xf] %vm3894, %v3466
        %3980 = vst.msk [vmem:[%s228 + $0x154] sm:$0xf] %vm3894, %v3467
        %3981 = vst.msk [vmem:[%s228 + $0x158] sm:$0xf] %vm3894, %v3468
        %3982 = vst.msk [vmem:[%s228 + $0x15c] sm:$0xf] %vm3894, %v3469
        %3983 = vst.msk [vmem:[%s228 + $0x160] sm:$0xf] %vm3894, %v3470
        %3984 = vst.msk [vmem:[%s228 + $0x164] sm:$0xf] %vm3894, %v3471
        %3985 = vst.msk [vmem:[%s228 + $0x168] sm:$0xf] %vm3894, %v3472
        %3986 = vst.msk [vmem:[%s228 + $0x16c] sm:$0xf] %vm3894, %v3473
        %3987 = vst.msk [vmem:[%s228 + $0x170] sm:$0xf] %vm3894, %v3474
        %3988 = vst.msk [vmem:[%s228 + $0x174] sm:$0xf] %vm3894, %v3475
        %3989 = vst.msk [vmem:[%s228 + $0x178] sm:$0xf] %vm3894, %v3476
        %3990 = vst.msk [vmem:[%s228 + $0x17c] sm:$0xf] %vm3894, %v3477
        %3991 = vst.msk [vmem:[%s228 + $0x180] sm:$0xf] %vm3894, %v3478
        %3992 = vst.msk [vmem:[%s228 + $0x184] sm:$0xf] %vm3894, %v3479
        %3993 = vst.msk [vmem:[%s228 + $0x188] sm:$0xf] %vm3894, %v3480
        %3994 = vst.msk [vmem:[%s228 + $0x18c] sm:$0xf] %vm3894, %v3481
        %3995 = vst.msk [vmem:[%s228 + $0x190] sm:$0xf] %vm3894, %v3482
        %3996 = vst.msk [vmem:[%s228 + $0x194] sm:$0xf] %vm3894, %v3483
        %3997 = vst.msk [vmem:[%s228 + $0x198] sm:$0xf] %vm3894, %v3484
        %3998 = vst.msk [vmem:[%s228 + $0x19c] sm:$0xf] %vm3894, %v3485
        %3999 = vst.msk [vmem:[%s228 + $0x1a0] sm:$0xf] %vm3894, %v3486
        %4000 = vst.msk [vmem:[%s228 + $0x1a4] sm:$0xf] %vm3894, %v3487
        %4001 = vst.msk [vmem:[%s228 + $0x1a8] sm:$0xf] %vm3894, %v3488
        %4002 = vst.msk [vmem:[%s228 + $0x1ac] sm:$0xf] %vm3894, %v3489
        %4003 = vst.msk [vmem:[%s228 + $0x1b0] sm:$0xf] %vm3894, %v3490
        %4004 = vst.msk [vmem:[%s228 + $0x1b4] sm:$0xf] %vm3894, %v3491
        %4005 = vst.msk [vmem:[%s228 + $0x1b8] sm:$0xf] %vm3894, %v3492
        %4006 = vst.msk [vmem:[%s228 + $0x1bc] sm:$0xf] %vm3894, %v3493
        %4007 = vst.msk [vmem:[%s228 + $0x1c0] sm:$0xf] %vm3894, %v3494
        %4008 = vst.msk [vmem:[%s228 + $0x1c4] sm:$0xf] %vm3894, %v3495
        %4009 = vst.msk [vmem:[%s228 + $0x1c8] sm:$0xf] %vm3894, %v3496
        %4010 = vst.msk [vmem:[%s228 + $0x1cc] sm:$0xf] %vm3894, %v3497
        %4011 = vst.msk [vmem:[%s228 + $0x1d0] sm:$0xf] %vm3894, %v3498
        %4012 = vst.msk [vmem:[%s228 + $0x1d4] sm:$0xf] %vm3894, %v3499
        %4013 = vst.msk [vmem:[%s228 + $0x1d8] sm:$0xf] %vm3894, %v3500
        %4014 = vst.msk [vmem:[%s228 + $0x1dc] sm:$0xf] %vm3894, %v3501
        %4015 = vst.msk [vmem:[%s228 + $0x1e0] sm:$0xf] %vm3894, %v3502
        %4016 = vst.msk [vmem:[%s228 + $0x1e4] sm:$0xf] %vm3894, %v3503
        %4017 = vst.msk [vmem:[%s228 + $0x1e8] sm:$0xf] %vm3894, %v3504
        %4018 = vst.msk [vmem:[%s228 + $0x1ec] sm:$0xf] %vm3894, %v3505
        %4019 = vst.msk [vmem:[%s228 + $0x1f0] sm:$0xf] %vm3894, %v3506
        %4020 = vst.msk [vmem:[%s228 + $0x1f4] sm:$0xf] %vm3894, %v3507
        %4021 = vst.msk [vmem:[%s228 + $0x1f8] sm:$0xf] %vm3894, %v3508
        %4022 = vst.msk [vmem:[%s228 + $0x1fc] sm:$0xf] %vm3894, %v3509
        %4023 = vst.msk [vmem:[%s228 + $0x200] sm:$0xf] %vm3894, %v3510
        %4024 = vst.msk [vmem:[%s228 + $0x204] sm:$0xf] %vm3894, %v3511
        %4025 = vst.msk [vmem:[%s228 + $0x208] sm:$0xf] %vm3894, %v3512
        %4026 = vst.msk [vmem:[%s228 + $0x20c] sm:$0xf] %vm3894, %v3513
        %4027 = vst.msk [vmem:[%s228 + $0x210] sm:$0xf] %vm3894, %v3514
        %4028 = vst.msk [vmem:[%s228 + $0x214] sm:$0xf] %vm3894, %v3515
        %4029 = vst.msk [vmem:[%s228 + $0x218] sm:$0xf] %vm3894, %v3516
        %4030 = vst.msk [vmem:[%s228 + $0x21c] sm:$0xf] %vm3894, %v3517
        %4031 = vst.msk [vmem:[%s228 + $0x220] sm:$0xf] %vm3894, %v3518
        %4032 = vst.msk [vmem:[%s228 + $0x224] sm:$0xf] %vm3894, %v3519
        %4033 = vst.msk [vmem:[%s228 + $0x228] sm:$0xf] %vm3894, %v3520
        %4034 = vst.msk [vmem:[%s228 + $0x22c] sm:$0xf] %vm3894, %v3521
        %4035 = vst.msk [vmem:[%s228 + $0x230] sm:$0xf] %vm3894, %v3522
        %4036 = vst.msk [vmem:[%s228 + $0x234] sm:$0xf] %vm3894, %v3523
        %4037 = vst.msk [vmem:[%s228 + $0x238] sm:$0xf] %vm3894, %v3524
        %4038 = vst.msk [vmem:[%s228 + $0x23c] sm:$0xf] %vm3894, %v3525
        %4039 = vst.msk [vmem:[%s228 + $0x240] sm:$0xf] %vm3894, %v3526
        %4040 = vst.msk [vmem:[%s228 + $0x244] sm:$0xf] %vm3894, %v3527
        %4041 = vst.msk [vmem:[%s228 + $0x248] sm:$0xf] %vm3894, %v3528
        %4042 = vst.msk [vmem:[%s228 + $0x24c] sm:$0xf] %vm3894, %v3529
        %4043 = vst.msk [vmem:[%s228 + $0x250] sm:$0xf] %vm3894, %v3530
        %4044 = vst.msk [vmem:[%s228 + $0x254] sm:$0xf] %vm3894, %v3531
        %4045 = vst.msk [vmem:[%s228 + $0x258] sm:$0xf] %vm3894, %v3532
        %4046 = vst.msk [vmem:[%s228 + $0x25c] sm:$0xf] %vm3894, %v3533
        %4047 = vst.msk [vmem:[%s228 + $0x260] sm:$0xf] %vm3894, %v3534
        %4048 = vst.msk [vmem:[%s228 + $0x264] sm:$0xf] %vm3894, %v3535
        %4049 = vst.msk [vmem:[%s228 + $0x268] sm:$0xf] %vm3894, %v3536
        %4050 = vst.msk [vmem:[%s228 + $0x26c] sm:$0xf] %vm3894, %v3537
        %4051 = vst.msk [vmem:[%s228 + $0x270] sm:$0xf] %vm3894, %v3538
        %4052 = vst.msk [vmem:[%s228 + $0x274] sm:$0xf] %vm3894, %v3539
        %4053 = vst.msk [vmem:[%s228 + $0x278] sm:$0xf] %vm3894, %v3540
        %4054 = vst.msk [vmem:[%s228 + $0x27c] sm:$0xf] %vm3894, %v3541
        %4055 = vst.msk [vmem:[%s228 + $0x280] sm:$0xf] %vm3894, %v3542
        %4056 = vst.msk [vmem:[%s228 + $0x284] sm:$0xf] %vm3894, %v3543
        %4057 = vst.msk [vmem:[%s228 + $0x288] sm:$0xf] %vm3894, %v3544
        %4058 = vst.msk [vmem:[%s228 + $0x28c] sm:$0xf] %vm3894, %v3545
        %4059 = vst.msk [vmem:[%s228 + $0x290] sm:$0xf] %vm3894, %v3546
        %4060 = vst.msk [vmem:[%s228 + $0x294] sm:$0xf] %vm3894, %v3547
        %4061 = vst.msk [vmem:[%s228 + $0x298] sm:$0xf] %vm3894, %v3548
        %4062 = vst.msk [vmem:[%s228 + $0x29c] sm:$0xf] %vm3894, %v3549
        %4063 = vst.msk [vmem:[%s228 + $0x2a0] sm:$0xf] %vm3894, %v3550
        %4064 = vst.msk [vmem:[%s228 + $0x2a4] sm:$0xf] %vm3894, %v3551
        %4065 = vst.msk [vmem:[%s228 + $0x2a8] sm:$0xf] %vm3894, %v3552
        %4066 = vst.msk [vmem:[%s228 + $0x2ac] sm:$0xf] %vm3894, %v3553
        %4067 = vst.msk [vmem:[%s228 + $0x2b0] sm:$0xf] %vm3894, %v3554
        %4068 = vst.msk [vmem:[%s228 + $0x2b4] sm:$0xf] %vm3894, %v3555
        %4069 = vst.msk [vmem:[%s228 + $0x2b8] sm:$0xf] %vm3894, %v3556
        %4070 = vst.msk [vmem:[%s228 + $0x2bc] sm:$0xf] %vm3894, %v3557
        %4071 = vst.msk [vmem:[%s228 + $0x2c0] sm:$0xf] %vm3894, %v3558
        %4072 = vst.msk [vmem:[%s228 + $0x2c4] sm:$0xf] %vm3894, %v3559
        %4073 = vst.msk [vmem:[%s228 + $0x2c8] sm:$0xf] %vm3894, %v3560
        %4074 = vst.msk [vmem:[%s228 + $0x2cc] sm:$0xf] %vm3894, %v3561
        %4075 = vst.msk [vmem:[%s228 + $0x2d0] sm:$0xf] %vm3894, %v3562
        %4076 = vst.msk [vmem:[%s228 + $0x2d4] sm:$0xf] %vm3894, %v3563
        %4077 = vst.msk [vmem:[%s228 + $0x2d8] sm:$0xf] %vm3894, %v3564
        %4078 = vst.msk [vmem:[%s228 + $0x2dc] sm:$0xf] %vm3894, %v3565
        %4079 = vst.msk [vmem:[%s228 + $0x2e0] sm:$0xf] %vm3894, %v3566
        %4080 = vst.msk [vmem:[%s228 + $0x2e4] sm:$0xf] %vm3894, %v3567
        %4081 = vst.msk [vmem:[%s228 + $0x2e8] sm:$0xf] %vm3894, %v3568
        %4082 = vst.msk [vmem:[%s228 + $0x2ec] sm:$0xf] %vm3894, %v3569
        %4083 = vst.msk [vmem:[%s228 + $0x2f0] sm:$0xf] %vm3894, %v3570
        %4084 = vst.msk [vmem:[%s228 + $0x2f4] sm:$0xf] %vm3894, %v3571
        %4085 = vst.msk [vmem:[%s228 + $0x2f8] sm:$0xf] %vm3894, %v3572
        %4086 = vst.msk [vmem:[%s228 + $0x2fc] sm:$0xf] %vm3894, %v3573
        %4087 = vst.msk [vmem:[%s228 + $0x300] sm:$0xf] %vm3894, %v3574
        %4088 = vst.msk [vmem:[%s228 + $0x304] sm:$0xf] %vm3894, %v3575
        %4089 = vst.msk [vmem:[%s228 + $0x308] sm:$0xf] %vm3894, %v3576
        %4090 = vst.msk [vmem:[%s228 + $0x30c] sm:$0xf] %vm3894, %v3577
        %4091 = vst.msk [vmem:[%s228 + $0x310] sm:$0xf] %vm3894, %v3578
        %4092 = vst.msk [vmem:[%s228 + $0x314] sm:$0xf] %vm3894, %v3579
        %4093 = vst.msk [vmem:[%s228 + $0x318] sm:$0xf] %vm3894, %v3580
        %4094 = vst.msk [vmem:[%s228 + $0x31c] sm:$0xf] %vm3894, %v3581
        %4095 = vst.msk [vmem:[%s228 + $0x320] sm:$0xf] %vm3894, %v3582
        %4096 = vst.msk [vmem:[%s228 + $0x324] sm:$0xf] %vm3894, %v3583
        %4097 = vst.msk [vmem:[%s228 + $0x328] sm:$0xf] %vm3894, %v3584
        %4098 = vst.msk [vmem:[%s228 + $0x32c] sm:$0xf] %vm3894, %v3585
        %4099 = vst.msk [vmem:[%s228 + $0x330] sm:$0xf] %vm3894, %v3586
        %4100 = vst.msk [vmem:[%s228 + $0x334] sm:$0xf] %vm3894, %v3587
        %4101 = vst.msk [vmem:[%s228 + $0x338] sm:$0xf] %vm3894, %v3588
        %4102 = vst.msk [vmem:[%s228 + $0x33c] sm:$0xf] %vm3894, %v3589
        %4103 = vst.msk [vmem:[%s228 + $0x340] sm:$0xf] %vm3894, %v3590
        %4104 = vst.msk [vmem:[%s228 + $0x344] sm:$0xf] %vm3894, %v3591
        %4105 = vst.msk [vmem:[%s228 + $0x348] sm:$0xf] %vm3894, %v3592
        %4106 = vst.msk [vmem:[%s228 + $0x34c] sm:$0xf] %vm3894, %v3593
        %4107 = vst.msk [vmem:[%s228 + $0x350] sm:$0xf] %vm3894, %v3594
        %4108 = vst.msk [vmem:[%s228 + $0x354] sm:$0xf] %vm3894, %v3595
        %4109 = vst.msk [vmem:[%s228 + $0x358] sm:$0xf] %vm3894, %v3596
        %4110 = vst.msk [vmem:[%s228 + $0x35c] sm:$0xf] %vm3894, %v3597
        %4111 = vst.msk [vmem:[%s228 + $0x360] sm:$0xf] %vm3894, %v3598
        %4112 = vst.msk [vmem:[%s228 + $0x364] sm:$0xf] %vm3894, %v3599
        %4113 = vst.msk [vmem:[%s228 + $0x368] sm:$0xf] %vm3894, %v3600
        %4114 = vst.msk [vmem:[%s228 + $0x36c] sm:$0xf] %vm3894, %v3601
        %4115 = vst.msk [vmem:[%s228 + $0x370] sm:$0xf] %vm3894, %v3602
        %4116 = vst.msk [vmem:[%s228 + $0x374] sm:$0xf] %vm3894, %v3603
        %4117 = vst.msk [vmem:[%s228 + $0x378] sm:$0xf] %vm3894, %v3604
        %4118 = vst.msk [vmem:[%s228 + $0x37c] sm:$0xf] %vm3894, %v3605
        %4119 = vst.msk [vmem:[%s228 + $0x380] sm:$0xf] %vm3894, %v3606
        %4120 = vst.msk [vmem:[%s228 + $0x384] sm:$0xf] %vm3894, %v3607
        %4121 = vst.msk [vmem:[%s228 + $0x388] sm:$0xf] %vm3894, %v3608
        %4122 = vst.msk [vmem:[%s228 + $0x38c] sm:$0xf] %vm3894, %v3609
        %4123 = vst.msk [vmem:[%s228 + $0x390] sm:$0xf] %vm3894, %v3610
        %4124 = vst.msk [vmem:[%s228 + $0x394] sm:$0xf] %vm3894, %v3611
        %4125 = vst.msk [vmem:[%s228 + $0x398] sm:$0xf] %vm3894, %v3612
        %4126 = vst.msk [vmem:[%s228 + $0x39c] sm:$0xf] %vm3894, %v3613
        %4127 = vst.msk [vmem:[%s228 + $0x3a0] sm:$0xf] %vm3894, %v3614
        %4128 = vst.msk [vmem:[%s228 + $0x3a4] sm:$0xf] %vm3894, %v3615
        %4129 = vst.msk [vmem:[%s228 + $0x3a8] sm:$0xf] %vm3894, %v3616
        %4130 = vst.msk [vmem:[%s228 + $0x3ac] sm:$0xf] %vm3894, %v3617
        %4131 = vst.msk [vmem:[%s228 + $0x3b0] sm:$0xf] %vm3894, %v3618
        %4132 = vst.msk [vmem:[%s228 + $0x3b4] sm:$0xf] %vm3894, %v3619
        %4133 = vst.msk [vmem:[%s228 + $0x3b8] sm:$0xf] %vm3894, %v3620
        %4134 = vst.msk [vmem:[%s228 + $0x3bc] sm:$0xf] %vm3894, %v3621
        %4135 = vst.msk [vmem:[%s228 + $0x3c0] sm:$0xf] %vm3894, %v3622
        %4136 = vst.msk [vmem:[%s228 + $0x3c4] sm:$0xf] %vm3894, %v3623
        %4137 = vst.msk [vmem:[%s228 + $0x3c8] sm:$0xf] %vm3894, %v3624
        %4138 = vst.msk [vmem:[%s228 + $0x3cc] sm:$0xf] %vm3894, %v3625
        %4139 = vst.msk [vmem:[%s228 + $0x3d0] sm:$0xf] %vm3894, %v3626
        %4140 = vst.msk [vmem:[%s228 + $0x3d4] sm:$0xf] %vm3894, %v3627
        %4141 = vst.msk [vmem:[%s228 + $0x3d8] sm:$0xf] %vm3894, %v3628
        %4142 = vst.msk [vmem:[%s228 + $0x3dc] sm:$0xf] %vm3894, %v3629
        %4143 = vst.msk [vmem:[%s228 + $0x3e0] sm:$0xf] %vm3894, %v3630
        %4144 = vst.msk [vmem:[%s228 + $0x3e4] sm:$0xf] %vm3894, %v3631
        %4145 = vst.msk [vmem:[%s228 + $0x3e8] sm:$0xf] %vm3894, %v3632
        %4146 = vst.msk [vmem:[%s228 + $0x3ec] sm:$0xf] %vm3894, %v3633
        %4147 = vst.msk [vmem:[%s228 + $0x3f0] sm:$0xf] %vm3894, %v3634
        %4148 = vst.msk [vmem:[%s228 + $0x3f4] sm:$0xf] %vm3894, %v3635
        %4149 = vst.msk [vmem:[%s228 + $0x3f8] sm:$0xf] %vm3894, %v3636
        %4150 = vst.msk [vmem:[%s228 + $0x3fc] sm:$0xf] %vm3894, %v3637
        %s4151 = sand.u32 %s117, 1
        %s4152 = sand.u32 %s117, 1
        %s4153 = smul.addr %s4152, 1024
        %s4154 = scalar_lea.vmem [#allocation4], %s4153
        // Predicated region
        $region37: #{tpu_custom_call.1} parent=31 // pred_check
          %p4155 = pneg %p127
        $region38: #{tpu_custom_call.1} parent=31 // pred_check_branch
          %4157 = sbr.rel (%p4155) target = $region40
        $region39: #{tpu_custom_call.1} parent=31 // pred_region
          %s4158 = smul.u32 256, %s21
          %s4159 = ssub.s32 5551, %s4158
          %p4160 = scmp.lt.s32.totalorder %s4159, 256
          %s4161 = scalar_select %p4160, %s4159, 256
          %s4162 = smul.u32 64, %s4161
          %p4163 = scmp.ne.s32.totalorder 0, %s4162
          %s4164 = sadd.s32 %s22, %s4158
          %s4165 = smul.addr %s4164, 4
          %s4166 = scalar_lea.vmem %s3, %s4165
          // Predicated region
          $region41: #{tpu_custom_call.1} parent=39 // pred_check
            %p4167 = pneg %p4163
          $region42: #{tpu_custom_call.1} parent=39 // pred_check_branch
            %4169 = sbr.rel (%p4167) target = $region44
          $region43: #{tpu_custom_call.1} parent=39 // pred_region
            // Predicated region
            $region45: #{tpu_custom_call.1} parent=43 // pred_check
              _
            $region46: #{tpu_custom_call.1} parent=43 // pred_check_branch
              %4171 = sbr.rel target = $region48
            $region47: #{tpu_custom_call.1} parent=43 // pred_region
              // Predicated region
              $region67: #{tpu_custom_call.1} parent=47 // pred_check
                _
              $region68: #{tpu_custom_call.1} parent=47 // pred_check_branch
                %4346 = sbr.rel (0) target = $region70
              $region69: #{tpu_custom_call.1} parent=47 // pred_region
                %s4348 = sshrl.u32 %s4161, 6
                // While loop
                $region71: #{tpu_custom_call.1} parent=69 // loop_pre_header
                  _
                $region72: #{tpu_custom_call.1} parent=69 // loop_header
                  %s4350 = sphi 0, %s4352
                  %p4351 = scmp.ge.s32.totalorder %s4350, %s4348
                  %s4355 = sphi 0, %s4488
                  %s4356 = sphi %s4154, %s4491
                  %s4357 = sphi %s4166, %s4492
                $region73: #{tpu_custom_call.1} parent=69 // loop_header_branch
                  %4354 = sbr.rel (%p4351) target = $region77
                $region74: #{tpu_custom_call.1} parent=69 // loop_body
                  %v4358 = vld [vmem:[%s4356] sm:$0xf]
                  %4359 = vst [vmem:[%s4357] sm:$0xf] %v4358
                  %v4360 = vld [vmem:[%s4356 + $0x4] sm:$0xf]
                  %4361 = vst [vmem:[%s4357 + $0x4] sm:$0xf] %v4360
                  %v4362 = vld [vmem:[%s4356 + $0x8] sm:$0xf]
                  %4363 = vst [vmem:[%s4357 + $0x8] sm:$0xf] %v4362
                  %v4364 = vld [vmem:[%s4356 + $0xc] sm:$0xf]
                  %4365 = vst [vmem:[%s4357 + $0xc] sm:$0xf] %v4364
                  %v4366 = vld [vmem:[%s4356 + $0x10] sm:$0xf]
                  %4367 = vst [vmem:[%s4357 + $0x10] sm:$0xf] %v4366
                  %v4368 = vld [vmem:[%s4356 + $0x14] sm:$0xf]
                  %4369 = vst [vmem:[%s4357 + $0x14] sm:$0xf] %v4368
                  %v4370 = vld [vmem:[%s4356 + $0x18] sm:$0xf]
                  %4371 = vst [vmem:[%s4357 + $0x18] sm:$0xf] %v4370
                  %v4372 = vld [vmem:[%s4356 + $0x1c] sm:$0xf]
                  %4373 = vst [vmem:[%s4357 + $0x1c] sm:$0xf] %v4372
                  %v4374 = vld [vmem:[%s4356 + $0x20] sm:$0xf]
                  %4375 = vst [vmem:[%s4357 + $0x20] sm:$0xf] %v4374
                  %v4376 = vld [vmem:[%s4356 + $0x24] sm:$0xf]
                  %4377 = vst [vmem:[%s4357 + $0x24] sm:$0xf] %v4376
                  %v4378 = vld [vmem:[%s4356 + $0x28] sm:$0xf]
                  %4379 = vst [vmem:[%s4357 + $0x28] sm:$0xf] %v4378
                  %v4380 = vld [vmem:[%s4356 + $0x2c] sm:$0xf]
                  %4381 = vst [vmem:[%s4357 + $0x2c] sm:$0xf] %v4380
                  %v4382 = vld [vmem:[%s4356 + $0x30] sm:$0xf]
                  %4383 = vst [vmem:[%s4357 + $0x30] sm:$0xf] %v4382
                  %v4384 = vld [vmem:[%s4356 + $0x34] sm:$0xf]
                  %4385 = vst [vmem:[%s4357 + $0x34] sm:$0xf] %v4384
                  %v4386 = vld [vmem:[%s4356 + $0x38] sm:$0xf]
                  %4387 = vst [vmem:[%s4357 + $0x38] sm:$0xf] %v4386
                  %v4388 = vld [vmem:[%s4356 + $0x3c] sm:$0xf]
                  %4389 = vst [vmem:[%s4357 + $0x3c] sm:$0xf] %v4388
                  %v4390 = vld [vmem:[%s4356 + $0x40] sm:$0xf]
                  %4391 = vst [vmem:[%s4357 + $0x40] sm:$0xf] %v4390
                  %v4392 = vld [vmem:[%s4356 + $0x44] sm:$0xf]
                  %4393 = vst [vmem:[%s4357 + $0x44] sm:$0xf] %v4392
                  %v4394 = vld [vmem:[%s4356 + $0x48] sm:$0xf]
                  %4395 = vst [vmem:[%s4357 + $0x48] sm:$0xf] %v4394
                  %v4396 = vld [vmem:[%s4356 + $0x4c] sm:$0xf]
                  %4397 = vst [vmem:[%s4357 + $0x4c] sm:$0xf] %v4396
                  %v4398 = vld [vmem:[%s4356 + $0x50] sm:$0xf]
                  %4399 = vst [vmem:[%s4357 + $0x50] sm:$0xf] %v4398
                  %v4400 = vld [vmem:[%s4356 + $0x54] sm:$0xf]
                  %4401 = vst [vmem:[%s4357 + $0x54] sm:$0xf] %v4400
                  %v4402 = vld [vmem:[%s4356 + $0x58] sm:$0xf]
                  %4403 = vst [vmem:[%s4357 + $0x58] sm:$0xf] %v4402
                  %v4404 = vld [vmem:[%s4356 + $0x5c] sm:$0xf]
                  %4405 = vst [vmem:[%s4357 + $0x5c] sm:$0xf] %v4404
                  %v4406 = vld [vmem:[%s4356 + $0x60] sm:$0xf]
                  %4407 = vst [vmem:[%s4357 + $0x60] sm:$0xf] %v4406
                  %v4408 = vld [vmem:[%s4356 + $0x64] sm:$0xf]
                  %4409 = vst [vmem:[%s4357 + $0x64] sm:$0xf] %v4408
                  %v4410 = vld [vmem:[%s4356 + $0x68] sm:$0xf]
                  %4411 = vst [vmem:[%s4357 + $0x68] sm:$0xf] %v4410
                  %v4412 = vld [vmem:[%s4356 + $0x6c] sm:$0xf]
                  %4413 = vst [vmem:[%s4357 + $0x6c] sm:$0xf] %v4412
                  %v4414 = vld [vmem:[%s4356 + $0x70] sm:$0xf]
                  %4415 = vst [vmem:[%s4357 + $0x70] sm:$0xf] %v4414
                  %v4416 = vld [vmem:[%s4356 + $0x74] sm:$0xf]
                  %4417 = vst [vmem:[%s4357 + $0x74] sm:$0xf] %v4416
                  %v4418 = vld [vmem:[%s4356 + $0x78] sm:$0xf]
                  %4419 = vst [vmem:[%s4357 + $0x78] sm:$0xf] %v4418
                  %v4420 = vld [vmem:[%s4356 + $0x7c] sm:$0xf]
                  %4421 = vst [vmem:[%s4357 + $0x7c] sm:$0xf] %v4420
                  %v4422 = vld [vmem:[%s4356 + $0x80] sm:$0xf]
                  %4423 = vst [vmem:[%s4357 + $0x80] sm:$0xf] %v4422
                  %v4424 = vld [vmem:[%s4356 + $0x84] sm:$0xf]
                  %4425 = vst [vmem:[%s4357 + $0x84] sm:$0xf] %v4424
                  %v4426 = vld [vmem:[%s4356 + $0x88] sm:$0xf]
                  %4427 = vst [vmem:[%s4357 + $0x88] sm:$0xf] %v4426
                  %v4428 = vld [vmem:[%s4356 + $0x8c] sm:$0xf]
                  %4429 = vst [vmem:[%s4357 + $0x8c] sm:$0xf] %v4428
                  %v4430 = vld [vmem:[%s4356 + $0x90] sm:$0xf]
                  %4431 = vst [vmem:[%s4357 + $0x90] sm:$0xf] %v4430
                  %v4432 = vld [vmem:[%s4356 + $0x94] sm:$0xf]
                  %4433 = vst [vmem:[%s4357 + $0x94] sm:$0xf] %v4432
                  %v4434 = vld [vmem:[%s4356 + $0x98] sm:$0xf]
                  %4435 = vst [vmem:[%s4357 + $0x98] sm:$0xf] %v4434
                  %v4436 = vld [vmem:[%s4356 + $0x9c] sm:$0xf]
                  %4437 = vst [vmem:[%s4357 + $0x9c] sm:$0xf] %v4436
                  %v4438 = vld [vmem:[%s4356 + $0xa0] sm:$0xf]
                  %4439 = vst [vmem:[%s4357 + $0xa0] sm:$0xf] %v4438
                  %v4440 = vld [vmem:[%s4356 + $0xa4] sm:$0xf]
                  %4441 = vst [vmem:[%s4357 + $0xa4] sm:$0xf] %v4440
                  %v4442 = vld [vmem:[%s4356 + $0xa8] sm:$0xf]
                  %4443 = vst [vmem:[%s4357 + $0xa8] sm:$0xf] %v4442
                  %v4444 = vld [vmem:[%s4356 + $0xac] sm:$0xf]
                  %4445 = vst [vmem:[%s4357 + $0xac] sm:$0xf] %v4444
                  %v4446 = vld [vmem:[%s4356 + $0xb0] sm:$0xf]
                  %4447 = vst [vmem:[%s4357 + $0xb0] sm:$0xf] %v4446
                  %v4448 = vld [vmem:[%s4356 + $0xb4] sm:$0xf]
                  %4449 = vst [vmem:[%s4357 + $0xb4] sm:$0xf] %v4448
                  %v4450 = vld [vmem:[%s4356 + $0xb8] sm:$0xf]
                  %4451 = vst [vmem:[%s4357 + $0xb8] sm:$0xf] %v4450
                  %v4452 = vld [vmem:[%s4356 + $0xbc] sm:$0xf]
                  %4453 = vst [vmem:[%s4357 + $0xbc] sm:$0xf] %v4452
                  %v4454 = vld [vmem:[%s4356 + $0xc0] sm:$0xf]
                  %4455 = vst [vmem:[%s4357 + $0xc0] sm:$0xf] %v4454
                  %v4456 = vld [vmem:[%s4356 + $0xc4] sm:$0xf]
                  %4457 = vst [vmem:[%s4357 + $0xc4] sm:$0xf] %v4456
                  %v4458 = vld [vmem:[%s4356 + $0xc8] sm:$0xf]
                  %4459 = vst [vmem:[%s4357 + $0xc8] sm:$0xf] %v4458
                  %v4460 = vld [vmem:[%s4356 + $0xcc] sm:$0xf]
                  %4461 = vst [vmem:[%s4357 + $0xcc] sm:$0xf] %v4460
                  %v4462 = vld [vmem:[%s4356 + $0xd0] sm:$0xf]
                  %4463 = vst [vmem:[%s4357 + $0xd0] sm:$0xf] %v4462
                  %v4464 = vld [vmem:[%s4356 + $0xd4] sm:$0xf]
                  %4465 = vst [vmem:[%s4357 + $0xd4] sm:$0xf] %v4464
                  %v4466 = vld [vmem:[%s4356 + $0xd8] sm:$0xf]
                  %4467 = vst [vmem:[%s4357 + $0xd8] sm:$0xf] %v4466
                  %v4468 = vld [vmem:[%s4356 + $0xdc] sm:$0xf]
                  %4469 = vst [vmem:[%s4357 + $0xdc] sm:$0xf] %v4468
                  %v4470 = vld [vmem:[%s4356 + $0xe0] sm:$0xf]
                  %4471 = vst [vmem:[%s4357 + $0xe0] sm:$0xf] %v4470
                  %v4472 = vld [vmem:[%s4356 + $0xe4] sm:$0xf]
                  %4473 = vst [vmem:[%s4357 + $0xe4] sm:$0xf] %v4472
                  %v4474 = vld [vmem:[%s4356 + $0xe8] sm:$0xf]
                  %4475 = vst [vmem:[%s4357 + $0xe8] sm:$0xf] %v4474
                  %v4476 = vld [vmem:[%s4356 + $0xec] sm:$0xf]
                  %4477 = vst [vmem:[%s4357 + $0xec] sm:$0xf] %v4476
                  %v4478 = vld [vmem:[%s4356 + $0xf0] sm:$0xf]
                  %4479 = vst [vmem:[%s4357 + $0xf0] sm:$0xf] %v4478
                  %v4480 = vld [vmem:[%s4356 + $0xf4] sm:$0xf]
                  %4481 = vst [vmem:[%s4357 + $0xf4] sm:$0xf] %v4480
                  %v4482 = vld [vmem:[%s4356 + $0xf8] sm:$0xf]
                  %4483 = vst [vmem:[%s4357 + $0xf8] sm:$0xf] %v4482
                  %v4484 = vld [vmem:[%s4356 + $0xfc] sm:$0xf]
                  %4485 = vst [vmem:[%s4357 + $0xfc] sm:$0xf] %v4484
                  %s4486 = sadd.s32 1, %s4355
                  %p4487 = scmp.ge.s32.totalorder %s4486, %s4348
                  %s4488 = scalar_select %p4487, 0, %s4486
                  %s4489 = smul.u32 %s4488, 256
                  %s4490 = smul.u32 %s4488, 256
                  %s4491 = scalar_lea.vmem %s4154, %s4489 [#allocation4]
                  %s4492 = scalar_lea.vmem %s4166, %s4490
                $region75: #{tpu_custom_call.1} parent=69 // loop_footer
                  %s4352 = sadd.s32 %s4350, 1
                $region76: #{tpu_custom_call.1} parent=69 // loop_footer_branch
                  %4349 = sbr.rel target = $region72
                $region77: #{tpu_custom_call.1} parent=69 // loop_exit
                  _
                %s4493 = sshrl.u32 %s4161, 6
                %s4494 = sand.u32 %s4161, 63
                %s4495 = smul.u32 %s4493, 64
                %s4496 = smul.u32 4, %s4495
                %s4497 = scalar_lea.vmem %s4154, %s4496 [#allocation4]
                %s4498 = smul.u32 4, %s4495
                %s4499 = scalar_lea.vmem %s4166, %s4498
                // While loop
                $region78: #{tpu_custom_call.1} parent=69 // loop_pre_header
                  _
                $region79: #{tpu_custom_call.1} parent=69 // loop_header
                  %s4501 = sphi 0, %s4503
                  %p4502 = scmp.ge.s32.totalorder %s4501, %s4494
                  %s4506 = sphi 0, %s4513
                  %s4507 = sphi %s4497, %s4516
                  %s4508 = sphi %s4499, %s4517
                $region80: #{tpu_custom_call.1} parent=69 // loop_header_branch
                  %4505 = sbr.rel (%p4502) target = $region84
                $region81: #{tpu_custom_call.1} parent=69 // loop_body
                  %v4509 = vld [vmem:[%s4507] sm:$0xf]
                  %4510 = vst [vmem:[%s4508] sm:$0xf] %v4509
                  %s4511 = sadd.s32 1, %s4506
                  %p4512 = scmp.ge.s32.totalorder %s4511, %s4494
                  %s4513 = scalar_select %p4512, 0, %s4511
                  %s4514 = smul.u32 %s4513, 4
                  %s4515 = smul.u32 %s4513, 4
                  %s4516 = scalar_lea.vmem %s4497, %s4514 [#allocation4]
                  %s4517 = scalar_lea.vmem %s4499, %s4515
                $region82: #{tpu_custom_call.1} parent=69 // loop_footer
                  %s4503 = sadd.s32 %s4501, 1
                $region83: #{tpu_custom_call.1} parent=69 // loop_footer_branch
                  %4500 = sbr.rel target = $region79
                $region84: #{tpu_custom_call.1} parent=69 // loop_exit
                  _
              $region70: #{tpu_custom_call.1} parent=47 // pred_fallthru
                _
            $region48: #{tpu_custom_call.1} parent=43 // pred_fallthru
              _
            // Predicated region
            $region49: #{tpu_custom_call.1} parent=43 // pred_check
              _
            $region50: #{tpu_custom_call.1} parent=43 // pred_check_branch
              %4173 = sbr.rel (0) target = $region52
            $region51: #{tpu_custom_call.1} parent=43 // pred_region
              %s4175 = sshrl.u32 %s4161, 6
              // While loop
              $region53: #{tpu_custom_call.1} parent=51 // loop_pre_header
                _
              $region54: #{tpu_custom_call.1} parent=51 // loop_header
                %s4177 = sphi 0, %s4179
                %p4178 = scmp.ge.s32.totalorder %s4177, %s4175
                %s4182 = sphi 0, %s4315
                %s4183 = sphi %s4154, %s4318
                %s4184 = sphi %s4166, %s4319
              $region55: #{tpu_custom_call.1} parent=51 // loop_header_branch
                %4181 = sbr.rel (%p4178) target = $region59
              $region56: #{tpu_custom_call.1} parent=51 // loop_body
                %v4185 = vld [vmem:[%s4183] sm:$0xf]
                %4186 = vst [vmem:[%s4184] sm:$0xf] %v4185
                %v4187 = vld [vmem:[%s4183 + $0x4] sm:$0xf]
                %4188 = vst [vmem:[%s4184 + $0x4] sm:$0xf] %v4187
                %v4189 = vld [vmem:[%s4183 + $0x8] sm:$0xf]
                %4190 = vst [vmem:[%s4184 + $0x8] sm:$0xf] %v4189
                %v4191 = vld [vmem:[%s4183 + $0xc] sm:$0xf]
                %4192 = vst [vmem:[%s4184 + $0xc] sm:$0xf] %v4191
                %v4193 = vld [vmem:[%s4183 + $0x10] sm:$0xf]
                %4194 = vst [vmem:[%s4184 + $0x10] sm:$0xf] %v4193
                %v4195 = vld [vmem:[%s4183 + $0x14] sm:$0xf]
                %4196 = vst [vmem:[%s4184 + $0x14] sm:$0xf] %v4195
                %v4197 = vld [vmem:[%s4183 + $0x18] sm:$0xf]
                %4198 = vst [vmem:[%s4184 + $0x18] sm:$0xf] %v4197
                %v4199 = vld [vmem:[%s4183 + $0x1c] sm:$0xf]
                %4200 = vst [vmem:[%s4184 + $0x1c] sm:$0xf] %v4199
                %v4201 = vld [vmem:[%s4183 + $0x20] sm:$0xf]
                %4202 = vst [vmem:[%s4184 + $0x20] sm:$0xf] %v4201
                %v4203 = vld [vmem:[%s4183 + $0x24] sm:$0xf]
                %4204 = vst [vmem:[%s4184 + $0x24] sm:$0xf] %v4203
                %v4205 = vld [vmem:[%s4183 + $0x28] sm:$0xf]
                %4206 = vst [vmem:[%s4184 + $0x28] sm:$0xf] %v4205
                %v4207 = vld [vmem:[%s4183 + $0x2c] sm:$0xf]
                %4208 = vst [vmem:[%s4184 + $0x2c] sm:$0xf] %v4207
                %v4209 = vld [vmem:[%s4183 + $0x30] sm:$0xf]
                %4210 = vst [vmem:[%s4184 + $0x30] sm:$0xf] %v4209
                %v4211 = vld [vmem:[%s4183 + $0x34] sm:$0xf]
                %4212 = vst [vmem:[%s4184 + $0x34] sm:$0xf] %v4211
                %v4213 = vld [vmem:[%s4183 + $0x38] sm:$0xf]
                %4214 = vst [vmem:[%s4184 + $0x38] sm:$0xf] %v4213
                %v4215 = vld [vmem:[%s4183 + $0x3c] sm:$0xf]
                %4216 = vst [vmem:[%s4184 + $0x3c] sm:$0xf] %v4215
                %v4217 = vld [vmem:[%s4183 + $0x40] sm:$0xf]
                %4218 = vst [vmem:[%s4184 + $0x40] sm:$0xf] %v4217
                %v4219 = vld [vmem:[%s4183 + $0x44] sm:$0xf]
                %4220 = vst [vmem:[%s4184 + $0x44] sm:$0xf] %v4219
                %v4221 = vld [vmem:[%s4183 + $0x48] sm:$0xf]
                %4222 = vst [vmem:[%s4184 + $0x48] sm:$0xf] %v4221
                %v4223 = vld [vmem:[%s4183 + $0x4c] sm:$0xf]
                %4224 = vst [vmem:[%s4184 + $0x4c] sm:$0xf] %v4223
                %v4225 = vld [vmem:[%s4183 + $0x50] sm:$0xf]
                %4226 = vst [vmem:[%s4184 + $0x50] sm:$0xf] %v4225
                %v4227 = vld [vmem:[%s4183 + $0x54] sm:$0xf]
                %4228 = vst [vmem:[%s4184 + $0x54] sm:$0xf] %v4227
                %v4229 = vld [vmem:[%s4183 + $0x58] sm:$0xf]
                %4230 = vst [vmem:[%s4184 + $0x58] sm:$0xf] %v4229
                %v4231 = vld [vmem:[%s4183 + $0x5c] sm:$0xf]
                %4232 = vst [vmem:[%s4184 + $0x5c] sm:$0xf] %v4231
                %v4233 = vld [vmem:[%s4183 + $0x60] sm:$0xf]
                %4234 = vst [vmem:[%s4184 + $0x60] sm:$0xf] %v4233
                %v4235 = vld [vmem:[%s4183 + $0x64] sm:$0xf]
                %4236 = vst [vmem:[%s4184 + $0x64] sm:$0xf] %v4235
                %v4237 = vld [vmem:[%s4183 + $0x68] sm:$0xf]
                %4238 = vst [vmem:[%s4184 + $0x68] sm:$0xf] %v4237
                %v4239 = vld [vmem:[%s4183 + $0x6c] sm:$0xf]
                %4240 = vst [vmem:[%s4184 + $0x6c] sm:$0xf] %v4239
                %v4241 = vld [vmem:[%s4183 + $0x70] sm:$0xf]
                %4242 = vst [vmem:[%s4184 + $0x70] sm:$0xf] %v4241
                %v4243 = vld [vmem:[%s4183 + $0x74] sm:$0xf]
                %4244 = vst [vmem:[%s4184 + $0x74] sm:$0xf] %v4243
                %v4245 = vld [vmem:[%s4183 + $0x78] sm:$0xf]
                %4246 = vst [vmem:[%s4184 + $0x78] sm:$0xf] %v4245
                %v4247 = vld [vmem:[%s4183 + $0x7c] sm:$0xf]
                %4248 = vst [vmem:[%s4184 + $0x7c] sm:$0xf] %v4247
                %v4249 = vld [vmem:[%s4183 + $0x80] sm:$0xf]
                %4250 = vst [vmem:[%s4184 + $0x80] sm:$0xf] %v4249
                %v4251 = vld [vmem:[%s4183 + $0x84] sm:$0xf]
                %4252 = vst [vmem:[%s4184 + $0x84] sm:$0xf] %v4251
                %v4253 = vld [vmem:[%s4183 + $0x88] sm:$0xf]
                %4254 = vst [vmem:[%s4184 + $0x88] sm:$0xf] %v4253
                %v4255 = vld [vmem:[%s4183 + $0x8c] sm:$0xf]
                %4256 = vst [vmem:[%s4184 + $0x8c] sm:$0xf] %v4255
                %v4257 = vld [vmem:[%s4183 + $0x90] sm:$0xf]
                %4258 = vst [vmem:[%s4184 + $0x90] sm:$0xf] %v4257
                %v4259 = vld [vmem:[%s4183 + $0x94] sm:$0xf]
                %4260 = vst [vmem:[%s4184 + $0x94] sm:$0xf] %v4259
                %v4261 = vld [vmem:[%s4183 + $0x98] sm:$0xf]
                %4262 = vst [vmem:[%s4184 + $0x98] sm:$0xf] %v4261
                %v4263 = vld [vmem:[%s4183 + $0x9c] sm:$0xf]
                %4264 = vst [vmem:[%s4184 + $0x9c] sm:$0xf] %v4263
                %v4265 = vld [vmem:[%s4183 + $0xa0] sm:$0xf]
                %4266 = vst [vmem:[%s4184 + $0xa0] sm:$0xf] %v4265
                %v4267 = vld [vmem:[%s4183 + $0xa4] sm:$0xf]
                %4268 = vst [vmem:[%s4184 + $0xa4] sm:$0xf] %v4267
                %v4269 = vld [vmem:[%s4183 + $0xa8] sm:$0xf]
                %4270 = vst [vmem:[%s4184 + $0xa8] sm:$0xf] %v4269
                %v4271 = vld [vmem:[%s4183 + $0xac] sm:$0xf]
                %4272 = vst [vmem:[%s4184 + $0xac] sm:$0xf] %v4271
                %v4273 = vld [vmem:[%s4183 + $0xb0] sm:$0xf]
                %4274 = vst [vmem:[%s4184 + $0xb0] sm:$0xf] %v4273
                %v4275 = vld [vmem:[%s4183 + $0xb4] sm:$0xf]
                %4276 = vst [vmem:[%s4184 + $0xb4] sm:$0xf] %v4275
                %v4277 = vld [vmem:[%s4183 + $0xb8] sm:$0xf]
                %4278 = vst [vmem:[%s4184 + $0xb8] sm:$0xf] %v4277
                %v4279 = vld [vmem:[%s4183 + $0xbc] sm:$0xf]
                %4280 = vst [vmem:[%s4184 + $0xbc] sm:$0xf] %v4279
                %v4281 = vld [vmem:[%s4183 + $0xc0] sm:$0xf]
                %4282 = vst [vmem:[%s4184 + $0xc0] sm:$0xf] %v4281
                %v4283 = vld [vmem:[%s4183 + $0xc4] sm:$0xf]
                %4284 = vst [vmem:[%s4184 + $0xc4] sm:$0xf] %v4283
                %v4285 = vld [vmem:[%s4183 + $0xc8] sm:$0xf]
                %4286 = vst [vmem:[%s4184 + $0xc8] sm:$0xf] %v4285
                %v4287 = vld [vmem:[%s4183 + $0xcc] sm:$0xf]
                %4288 = vst [vmem:[%s4184 + $0xcc] sm:$0xf] %v4287
                %v4289 = vld [vmem:[%s4183 + $0xd0] sm:$0xf]
                %4290 = vst [vmem:[%s4184 + $0xd0] sm:$0xf] %v4289
                %v4291 = vld [vmem:[%s4183 + $0xd4] sm:$0xf]
                %4292 = vst [vmem:[%s4184 + $0xd4] sm:$0xf] %v4291
                %v4293 = vld [vmem:[%s4183 + $0xd8] sm:$0xf]
                %4294 = vst [vmem:[%s4184 + $0xd8] sm:$0xf] %v4293
                %v4295 = vld [vmem:[%s4183 + $0xdc] sm:$0xf]
                %4296 = vst [vmem:[%s4184 + $0xdc] sm:$0xf] %v4295
                %v4297 = vld [vmem:[%s4183 + $0xe0] sm:$0xf]
                %4298 = vst [vmem:[%s4184 + $0xe0] sm:$0xf] %v4297
                %v4299 = vld [vmem:[%s4183 + $0xe4] sm:$0xf]
                %4300 = vst [vmem:[%s4184 + $0xe4] sm:$0xf] %v4299
                %v4301 = vld [vmem:[%s4183 + $0xe8] sm:$0xf]
                %4302 = vst [vmem:[%s4184 + $0xe8] sm:$0xf] %v4301
                %v4303 = vld [vmem:[%s4183 + $0xec] sm:$0xf]
                %4304 = vst [vmem:[%s4184 + $0xec] sm:$0xf] %v4303
                %v4305 = vld [vmem:[%s4183 + $0xf0] sm:$0xf]
                %4306 = vst [vmem:[%s4184 + $0xf0] sm:$0xf] %v4305
                %v4307 = vld [vmem:[%s4183 + $0xf4] sm:$0xf]
                %4308 = vst [vmem:[%s4184 + $0xf4] sm:$0xf] %v4307
                %v4309 = vld [vmem:[%s4183 + $0xf8] sm:$0xf]
                %4310 = vst [vmem:[%s4184 + $0xf8] sm:$0xf] %v4309
                %v4311 = vld [vmem:[%s4183 + $0xfc] sm:$0xf]
                %4312 = vst [vmem:[%s4184 + $0xfc] sm:$0xf] %v4311
                %s4313 = sadd.s32 1, %s4182
                %p4314 = scmp.ge.s32.totalorder %s4313, %s4175
                %s4315 = scalar_select %p4314, 0, %s4313
                %s4316 = smul.u32 %s4315, 256
                %s4317 = smul.u32 %s4315, 256
                %s4318 = scalar_lea.vmem %s4154, %s4316 [#allocation4]
                %s4319 = scalar_lea.vmem %s4166, %s4317
              $region57: #{tpu_custom_call.1} parent=51 // loop_footer
                %s4179 = sadd.s32 %s4177, 1
              $region58: #{tpu_custom_call.1} parent=51 // loop_footer_branch
                %4176 = sbr.rel target = $region54
              $region59: #{tpu_custom_call.1} parent=51 // loop_exit
                _
              %s4320 = sshrl.u32 %s4161, 6
              %s4321 = sand.u32 %s4161, 63
              %s4322 = smul.u32 %s4320, 64
              %s4323 = smul.u32 4, %s4322
              %s4324 = scalar_lea.vmem %s4154, %s4323 [#allocation4]
              %s4325 = smul.u32 4, %s4322
              %s4326 = scalar_lea.vmem %s4166, %s4325
              // While loop
              $region60: #{tpu_custom_call.1} parent=51 // loop_pre_header
                _
              $region61: #{tpu_custom_call.1} parent=51 // loop_header
                %s4328 = sphi 0, %s4330
                %p4329 = scmp.ge.s32.totalorder %s4328, %s4321
                %s4333 = sphi 0, %s4340
                %s4334 = sphi %s4324, %s4343
                %s4335 = sphi %s4326, %s4344
              $region62: #{tpu_custom_call.1} parent=51 // loop_header_branch
                %4332 = sbr.rel (%p4329) target = $region66
              $region63: #{tpu_custom_call.1} parent=51 // loop_body
                %v4336 = vld [vmem:[%s4334] sm:$0xf]
                %4337 = vst [vmem:[%s4335] sm:$0xf] %v4336
                %s4338 = sadd.s32 1, %s4333
                %p4339 = scmp.ge.s32.totalorder %s4338, %s4321
                %s4340 = scalar_select %p4339, 0, %s4338
                %s4341 = smul.u32 %s4340, 4
                %s4342 = smul.u32 %s4340, 4
                %s4343 = scalar_lea.vmem %s4324, %s4341 [#allocation4]
                %s4344 = scalar_lea.vmem %s4326, %s4342
              $region64: #{tpu_custom_call.1} parent=51 // loop_footer
                %s4330 = sadd.s32 %s4328, 1
              $region65: #{tpu_custom_call.1} parent=51 // loop_footer_branch
                %4327 = sbr.rel target = $region61
              $region66: #{tpu_custom_call.1} parent=51 // loop_exit
                _
            $region52: #{tpu_custom_call.1} parent=43 // pred_fallthru
              _
          $region44: #{tpu_custom_call.1} parent=39 // pred_fallthru
            _
          %4518 = vnop
        $region40: #{tpu_custom_call.1} parent=31 // pred_fallthru
          _
      $region32: #{tpu_custom_call.1} parent=5 // pred_fallthru
        _
      %p4519 = scmp.le.s32.totalorder 2, %s12
      // Predicated region
      $region85: #{tpu_custom_call.1} parent=5 // pred_check
        %p4520 = pneg %p4519
      $region86: #{tpu_custom_call.1} parent=5 // pred_check_branch
        %4522 = sbr.rel (%p4520) target = $region88
      $region87: #{tpu_custom_call.1} parent=5 // pred_region
        %s4523 = ssub.s32 %s12, 2
        // Predicated region
        $region89: #{tpu_custom_call.1} parent=87 // pred_check
          %p4524 = pneg %p133
        $region90: #{tpu_custom_call.1} parent=87 // pred_check_branch
          %4526 = sbr.rel (%p4524) target = $region92
        $region91: #{tpu_custom_call.1} parent=87 // pred_region
          %s4527 = sand.u32 %s118, 1
          %s4528 = sand.u32 %s118, 1
          %s4529 = smul.addr %s4528, 1024
          %s4530 = scalar_lea.vmem [#allocation4], %s4529
        $region92: #{tpu_custom_call.1} parent=87 // pred_fallthru
          _
      $region88: #{tpu_custom_call.1} parent=5 // pred_fallthru
        _
    $region6: #{tpu_custom_call.1} parent=1 // loop_footer
      %s16 = sadd.s32 1, %s12
    $region7: #{tpu_custom_call.1} parent=1 // loop_footer_branch
      %11 = sbr.rel target = $region3
    $region8: #{tpu_custom_call.1} parent=1 // loop_exit
      _
    %4531 = vsyncpa [#allocation3], 1
    %s4532 = scalar_lea.sflag [#allocation3], 1
    %4533 = vsyncpa %s4532, 1

</llo_original>
